<compile_context>
chip_gen: v6e
topology: v6e:2x2x1
jax: 0.10.0
libtpu: 0.0.40
codegen_flags: <defaults>
</compile_context>

<pallas_src>
import functools

import jax
import jax.numpy as jnp
from jax.experimental import pallas as pl
from jax.experimental.pallas import tpu as pltpu

# ---------------- configuration (stand-in for global_defs) ----------------
N_STK = 4          # global_defs.n_stk      (small demo value)
N_STK_PNT = 8      # global_defs.n_stk_pnt  (small demo value)
N_POINT = N_STK * N_STK_PNT
N_CLASS = 10
BS = 2

SPARSE_L0, SPARSE_L1, SPARSE_L2 = 16 + 8, 64 + 32, 256 + 128   # 24, 96, 384
DENSE_L0, DENSE_L1, DENSE_L2 = 16, 64, 256

# order in which parameters are fed to the fused kernel (after x0, x1)
PARAM_ORDER = (
    "p2s_w", "p2s_b", "p2d_w", "p2d_b",
    "s1s_w", "s1d_w", "s1_b", "d1d_w", "d1s_w", "d1_b",
    "s2s_w", "s2d_w", "s2_b", "d2d_w", "d2s_w", "d2_b",
    "f1w_sg0", "f1w_sg1", "f1w_sg2", "f1w_dg0", "f1w_dg1", "f1w_dg2", "f1_b",
    "f2_w", "f2_b", "f3_w", "f3_b",
)


# =========================== in-kernel helpers =============================
def _relu(v):
    return jnp.maximum(v, 0.0)


def _rows_max(x):
    """Max over the row (sublane) axis of a rank-2 value -> [1, C].

    Log-depth tree of elementwise maxima on static row slices (no rank-3
    reshapes / middle-axis reductions needed)."""
    r = x.shape[0]
    while r > 1:
        h = (r + 1) // 2
        x = jnp.maximum(x[:h, :], x[r - h:r, :])   # overlap when odd is fine (max is idempotent)
        r = h
    return x


def _group_rows_max_into(x, group, out_ref):
    """x: [G*group, C]; write the max of each consecutive `group` rows to out_ref[g, :]."""
    n_groups = x.shape[0] // group
    for g in range(n_groups):
        out_ref[g:g + 1, :] = _rows_max(x[g * group:(g + 1) * group, :])


def _dense_stage_into(dn_part, sp_part, bias, stk_pnt, out_ref):
    """Fused dense-branch update of one SDGraphEncoder stage.

    Adds the per-stroke sparse contribution (broadcast over the stroke's
    points) to the per-point dense matmul result, applies bias+ReLU, and
    max-pools consecutive point pairs (length // 2 down-sample)."""
    n_strokes = sp_part.shape[0]
    half = stk_pnt // 2
    for g in range(n_strokes):
        blk = _relu(dn_part[g * stk_pnt:(g + 1) * stk_pnt, :]
                    + sp_part[g:g + 1, :] + bias)              # [stk_pnt, C]
        for j in range(half):
            out_ref[g * half + j:g * half + j + 1, :] = jnp.maximum(
                blk[2 * j:2 * j + 1, :], blk[2 * j + 1:2 * j + 2, :])


# =========================== the fused kernel ==============================
def _sdgraph_kernel(x0_ref, x1_ref,
                    p2s_w_ref, p2s_b_ref, p2d_w_ref, p2d_b_ref,
                    s1s_w_ref, s1d_w_ref, s1_b_ref,
                    d1d_w_ref, d1s_w_ref, d1_b_ref,
                    s2s_w_ref, s2d_w_ref, s2_b_ref,
                    d2d_w_ref, d2s_w_ref, d2_b_ref,
                    f1w_sg0_ref, f1w_sg1_ref, f1w_sg2_ref,
                    f1w_dg0_ref, f1w_dg1_ref, f1w_dg2_ref, f1_b_ref,
                    f2_w_ref, f2_b_ref, f3_w_ref, f3_b_ref,
                    o_ref,
                    sp0_buf, dnp0_buf, d1_buf, dnp1_buf, d2_buf,
                    *, bs, n_stk, n_stk_pnt):
    f32 = jnp.float32
    n_point = n_stk * n_stk_pnt

    x0 = x0_ref[...]                      # [bs*n_point, 1]
    x1 = x1_ref[...]                      # [bs*n_point, 1]

    # ---- point embeddings: K=2 contraction done on the VPU (MXU skipped) ----
    p2s_w = p2s_w_ref[...]
    h_sp = _relu(x0 * p2s_w[0:1, :] + x1 * p2s_w[1:2, :] + p2s_b_ref[...])     # [bs*L, 24]
    p2d_w = p2d_w_ref[...]
    dense0 = _relu(x0 * p2d_w[0:1, :] + x1 * p2d_w[1:2, :] + p2d_b_ref[...])   # [bs*L, 16]

    # ---- per-stroke max pools (PointToSparse pooling + stage-1 dense->sparse) ----
    _group_rows_max_into(h_sp, n_stk_pnt, sp0_buf)        # sparse0  [bs*n_stk, 24]
    _group_rows_max_into(dense0, n_stk_pnt, dnp0_buf)     # dn_pool0 [bs*n_stk, 16]
    sparse0 = sp0_buf[...]
    dn_pool0 = dnp0_buf[...]

    # ---- SDGraphEncoder 1 (split weights: no concat / repeat) ----
    sparse1 = _relu(jnp.dot(sparse0, s1s_w_ref[...], preferred_element_type=f32)
                    + jnp.dot(dn_pool0, s1d_w_ref[...], preferred_element_type=f32)
                    + s1_b_ref[...])                                           # [bs*n_stk, 96]
    dn_part1 = jnp.dot(dense0, d1d_w_ref[...], preferred_element_type=f32)     # [bs*L, 64]
    sp_part1 = jnp.dot(sparse0, d1s_w_ref[...], preferred_element_type=f32)    # [bs*n_stk, 64]
    _dense_stage_into(dn_part1, sp_part1, d1_b_ref[...], n_stk_pnt, d1_buf)    # dense1 [bs*L/2, 64]
    dense1 = d1_buf[...]

    # ---- SDGraphEncoder 2 (stroke length halved) ----
    stk_pnt2 = n_stk_pnt // 2
    _group_rows_max_into(dense1, stk_pnt2, dnp1_buf)      # dn_pool1 [bs*n_stk, 64]
    dn_pool1 = dnp1_buf[...]
    sparse2 = _relu(jnp.dot(sparse1, s2s_w_ref[...], preferred_element_type=f32)
                    + jnp.dot(dn_pool1, s2d_w_ref[...], preferred_element_type=f32)
                    + s2_b_ref[...])                                           # [bs*n_stk, 384]
    dn_part2 = jnp.dot(dense1, d2d_w_ref[...], preferred_element_type=f32)     # [bs*L/2, 256]
    sp_part2 = jnp.dot(sparse1, d2s_w_ref[...], preferred_element_type=f32)    # [bs*n_stk, 256]
    _dense_stage_into(dn_part2, sp_part2, d2_b_ref[...], stk_pnt2, d2_buf)     # dense2 [bs*L/4, 256]
    dense2 = d2_buf[...]

    # ---- global max pools + FC head + fused log-softmax (per batch row) ----
    l1 = n_point // 2
    l2 = n_point // 4
    for b in range(bs):
        sg0 = _rows_max(sparse0[b * n_stk:(b + 1) * n_stk, :])      # [1, 24]
        sg1 = _rows_max(sparse1[b * n_stk:(b + 1) * n_stk, :])      # [1, 96]
        sg2 = _rows_max(sparse2[b * n_stk:(b + 1) * n_stk, :])      # [1, 384]
        dg0 = _rows_max(dense0[b * n_point:(b + 1) * n_point, :])   # [1, 16]
        dg1 = _rows_max(dense1[b * l1:(b + 1) * l1, :])             # [1, 64]
        dg2 = _rows_max(dense2[b * l2:(b + 1) * l2, :])             # [1, 256]

        # fc1 over the (virtual) concat of the six global features
        h = (jnp.dot(sg0, f1w_sg0_ref[...], preferred_element_type=f32)
             + jnp.dot(sg1, f1w_sg1_ref[...], preferred_element_type=f32)
             + jnp.dot(sg2, f1w_sg2_ref[...], preferred_element_type=f32)
             + jnp.dot(dg0, f1w_dg0_ref[...], preferred_element_type=f32)
             + jnp.dot(dg1, f1w_dg1_ref[...], preferred_element_type=f32)
             + jnp.dot(dg2, f1w_dg2_ref[...], preferred_element_type=f32)
             + f1_b_ref[...])
        h = _relu(h)                                                            # [1, 191]
        h = _relu(jnp.dot(h, f2_w_ref[...], preferred_element_type=f32)
                  + f2_b_ref[...])                                              # [1, 43]
        logits = (jnp.dot(h, f3_w_ref[...], preferred_element_type=f32)
                  + f3_b_ref[...])                                              # [1, n_class]

        # fused log-softmax
        m = jnp.max(logits, axis=-1, keepdims=True)
        s = logits - m
        lse = jnp.log(jnp.sum(jnp.exp(s), axis=-1, keepdims=True))
        o_ref[b:b + 1, :] = (s - lse).astype(o_ref.dtype)


# =========================== host-side wrapper =============================
@jax.jit
def sdgraph_cls_forward(xy, params):
    """xy: [bs, 2, n_skh_pnt] (PyTorch NCL layout) -> [bs, n_class] log-probs."""
    xy = xy[:, :2, :]
    bs, channel, n_point = xy.shape
    assert channel == 2 and n_point == N_STK * N_STK_PNT
    x = jnp.transpose(xy, (0, 2, 1)).reshape(bs * n_point, 2).astype(jnp.float32)
    x0 = x[:, 0:1]
    x1 = x[:, 1:2]

    args = [x0, x1] + [params[k] for k in PARAM_ORDER]
    kernel = functools.partial(_sdgraph_kernel, bs=bs, n_stk=N_STK,
                               n_stk_pnt=N_STK_PNT)
    vmem_spec = pl.BlockSpec(memory_space=pltpu.MemorySpace.VMEM)

    return pl.pallas_call(
        kernel,
        out_shape=jax.ShapeDtypeStruct((bs, N_CLASS), jnp.float32),
        in_specs=[vmem_spec] * len(args),
        out_specs=pl.BlockSpec(memory_space=pltpu.MemorySpace.VMEM),
        scratch_shapes=[
            pltpu.VMEM((bs * N_STK, SPARSE_L0), jnp.float32),        # sparse0
            pltpu.VMEM((bs * N_STK, DENSE_L0), jnp.float32),         # dn_pool0
            pltpu.VMEM((bs * n_point // 2, DENSE_L1), jnp.float32),  # dense1
            pltpu.VMEM((bs * N_STK, DENSE_L1), jnp.float32),         # dn_pool1
            pltpu.VMEM((bs * n_point // 4, DENSE_L2), jnp.float32),  # dense2
        ],
    )(*args)


# =========================== parameters ====================================
def _init_linear(key, cin, cout, scale=0.1):
    kw, kb = jax.random.split(key)
    w = scale * jax.random.normal(kw, (cin, cout), jnp.float32)
    b = scale * jax.random.normal(kb, (1, cout), jnp.float32)
    return w, b


def init_params(key):
    ks = jax.random.split(key, 9)
    p = {}
    p["p2s_w"], p["p2s_b"] = _init_linear(ks[0], 2, SPARSE_L0)
    p["p2d_w"], p["p2d_b"] = _init_linear(ks[1], 2, DENSE_L0)

    # SDGraphEncoder 1: weights stored pre-split by the (virtual) concat layout
    w, b = _init_linear(ks[2], SPARSE_L0 + DENSE_L0, SPARSE_L1)
    p["s1s_w"], p["s1d_w"], p["s1_b"] = w[:SPARSE_L0], w[SPARSE_L0:], b
    w, b = _init_linear(ks[3], DENSE_L0 + SPARSE_L0, DENSE_L1)
    p["d1d_w"], p["d1s_w"], p["d1_b"] = w[:DENSE_L0], w[DENSE_L0:], b
    # SDGraphEncoder 2
    w, b = _init_linear(ks[4], SPARSE_L1 + DENSE_L1, SPARSE_L2)
    p["s2s_w"], p["s2d_w"], p["s2_b"] = w[:SPARSE_L1], w[SPARSE_L1:], b
    w, b = _init_linear(ks[5], DENSE_L1 + SPARSE_L1, DENSE_L2)
    p["d2d_w"], p["d2s_w"], p["d2_b"] = w[:DENSE_L1], w[DENSE_L1:], b

    # full_connected([840, 191, 43, n_class], final_proc=False)
    sparse_glo = SPARSE_L0 + SPARSE_L1 + SPARSE_L2
    dense_glo = DENSE_L0 + DENSE_L1 + DENSE_L2
    out_l0 = sparse_glo + dense_glo
    out_inc = (N_CLASS / out_l0) ** (1.0 / 3.0)
    out_l1 = int(out_l0 * out_inc)
    out_l2 = int(out_l1 * out_inc)
    w, b = _init_linear(ks[6], out_l0, out_l1)
    splits = [SPARSE_L0, SPARSE_L1, SPARSE_L2, DENSE_L0, DENSE_L1, DENSE_L2]
    names = ["f1w_sg0", "f1w_sg1", "f1w_sg2", "f1w_dg0", "f1w_dg1", "f1w_dg2"]
    off = 0
    for n, s in zip(names, splits):
        p[n] = w[off:off + s]
        off += s
    p["f1_b"] = b
    p["f2_w"], p["f2_b"] = _init_linear(ks[7], out_l1, out_l2)
    p["f3_w"], p["f3_b"] = _init_linear(ks[8], out_l2, N_CLASS)
    return p


# =========================== pure-JAX reference ============================
def _dot_hi(a, b):
    return jnp.dot(a, b, precision=jax.lax.Precision.HIGHEST)


def sdgraph_cls_reference(xy, params):
    """Same math as the fused kernel, in plain jnp (for a correctness check)."""
    xy = xy[:, :2, :]
    bs = xy.shape[0]
    x = jnp.transpose(xy, (0, 2, 1)).reshape(bs * N_POINT, 2).astype(jnp.float32)

    def gmax(a, g):
        return jnp.max(a.reshape(-1, g, a.shape[-1]), axis=1)

    relu = lambda v: jnp.maximum(v, 0.0)
    h_sp = relu(_dot_hi(x, params["p2s_w"]) + params["p2s_b"])
    dense0 = relu(_dot_hi(x, params["p2d_w"]) + params["p2d_b"])
    sparse0 = gmax(h_sp, N_STK_PNT)
    dnp0 = gmax(dense0, N_STK_PNT)

    sparse1 = relu(_dot_hi(sparse0, params["s1s_w"]) + _dot_hi(dnp0, params["s1d_w"])
                   + params["s1_b"])
    dense_h1 = relu(_dot_hi(dense0, params["d1d_w"])
                    + jnp.repeat(_dot_hi(sparse0, params["d1s_w"]), N_STK_PNT, axis=0)
                    + params["d1_b"])
    dense1 = gmax(dense_h1, 2)

    dnp1 = gmax(dense1, N_STK_PNT // 2)
    sparse2 = relu(_dot_hi(sparse1, params["s2s_w"]) + _dot_hi(dnp1, params["s2d_w"])
                   + params["s2_b"])
    dense_h2 = relu(_dot_hi(dense1, params["d2d_w"])
                    + jnp.repeat(_dot_hi(sparse1, params["d2s_w"]), N_STK_PNT // 2, axis=0)
                    + params["d2_b"])
    dense2 = gmax(dense_h2, 2)

    sg0, sg1, sg2 = gmax(sparse0, N_STK), gmax(sparse1, N_STK), gmax(sparse2, N_STK)
    dg0 = gmax(dense0, N_POINT)
    dg1 = gmax(dense1, N_POINT // 2)
    dg2 = gmax(dense2, N_POINT // 4)

    h = relu(_dot_hi(sg0, params["f1w_sg0"]) + _dot_hi(sg1, params["f1w_sg1"])
             + _dot_hi(sg2, params["f1w_sg2"]) + _dot_hi(dg0, params["f1w_dg0"])
             + _dot_hi(dg1, params["f1w_dg1"]) + _dot_hi(dg2, params["f1w_dg2"])
             + params["f1_b"])
    h = relu(_dot_hi(h, params["f2_w"]) + params["f2_b"])
    logits = _dot_hi(h, params["f3_w"]) + params["f3_b"]
    return jax.nn.log_softmax(logits, axis=-1)


# =========================== main ==========================================
if __name__ == "__main__":
    key = jax.random.PRNGKey(0)
    k_in, k_par = jax.random.split(key)
    xy = jax.random.normal(k_in, (BS, 2, N_POINT), jnp.float32)
    params = init_params(k_par)

    out = sdgraph_cls_forward(xy, params)
    out = jax.block_until_ready(out)
    assert out.shape == (BS, N_CLASS)
    # log_softmax rows should sum (in prob space) to ~1
    assert bool(jnp.all(jnp.abs(jnp.sum(jnp.exp(out), axis=1) - 1.0) < 1e-3))
    # fused kernel must match the pure-JAX reference of the same forward
    ref = sdgraph_cls_reference(xy, params)
    assert bool(jnp.allclose(out, ref, atol=1e-2, rtol=1e-2))
    print("KERNEL_OK")
</pallas_src>

<mosaic_0001>
module attributes {stable_mosaic.version = 11 : i64} {
  func.func @_sdgraph_kernel(%arg0: memref<64x1xf32, #tpu.memory_space<vmem>>, %arg1: memref<64x1xf32, #tpu.memory_space<vmem>>, %arg2: memref<2x24xf32, #tpu.memory_space<vmem>>, %arg3: memref<1x24xf32, #tpu.memory_space<vmem>>, %arg4: memref<2x16xf32, #tpu.memory_space<vmem>>, %arg5: memref<1x16xf32, #tpu.memory_space<vmem>>, %arg6: memref<24x96xf32, #tpu.memory_space<vmem>>, %arg7: memref<16x96xf32, #tpu.memory_space<vmem>>, %arg8: memref<1x96xf32, #tpu.memory_space<vmem>>, %arg9: memref<16x64xf32, #tpu.memory_space<vmem>>, %arg10: memref<24x64xf32, #tpu.memory_space<vmem>>, %arg11: memref<1x64xf32, #tpu.memory_space<vmem>>, %arg12: memref<96x384xf32, #tpu.memory_space<vmem>>, %arg13: memref<64x384xf32, #tpu.memory_space<vmem>>, %arg14: memref<1x384xf32, #tpu.memory_space<vmem>>, %arg15: memref<64x256xf32, #tpu.memory_space<vmem>>, %arg16: memref<96x256xf32, #tpu.memory_space<vmem>>, %arg17: memref<1x256xf32, #tpu.memory_space<vmem>>, %arg18: memref<24x191xf32, #tpu.memory_space<vmem>>, %arg19: memref<96x191xf32, #tpu.memory_space<vmem>>, %arg20: memref<384x191xf32, #tpu.memory_space<vmem>>, %arg21: memref<16x191xf32, #tpu.memory_space<vmem>>, %arg22: memref<64x191xf32, #tpu.memory_space<vmem>>, %arg23: memref<256x191xf32, #tpu.memory_space<vmem>>, %arg24: memref<1x191xf32, #tpu.memory_space<vmem>>, %arg25: memref<191x43xf32, #tpu.memory_space<vmem>>, %arg26: memref<1x43xf32, #tpu.memory_space<vmem>>, %arg27: memref<43x10xf32, #tpu.memory_space<vmem>>, %arg28: memref<1x10xf32, #tpu.memory_space<vmem>>, %arg29: memref<2x10xf32, #tpu.memory_space<vmem>>, %arg30: memref<8x24xf32, #tpu.memory_space<vmem>>, %arg31: memref<8x16xf32, #tpu.memory_space<vmem>>, %arg32: memref<32x64xf32, #tpu.memory_space<vmem>>, %arg33: memref<8x64xf32, #tpu.memory_space<vmem>>, %arg34: memref<16x256xf32, #tpu.memory_space<vmem>>) attributes {dimension_semantics = [], scalar_prefetch = 0 : i64, scratch_operands = 5 : i64, tpu.core_type = #tpu.core_type<tc>} {
    %c0 = arith.constant 0 : index
    %c0_0 = arith.constant 0 : index
    %0 = vector.load %arg0[%c0, %c0_0] : memref<64x1xf32, #tpu.memory_space<vmem>>, vector<64x1xf32>
    %c0_1 = arith.constant 0 : index
    %c0_2 = arith.constant 0 : index
    %1 = vector.load %arg1[%c0_1, %c0_2] : memref<64x1xf32, #tpu.memory_space<vmem>>, vector<64x1xf32>
    %c0_3 = arith.constant 0 : index
    %c0_4 = arith.constant 0 : index
    %2 = vector.load %arg2[%c0_3, %c0_4] : memref<2x24xf32, #tpu.memory_space<vmem>>, vector<2x24xf32>
    %3 = vector.extract_strided_slice %2 {offsets = [0, 0], sizes = [1, 24], strides = [1, 1]} : vector<2x24xf32> to vector<1x24xf32>
    %4 = vector.broadcast %0 : vector<64x1xf32> to vector<64x24xf32>
    %5 = vector.broadcast %3 : vector<1x24xf32> to vector<64x24xf32>
    %6 = arith.mulf %4, %5 : vector<64x24xf32>
    %7 = vector.extract_strided_slice %2 {offsets = [1, 0], sizes = [1, 24], strides = [1, 1]} : vector<2x24xf32> to vector<1x24xf32>
    %8 = vector.broadcast %1 : vector<64x1xf32> to vector<64x24xf32>
    %9 = vector.broadcast %7 : vector<1x24xf32> to vector<64x24xf32>
    %10 = arith.mulf %8, %9 : vector<64x24xf32>
    %11 = arith.addf %6, %10 : vector<64x24xf32>
    %c0_5 = arith.constant 0 : index
    %c0_6 = arith.constant 0 : index
    %12 = vector.load %arg3[%c0_5, %c0_6] : memref<1x24xf32, #tpu.memory_space<vmem>>, vector<1x24xf32>
    %13 = vector.broadcast %12 : vector<1x24xf32> to vector<64x24xf32>
    %14 = arith.addf %11, %13 : vector<64x24xf32>
    %cst = arith.constant 0.000000e+00 : f32
    %15 = vector.broadcast %cst : f32 to vector<64x24xf32>
    %16 = arith.maximumf %14, %15 : vector<64x24xf32>
    %c0_7 = arith.constant 0 : index
    %c0_8 = arith.constant 0 : index
    %17 = vector.load %arg4[%c0_7, %c0_8] : memref<2x16xf32, #tpu.memory_space<vmem>>, vector<2x16xf32>
    %18 = vector.extract_strided_slice %17 {offsets = [0, 0], sizes = [1, 16], strides = [1, 1]} : vector<2x16xf32> to vector<1x16xf32>
    %19 = vector.broadcast %0 : vector<64x1xf32> to vector<64x16xf32>
    %20 = vector.broadcast %18 : vector<1x16xf32> to vector<64x16xf32>
    %21 = arith.mulf %19, %20 : vector<64x16xf32>
    %22 = vector.extract_strided_slice %17 {offsets = [1, 0], sizes = [1, 16], strides = [1, 1]} : vector<2x16xf32> to vector<1x16xf32>
    %23 = vector.broadcast %1 : vector<64x1xf32> to vector<64x16xf32>
    %24 = vector.broadcast %22 : vector<1x16xf32> to vector<64x16xf32>
    %25 = arith.mulf %23, %24 : vector<64x16xf32>
    %26 = arith.addf %21, %25 : vector<64x16xf32>
    %c0_9 = arith.constant 0 : index
    %c0_10 = arith.constant 0 : index
    %27 = vector.load %arg5[%c0_9, %c0_10] : memref<1x16xf32, #tpu.memory_space<vmem>>, vector<1x16xf32>
    %28 = vector.broadcast %27 : vector<1x16xf32> to vector<64x16xf32>
    %29 = arith.addf %26, %28 : vector<64x16xf32>
    %cst_11 = arith.constant 0.000000e+00 : f32
    %30 = vector.broadcast %cst_11 : f32 to vector<64x16xf32>
    %31 = arith.maximumf %29, %30 : vector<64x16xf32>
    %32 = vector.extract_strided_slice %16 {offsets = [0, 0], sizes = [8, 24], strides = [1, 1]} : vector<64x24xf32> to vector<8x24xf32>
    %33 = vector.extract_strided_slice %32 {offsets = [0, 0], sizes = [4, 24], strides = [1, 1]} : vector<8x24xf32> to vector<4x24xf32>
    %34 = vector.extract_strided_slice %32 {offsets = [4, 0], sizes = [4, 24], strides = [1, 1]} : vector<8x24xf32> to vector<4x24xf32>
    %35 = arith.maximumf %33, %34 : vector<4x24xf32>
    %36 = vector.extract_strided_slice %35 {offsets = [0, 0], sizes = [2, 24], strides = [1, 1]} : vector<4x24xf32> to vector<2x24xf32>
    %37 = vector.extract_strided_slice %35 {offsets = [2, 0], sizes = [2, 24], strides = [1, 1]} : vector<4x24xf32> to vector<2x24xf32>
    %38 = arith.maximumf %36, %37 : vector<2x24xf32>
    %39 = vector.extract_strided_slice %38 {offsets = [0, 0], sizes = [1, 24], strides = [1, 1]} : vector<2x24xf32> to vector<1x24xf32>
    %40 = vector.extract_strided_slice %38 {offsets = [1, 0], sizes = [1, 24], strides = [1, 1]} : vector<2x24xf32> to vector<1x24xf32>
    %41 = arith.maximumf %39, %40 : vector<1x24xf32>
    %c0_12 = arith.constant 0 : index
    %c0_13 = arith.constant 0 : index
    %42 = vector.load %arg30[%c0_12, %c0_13] : memref<8x24xf32, #tpu.memory_space<vmem>>, vector<1x24xf32>
    tpu.vector_store %arg30[%c0_12, %c0_13], %41 {strides = array<i32>} : memref<8x24xf32, #tpu.memory_space<vmem>>, vector<1x24xf32>,
    %43 = vector.extract_strided_slice %16 {offsets = [8, 0], sizes = [8, 24], strides = [1, 1]} : vector<64x24xf32> to vector<8x24xf32>
    %44 = vector.extract_strided_slice %43 {offsets = [0, 0], sizes = [4, 24], strides = [1, 1]} : vector<8x24xf32> to vector<4x24xf32>
    %45 = vector.extract_strided_slice %43 {offsets = [4, 0], sizes = [4, 24], strides = [1, 1]} : vector<8x24xf32> to vector<4x24xf32>
    %46 = arith.maximumf %44, %45 : vector<4x24xf32>
    %47 = vector.extract_strided_slice %46 {offsets = [0, 0], sizes = [2, 24], strides = [1, 1]} : vector<4x24xf32> to vector<2x24xf32>
    %48 = vector.extract_strided_slice %46 {offsets = [2, 0], sizes = [2, 24], strides = [1, 1]} : vector<4x24xf32> to vector<2x24xf32>
    %49 = arith.maximumf %47, %48 : vector<2x24xf32>
    %50 = vector.extract_strided_slice %49 {offsets = [0, 0], sizes = [1, 24], strides = [1, 1]} : vector<2x24xf32> to vector<1x24xf32>
    %51 = vector.extract_strided_slice %49 {offsets = [1, 0], sizes = [1, 24], strides = [1, 1]} : vector<2x24xf32> to vector<1x24xf32>
    %52 = arith.maximumf %50, %51 : vector<1x24xf32>
    %c1 = arith.constant 1 : index
    %c0_14 = arith.constant 0 : index
    %53 = vector.load %arg30[%c1, %c0_14] : memref<8x24xf32, #tpu.memory_space<vmem>>, vector<1x24xf32>
    tpu.vector_store %arg30[%c1, %c0_14], %52 {strides = array<i32>} : memref<8x24xf32, #tpu.memory_space<vmem>>, vector<1x24xf32>,
    %54 = vector.extract_strided_slice %16 {offsets = [16, 0], sizes = [8, 24], strides = [1, 1]} : vector<64x24xf32> to vector<8x24xf32>
    %55 = vector.extract_strided_slice %54 {offsets = [0, 0], sizes = [4, 24], strides = [1, 1]} : vector<8x24xf32> to vector<4x24xf32>
    %56 = vector.extract_strided_slice %54 {offsets = [4, 0], sizes = [4, 24], strides = [1, 1]} : vector<8x24xf32> to vector<4x24xf32>
    %57 = arith.maximumf %55, %56 : vector<4x24xf32>
    %58 = vector.extract_strided_slice %57 {offsets = [0, 0], sizes = [2, 24], strides = [1, 1]} : vector<4x24xf32> to vector<2x24xf32>
    %59 = vector.extract_strided_slice %57 {offsets = [2, 0], sizes = [2, 24], strides = [1, 1]} : vector<4x24xf32> to vector<2x24xf32>
    %60 = arith.maximumf %58, %59 : vector<2x24xf32>
    %61 = vector.extract_strided_slice %60 {offsets = [0, 0], sizes = [1, 24], strides = [1, 1]} : vector<2x24xf32> to vector<1x24xf32>
    %62 = vector.extract_strided_slice %60 {offsets = [1, 0], sizes = [1, 24], strides = [1, 1]} : vector<2x24xf32> to vector<1x24xf32>
    %63 = arith.maximumf %61, %62 : vector<1x24xf32>
    %c2 = arith.constant 2 : index
    %c0_15 = arith.constant 0 : index
    %64 = vector.load %arg30[%c2, %c0_15] : memref<8x24xf32, #tpu.memory_space<vmem>>, vector<1x24xf32>
    tpu.vector_store %arg30[%c2, %c0_15], %63 {strides = array<i32>} : memref<8x24xf32, #tpu.memory_space<vmem>>, vector<1x24xf32>,
    %65 = vector.extract_strided_slice %16 {offsets = [24, 0], sizes = [8, 24], strides = [1, 1]} : vector<64x24xf32> to vector<8x24xf32>
    %66 = vector.extract_strided_slice %65 {offsets = [0, 0], sizes = [4, 24], strides = [1, 1]} : vector<8x24xf32> to vector<4x24xf32>
    %67 = vector.extract_strided_slice %65 {offsets = [4, 0], sizes = [4, 24], strides = [1, 1]} : vector<8x24xf32> to vector<4x24xf32>
    %68 = arith.maximumf %66, %67 : vector<4x24xf32>
    %69 = vector.extract_strided_slice %68 {offsets = [0, 0], sizes = [2, 24], strides = [1, 1]} : vector<4x24xf32> to vector<2x24xf32>
    %70 = vector.extract_strided_slice %68 {offsets = [2, 0], sizes = [2, 24], strides = [1, 1]} : vector<4x24xf32> to vector<2x24xf32>
    %71 = arith.maximumf %69, %70 : vector<2x24xf32>
    %72 = vector.extract_strided_slice %71 {offsets = [0, 0], sizes = [1, 24], strides = [1, 1]} : vector<2x24xf32> to vector<1x24xf32>
    %73 = vector.extract_strided_slice %71 {offsets = [1, 0], sizes = [1, 24], strides = [1, 1]} : vector<2x24xf32> to vector<1x24xf32>
    %74 = arith.maximumf %72, %73 : vector<1x24xf32>
    %c3 = arith.constant 3 : index
    %c0_16 = arith.constant 0 : index
    %75 = vector.load %arg30[%c3, %c0_16] : memref<8x24xf32, #tpu.memory_space<vmem>>, vector<1x24xf32>
    tpu.vector_store %arg30[%c3, %c0_16], %74 {strides = array<i32>} : memref<8x24xf32, #tpu.memory_space<vmem>>, vector<1x24xf32>,
    %76 = vector.extract_strided_slice %16 {offsets = [32, 0], sizes = [8, 24], strides = [1, 1]} : vector<64x24xf32> to vector<8x24xf32>
    %77 = vector.extract_strided_slice %76 {offsets = [0, 0], sizes = [4, 24], strides = [1, 1]} : vector<8x24xf32> to vector<4x24xf32>
    %78 = vector.extract_strided_slice %76 {offsets = [4, 0], sizes = [4, 24], strides = [1, 1]} : vector<8x24xf32> to vector<4x24xf32>
    %79 = arith.maximumf %77, %78 : vector<4x24xf32>
    %80 = vector.extract_strided_slice %79 {offsets = [0, 0], sizes = [2, 24], strides = [1, 1]} : vector<4x24xf32> to vector<2x24xf32>
    %81 = vector.extract_strided_slice %79 {offsets = [2, 0], sizes = [2, 24], strides = [1, 1]} : vector<4x24xf32> to vector<2x24xf32>
    %82 = arith.maximumf %80, %81 : vector<2x24xf32>
    %83 = vector.extract_strided_slice %82 {offsets = [0, 0], sizes = [1, 24], strides = [1, 1]} : vector<2x24xf32> to vector<1x24xf32>
    %84 = vector.extract_strided_slice %82 {offsets = [1, 0], sizes = [1, 24], strides = [1, 1]} : vector<2x24xf32> to vector<1x24xf32>
    %85 = arith.maximumf %83, %84 : vector<1x24xf32>
    %c4 = arith.constant 4 : index
    %c0_17 = arith.constant 0 : index
    %86 = vector.load %arg30[%c4, %c0_17] : memref<8x24xf32, #tpu.memory_space<vmem>>, vector<1x24xf32>
    tpu.vector_store %arg30[%c4, %c0_17], %85 {strides = array<i32>} : memref<8x24xf32, #tpu.memory_space<vmem>>, vector<1x24xf32>,
    %87 = vector.extract_strided_slice %16 {offsets = [40, 0], sizes = [8, 24], strides = [1, 1]} : vector<64x24xf32> to vector<8x24xf32>
    %88 = vector.extract_strided_slice %87 {offsets = [0, 0], sizes = [4, 24], strides = [1, 1]} : vector<8x24xf32> to vector<4x24xf32>
    %89 = vector.extract_strided_slice %87 {offsets = [4, 0], sizes = [4, 24], strides = [1, 1]} : vector<8x24xf32> to vector<4x24xf32>
    %90 = arith.maximumf %88, %89 : vector<4x24xf32>
    %91 = vector.extract_strided_slice %90 {offsets = [0, 0], sizes = [2, 24], strides = [1, 1]} : vector<4x24xf32> to vector<2x24xf32>
    %92 = vector.extract_strided_slice %90 {offsets = [2, 0], sizes = [2, 24], strides = [1, 1]} : vector<4x24xf32> to vector<2x24xf32>
    %93 = arith.maximumf %91, %92 : vector<2x24xf32>
    %94 = vector.extract_strided_slice %93 {offsets = [0, 0], sizes = [1, 24], strides = [1, 1]} : vector<2x24xf32> to vector<1x24xf32>
    %95 = vector.extract_strided_slice %93 {offsets = [1, 0], sizes = [1, 24], strides = [1, 1]} : vector<2x24xf32> to vector<1x24xf32>
    %96 = arith.maximumf %94, %95 : vector<1x24xf32>
    %c5 = arith.constant 5 : index
    %c0_18 = arith.constant 0 : index
    %97 = vector.load %arg30[%c5, %c0_18] : memref<8x24xf32, #tpu.memory_space<vmem>>, vector<1x24xf32>
    tpu.vector_store %arg30[%c5, %c0_18], %96 {strides = array<i32>} : memref<8x24xf32, #tpu.memory_space<vmem>>, vector<1x24xf32>,
    %98 = vector.extract_strided_slice %16 {offsets = [48, 0], sizes = [8, 24], strides = [1, 1]} : vector<64x24xf32> to vector<8x24xf32>
    %99 = vector.extract_strided_slice %98 {offsets = [0, 0], sizes = [4, 24], strides = [1, 1]} : vector<8x24xf32> to vector<4x24xf32>
    %100 = vector.extract_strided_slice %98 {offsets = [4, 0], sizes = [4, 24], strides = [1, 1]} : vector<8x24xf32> to vector<4x24xf32>
    %101 = arith.maximumf %99, %100 : vector<4x24xf32>
    %102 = vector.extract_strided_slice %101 {offsets = [0, 0], sizes = [2, 24], strides = [1, 1]} : vector<4x24xf32> to vector<2x24xf32>
    %103 = vector.extract_strided_slice %101 {offsets = [2, 0], sizes = [2, 24], strides = [1, 1]} : vector<4x24xf32> to vector<2x24xf32>
    %104 = arith.maximumf %102, %103 : vector<2x24xf32>
    %105 = vector.extract_strided_slice %104 {offsets = [0, 0], sizes = [1, 24], strides = [1, 1]} : vector<2x24xf32> to vector<1x24xf32>
    %106 = vector.extract_strided_slice %104 {offsets = [1, 0], sizes = [1, 24], strides = [1, 1]} : vector<2x24xf32> to vector<1x24xf32>
    %107 = arith.maximumf %105, %106 : vector<1x24xf32>
    %c6 = arith.constant 6 : index
    %c0_19 = arith.constant 0 : index
    %108 = vector.load %arg30[%c6, %c0_19] : memref<8x24xf32, #tpu.memory_space<vmem>>, vector<1x24xf32>
    tpu.vector_store %arg30[%c6, %c0_19], %107 {strides = array<i32>} : memref<8x24xf32, #tpu.memory_space<vmem>>, vector<1x24xf32>,
    %109 = vector.extract_strided_slice %16 {offsets = [56, 0], sizes = [8, 24], strides = [1, 1]} : vector<64x24xf32> to vector<8x24xf32>
    %110 = vector.extract_strided_slice %109 {offsets = [0, 0], sizes = [4, 24], strides = [1, 1]} : vector<8x24xf32> to vector<4x24xf32>
    %111 = vector.extract_strided_slice %109 {offsets = [4, 0], sizes = [4, 24], strides = [1, 1]} : vector<8x24xf32> to vector<4x24xf32>
    %112 = arith.maximumf %110, %111 : vector<4x24xf32>
    %113 = vector.extract_strided_slice %112 {offsets = [0, 0], sizes = [2, 24], strides = [1, 1]} : vector<4x24xf32> to vector<2x24xf32>
    %114 = vector.extract_strided_slice %112 {offsets = [2, 0], sizes = [2, 24], strides = [1, 1]} : vector<4x24xf32> to vector<2x24xf32>
    %115 = arith.maximumf %113, %114 : vector<2x24xf32>
    %116 = vector.extract_strided_slice %115 {offsets = [0, 0], sizes = [1, 24], strides = [1, 1]} : vector<2x24xf32> to vector<1x24xf32>
    %117 = vector.extract_strided_slice %115 {offsets = [1, 0], sizes = [1, 24], strides = [1, 1]} : vector<2x24xf32> to vector<1x24xf32>
    %118 = arith.maximumf %116, %117 : vector<1x24xf32>
    %c7 = arith.constant 7 : index
    %c0_20 = arith.constant 0 : index
    %119 = vector.load %arg30[%c7, %c0_20] : memref<8x24xf32, #tpu.memory_space<vmem>>, vector<1x24xf32>
    tpu.vector_store %arg30[%c7, %c0_20], %118 {strides = array<i32>} : memref<8x24xf32, #tpu.memory_space<vmem>>, vector<1x24xf32>,
    %120 = vector.extract_strided_slice %31 {offsets = [0, 0], sizes = [8, 16], strides = [1, 1]} : vector<64x16xf32> to vector<8x16xf32>
    %121 = vector.extract_strided_slice %120 {offsets = [0, 0], sizes = [4, 16], strides = [1, 1]} : vector<8x16xf32> to vector<4x16xf32>
    %122 = vector.extract_strided_slice %120 {offsets = [4, 0], sizes = [4, 16], strides = [1, 1]} : vector<8x16xf32> to vector<4x16xf32>
    %123 = arith.maximumf %121, %122 : vector<4x16xf32>
    %124 = vector.extract_strided_slice %123 {offsets = [0, 0], sizes = [2, 16], strides = [1, 1]} : vector<4x16xf32> to vector<2x16xf32>
    %125 = vector.extract_strided_slice %123 {offsets = [2, 0], sizes = [2, 16], strides = [1, 1]} : vector<4x16xf32> to vector<2x16xf32>
    %126 = arith.maximumf %124, %125 : vector<2x16xf32>
    %127 = vector.extract_strided_slice %126 {offsets = [0, 0], sizes = [1, 16], strides = [1, 1]} : vector<2x16xf32> to vector<1x16xf32>
    %128 = vector.extract_strided_slice %126 {offsets = [1, 0], sizes = [1, 16], strides = [1, 1]} : vector<2x16xf32> to vector<1x16xf32>
    %129 = arith.maximumf %127, %128 : vector<1x16xf32>
    %c0_21 = arith.constant 0 : index
    %c0_22 = arith.constant 0 : index
    %130 = vector.load %arg31[%c0_21, %c0_22] : memref<8x16xf32, #tpu.memory_space<vmem>>, vector<1x16xf32>
    tpu.vector_store %arg31[%c0_21, %c0_22], %129 {strides = array<i32>} : memref<8x16xf32, #tpu.memory_space<vmem>>, vector<1x16xf32>,
    %131 = vector.extract_strided_slice %31 {offsets = [8, 0], sizes = [8, 16], strides = [1, 1]} : vector<64x16xf32> to vector<8x16xf32>
    %132 = vector.extract_strided_slice %131 {offsets = [0, 0], sizes = [4, 16], strides = [1, 1]} : vector<8x16xf32> to vector<4x16xf32>
    %133 = vector.extract_strided_slice %131 {offsets = [4, 0], sizes = [4, 16], strides = [1, 1]} : vector<8x16xf32> to vector<4x16xf32>
    %134 = arith.maximumf %132, %133 : vector<4x16xf32>
    %135 = vector.extract_strided_slice %134 {offsets = [0, 0], sizes = [2, 16], strides = [1, 1]} : vector<4x16xf32> to vector<2x16xf32>
    %136 = vector.extract_strided_slice %134 {offsets = [2, 0], sizes = [2, 16], strides = [1, 1]} : vector<4x16xf32> to vector<2x16xf32>
    %137 = arith.maximumf %135, %136 : vector<2x16xf32>
    %138 = vector.extract_strided_slice %137 {offsets = [0, 0], sizes = [1, 16], strides = [1, 1]} : vector<2x16xf32> to vector<1x16xf32>
    %139 = vector.extract_strided_slice %137 {offsets = [1, 0], sizes = [1, 16], strides = [1, 1]} : vector<2x16xf32> to vector<1x16xf32>
    %140 = arith.maximumf %138, %139 : vector<1x16xf32>
    %c1_23 = arith.constant 1 : index
    %c0_24 = arith.constant 0 : index
    %141 = vector.load %arg31[%c1_23, %c0_24] : memref<8x16xf32, #tpu.memory_space<vmem>>, vector<1x16xf32>
    tpu.vector_store %arg31[%c1_23, %c0_24], %140 {strides = array<i32>} : memref<8x16xf32, #tpu.memory_space<vmem>>, vector<1x16xf32>,
    %142 = vector.extract_strided_slice %31 {offsets = [16, 0], sizes = [8, 16], strides = [1, 1]} : vector<64x16xf32> to vector<8x16xf32>
    %143 = vector.extract_strided_slice %142 {offsets = [0, 0], sizes = [4, 16], strides = [1, 1]} : vector<8x16xf32> to vector<4x16xf32>
    %144 = vector.extract_strided_slice %142 {offsets = [4, 0], sizes = [4, 16], strides = [1, 1]} : vector<8x16xf32> to vector<4x16xf32>
    %145 = arith.maximumf %143, %144 : vector<4x16xf32>
    %146 = vector.extract_strided_slice %145 {offsets = [0, 0], sizes = [2, 16], strides = [1, 1]} : vector<4x16xf32> to vector<2x16xf32>
    %147 = vector.extract_strided_slice %145 {offsets = [2, 0], sizes = [2, 16], strides = [1, 1]} : vector<4x16xf32> to vector<2x16xf32>
    %148 = arith.maximumf %146, %147 : vector<2x16xf32>
    %149 = vector.extract_strided_slice %148 {offsets = [0, 0], sizes = [1, 16], strides = [1, 1]} : vector<2x16xf32> to vector<1x16xf32>
    %150 = vector.extract_strided_slice %148 {offsets = [1, 0], sizes = [1, 16], strides = [1, 1]} : vector<2x16xf32> to vector<1x16xf32>
    %151 = arith.maximumf %149, %150 : vector<1x16xf32>
    %c2_25 = arith.constant 2 : index
    %c0_26 = arith.constant 0 : index
    %152 = vector.load %arg31[%c2_25, %c0_26] : memref<8x16xf32, #tpu.memory_space<vmem>>, vector<1x16xf32>
    tpu.vector_store %arg31[%c2_25, %c0_26], %151 {strides = array<i32>} : memref<8x16xf32, #tpu.memory_space<vmem>>, vector<1x16xf32>,
    %153 = vector.extract_strided_slice %31 {offsets = [24, 0], sizes = [8, 16], strides = [1, 1]} : vector<64x16xf32> to vector<8x16xf32>
    %154 = vector.extract_strided_slice %153 {offsets = [0, 0], sizes = [4, 16], strides = [1, 1]} : vector<8x16xf32> to vector<4x16xf32>
    %155 = vector.extract_strided_slice %153 {offsets = [4, 0], sizes = [4, 16], strides = [1, 1]} : vector<8x16xf32> to vector<4x16xf32>
    %156 = arith.maximumf %154, %155 : vector<4x16xf32>
    %157 = vector.extract_strided_slice %156 {offsets = [0, 0], sizes = [2, 16], strides = [1, 1]} : vector<4x16xf32> to vector<2x16xf32>
    %158 = vector.extract_strided_slice %156 {offsets = [2, 0], sizes = [2, 16], strides = [1, 1]} : vector<4x16xf32> to vector<2x16xf32>
    %159 = arith.maximumf %157, %158 : vector<2x16xf32>
    %160 = vector.extract_strided_slice %159 {offsets = [0, 0], sizes = [1, 16], strides = [1, 1]} : vector<2x16xf32> to vector<1x16xf32>
    %161 = vector.extract_strided_slice %159 {offsets = [1, 0], sizes = [1, 16], strides = [1, 1]} : vector<2x16xf32> to vector<1x16xf32>
    %162 = arith.maximumf %160, %161 : vector<1x16xf32>
    %c3_27 = arith.constant 3 : index
    %c0_28 = arith.constant 0 : index
    %163 = vector.load %arg31[%c3_27, %c0_28] : memref<8x16xf32, #tpu.memory_space<vmem>>, vector<1x16xf32>
    tpu.vector_store %arg31[%c3_27, %c0_28], %162 {strides = array<i32>} : memref<8x16xf32, #tpu.memory_space<vmem>>, vector<1x16xf32>,
    %164 = vector.extract_strided_slice %31 {offsets = [32, 0], sizes = [8, 16], strides = [1, 1]} : vector<64x16xf32> to vector<8x16xf32>
    %165 = vector.extract_strided_slice %164 {offsets = [0, 0], sizes = [4, 16], strides = [1, 1]} : vector<8x16xf32> to vector<4x16xf32>
    %166 = vector.extract_strided_slice %164 {offsets = [4, 0], sizes = [4, 16], strides = [1, 1]} : vector<8x16xf32> to vector<4x16xf32>
    %167 = arith.maximumf %165, %166 : vector<4x16xf32>
    %168 = vector.extract_strided_slice %167 {offsets = [0, 0], sizes = [2, 16], strides = [1, 1]} : vector<4x16xf32> to vector<2x16xf32>
    %169 = vector.extract_strided_slice %167 {offsets = [2, 0], sizes = [2, 16], strides = [1, 1]} : vector<4x16xf32> to vector<2x16xf32>
    %170 = arith.maximumf %168, %169 : vector<2x16xf32>
    %171 = vector.extract_strided_slice %170 {offsets = [0, 0], sizes = [1, 16], strides = [1, 1]} : vector<2x16xf32> to vector<1x16xf32>
    %172 = vector.extract_strided_slice %170 {offsets = [1, 0], sizes = [1, 16], strides = [1, 1]} : vector<2x16xf32> to vector<1x16xf32>
    %173 = arith.maximumf %171, %172 : vector<1x16xf32>
    %c4_29 = arith.constant 4 : index
    %c0_30 = arith.constant 0 : index
    %174 = vector.load %arg31[%c4_29, %c0_30] : memref<8x16xf32, #tpu.memory_space<vmem>>, vector<1x16xf32>
    tpu.vector_store %arg31[%c4_29, %c0_30], %173 {strides = array<i32>} : memref<8x16xf32, #tpu.memory_space<vmem>>, vector<1x16xf32>,
    %175 = vector.extract_strided_slice %31 {offsets = [40, 0], sizes = [8, 16], strides = [1, 1]} : vector<64x16xf32> to vector<8x16xf32>
    %176 = vector.extract_strided_slice %175 {offsets = [0, 0], sizes = [4, 16], strides = [1, 1]} : vector<8x16xf32> to vector<4x16xf32>
    %177 = vector.extract_strided_slice %175 {offsets = [4, 0], sizes = [4, 16], strides = [1, 1]} : vector<8x16xf32> to vector<4x16xf32>
    %178 = arith.maximumf %176, %177 : vector<4x16xf32>
    %179 = vector.extract_strided_slice %178 {offsets = [0, 0], sizes = [2, 16], strides = [1, 1]} : vector<4x16xf32> to vector<2x16xf32>
    %180 = vector.extract_strided_slice %178 {offsets = [2, 0], sizes = [2, 16], strides = [1, 1]} : vector<4x16xf32> to vector<2x16xf32>
    %181 = arith.maximumf %179, %180 : vector<2x16xf32>
    %182 = vector.extract_strided_slice %181 {offsets = [0, 0], sizes = [1, 16], strides = [1, 1]} : vector<2x16xf32> to vector<1x16xf32>
    %183 = vector.extract_strided_slice %181 {offsets = [1, 0], sizes = [1, 16], strides = [1, 1]} : vector<2x16xf32> to vector<1x16xf32>
    %184 = arith.maximumf %182, %183 : vector<1x16xf32>
    %c5_31 = arith.constant 5 : index
    %c0_32 = arith.constant 0 : index
    %185 = vector.load %arg31[%c5_31, %c0_32] : memref<8x16xf32, #tpu.memory_space<vmem>>, vector<1x16xf32>
    tpu.vector_store %arg31[%c5_31, %c0_32], %184 {strides = array<i32>} : memref<8x16xf32, #tpu.memory_space<vmem>>, vector<1x16xf32>,
    %186 = vector.extract_strided_slice %31 {offsets = [48, 0], sizes = [8, 16], strides = [1, 1]} : vector<64x16xf32> to vector<8x16xf32>
    %187 = vector.extract_strided_slice %186 {offsets = [0, 0], sizes = [4, 16], strides = [1, 1]} : vector<8x16xf32> to vector<4x16xf32>
    %188 = vector.extract_strided_slice %186 {offsets = [4, 0], sizes = [4, 16], strides = [1, 1]} : vector<8x16xf32> to vector<4x16xf32>
    %189 = arith.maximumf %187, %188 : vector<4x16xf32>
    %190 = vector.extract_strided_slice %189 {offsets = [0, 0], sizes = [2, 16], strides = [1, 1]} : vector<4x16xf32> to vector<2x16xf32>
    %191 = vector.extract_strided_slice %189 {offsets = [2, 0], sizes = [2, 16], strides = [1, 1]} : vector<4x16xf32> to vector<2x16xf32>
    %192 = arith.maximumf %190, %191 : vector<2x16xf32>
    %193 = vector.extract_strided_slice %192 {offsets = [0, 0], sizes = [1, 16], strides = [1, 1]} : vector<2x16xf32> to vector<1x16xf32>
    %194 = vector.extract_strided_slice %192 {offsets = [1, 0], sizes = [1, 16], strides = [1, 1]} : vector<2x16xf32> to vector<1x16xf32>
    %195 = arith.maximumf %193, %194 : vector<1x16xf32>
    %c6_33 = arith.constant 6 : index
    %c0_34 = arith.constant 0 : index
    %196 = vector.load %arg31[%c6_33, %c0_34] : memref<8x16xf32, #tpu.memory_space<vmem>>, vector<1x16xf32>
    tpu.vector_store %arg31[%c6_33, %c0_34], %195 {strides = array<i32>} : memref<8x16xf32, #tpu.memory_space<vmem>>, vector<1x16xf32>,
    %197 = vector.extract_strided_slice %31 {offsets = [56, 0], sizes = [8, 16], strides = [1, 1]} : vector<64x16xf32> to vector<8x16xf32>
    %198 = vector.extract_strided_slice %197 {offsets = [0, 0], sizes = [4, 16], strides = [1, 1]} : vector<8x16xf32> to vector<4x16xf32>
    %199 = vector.extract_strided_slice %197 {offsets = [4, 0], sizes = [4, 16], strides = [1, 1]} : vector<8x16xf32> to vector<4x16xf32>
    %200 = arith.maximumf %198, %199 : vector<4x16xf32>
    %201 = vector.extract_strided_slice %200 {offsets = [0, 0], sizes = [2, 16], strides = [1, 1]} : vector<4x16xf32> to vector<2x16xf32>
    %202 = vector.extract_strided_slice %200 {offsets = [2, 0], sizes = [2, 16], strides = [1, 1]} : vector<4x16xf32> to vector<2x16xf32>
    %203 = arith.maximumf %201, %202 : vector<2x16xf32>
    %204 = vector.extract_strided_slice %203 {offsets = [0, 0], sizes = [1, 16], strides = [1, 1]} : vector<2x16xf32> to vector<1x16xf32>
    %205 = vector.extract_strided_slice %203 {offsets = [1, 0], sizes = [1, 16], strides = [1, 1]} : vector<2x16xf32> to vector<1x16xf32>
    %206 = arith.maximumf %204, %205 : vector<1x16xf32>
    %c7_35 = arith.constant 7 : index
    %c0_36 = arith.constant 0 : index
    %207 = vector.load %arg31[%c7_35, %c0_36] : memref<8x16xf32, #tpu.memory_space<vmem>>, vector<1x16xf32>
    tpu.vector_store %arg31[%c7_35, %c0_36], %206 {strides = array<i32>} : memref<8x16xf32, #tpu.memory_space<vmem>>, vector<1x16xf32>,
    %c0_37 = arith.constant 0 : index
    %c0_38 = arith.constant 0 : index
    %208 = vector.load %arg30[%c0_37, %c0_38] : memref<8x24xf32, #tpu.memory_space<vmem>>, vector<8x24xf32>
    %c0_39 = arith.constant 0 : index
    %c0_40 = arith.constant 0 : index
    %209 = vector.load %arg31[%c0_39, %c0_40] : memref<8x16xf32, #tpu.memory_space<vmem>>, vector<8x16xf32>
    %c0_41 = arith.constant 0 : index
    %c0_42 = arith.constant 0 : index
    %210 = vector.load %arg6[%c0_41, %c0_42] : memref<24x96xf32, #tpu.memory_space<vmem>>, vector<24x96xf32>
    %cst_43 = arith.constant dense<0.000000e+00> : vector<8x96xf32>
    %211 = tpu.matmul %208, %210, %cst_43 {dimension_numbers = #tpu.dot_dimension_numbers<[1], [0], [0], [1], [0, 0, 1, 1], [], []>} : vector<8x24xf32>, vector<24x96xf32>, vector<8x96xf32> -> vector<8x96xf32>
    %c0_44 = arith.constant 0 : index
    %c0_45 = arith.constant 0 : index
    %212 = vector.load %arg7[%c0_44, %c0_45] : memref<16x96xf32, #tpu.memory_space<vmem>>, vector<16x96xf32>
    %cst_46 = arith.constant dense<0.000000e+00> : vector<8x96xf32>
    %213 = tpu.matmul %209, %212, %cst_46 {dimension_numbers = #tpu.dot_dimension_numbers<[1], [0], [0], [1], [0, 0, 1, 1], [], []>} : vector<8x16xf32>, vector<16x96xf32>, vector<8x96xf32> -> vector<8x96xf32>
    %214 = arith.addf %211, %213 : vector<8x96xf32>
    %c0_47 = arith.constant 0 : index
    %c0_48 = arith.constant 0 : index
    %215 = vector.load %arg8[%c0_47, %c0_48] : memref<1x96xf32, #tpu.memory_space<vmem>>, vector<1x96xf32>
    %216 = vector.broadcast %215 : vector<1x96xf32> to vector<8x96xf32>
    %217 = arith.addf %214, %216 : vector<8x96xf32>
    %cst_49 = arith.constant 0.000000e+00 : f32
    %218 = vector.broadcast %cst_49 : f32 to vector<8x96xf32>
    %219 = arith.maximumf %217, %218 : vector<8x96xf32>
    %c0_50 = arith.constant 0 : index
    %c0_51 = arith.constant 0 : index
    %220 = vector.load %arg9[%c0_50, %c0_51] : memref<16x64xf32, #tpu.memory_space<vmem>>, vector<16x64xf32>
    %cst_52 = arith.constant dense<0.000000e+00> : vector<64x64xf32>
    %221 = tpu.matmul %31, %220, %cst_52 {dimension_numbers = #tpu.dot_dimension_numbers<[1], [0], [0], [1], [0, 0, 1, 1], [], []>} : vector<64x16xf32>, vector<16x64xf32>, vector<64x64xf32> -> vector<64x64xf32>
    %c0_53 = arith.constant 0 : index
    %c0_54 = arith.constant 0 : index
    %222 = vector.load %arg10[%c0_53, %c0_54] : memref<24x64xf32, #tpu.memory_space<vmem>>, vector<24x64xf32>
    %cst_55 = arith.constant dense<0.000000e+00> : vector<8x64xf32>
    %223 = tpu.matmul %208, %222, %cst_55 {dimension_numbers = #tpu.dot_dimension_numbers<[1], [0], [0], [1], [0, 0, 1, 1], [], []>} : vector<8x24xf32>, vector<24x64xf32>, vector<8x64xf32> -> vector<8x64xf32>
    %c0_56 = arith.constant 0 : index
    %c0_57 = arith.constant 0 : index
    %224 = vector.load %arg11[%c0_56, %c0_57] : memref<1x64xf32, #tpu.memory_space<vmem>>, vector<1x64xf32>
    %225 = vector.extract_strided_slice %221 {offsets = [0, 0], sizes = [8, 64], strides = [1, 1]} : vector<64x64xf32> to vector<8x64xf32>
    %226 = vector.extract_strided_slice %223 {offsets = [0, 0], sizes = [1, 64], strides = [1, 1]} : vector<8x64xf32> to vector<1x64xf32>
    %227 = vector.broadcast %226 : vector<1x64xf32> to vector<8x64xf32>
    %228 = arith.addf %225, %227 : vector<8x64xf32>
    %229 = vector.broadcast %224 : vector<1x64xf32> to vector<8x64xf32>
    %230 = arith.addf %228, %229 : vector<8x64xf32>
    %cst_58 = arith.constant 0.000000e+00 : f32
    %231 = vector.broadcast %cst_58 : f32 to vector<8x64xf32>
    %232 = arith.maximumf %230, %231 : vector<8x64xf32>
    %233 = vector.extract_strided_slice %232 {offsets = [0, 0], sizes = [1, 64], strides = [1, 1]} : vector<8x64xf32> to vector<1x64xf32>
    %234 = vector.extract_strided_slice %232 {offsets = [1, 0], sizes = [1, 64], strides = [1, 1]} : vector<8x64xf32> to vector<1x64xf32>
    %235 = arith.maximumf %233, %234 : vector<1x64xf32>
    %c0_59 = arith.constant 0 : index
    %c0_60 = arith.constant 0 : index
    %236 = vector.load %arg32[%c0_59, %c0_60] : memref<32x64xf32, #tpu.memory_space<vmem>>, vector<1x64xf32>
    tpu.vector_store %arg32[%c0_59, %c0_60], %235 {strides = array<i32>} : memref<32x64xf32, #tpu.memory_space<vmem>>, vector<1x64xf32>,
    %237 = vector.extract_strided_slice %232 {offsets = [2, 0], sizes = [1, 64], strides = [1, 1]} : vector<8x64xf32> to vector<1x64xf32>
    %238 = vector.extract_strided_slice %232 {offsets = [3, 0], sizes = [1, 64], strides = [1, 1]} : vector<8x64xf32> to vector<1x64xf32>
    %239 = arith.maximumf %237, %238 : vector<1x64xf32>
    %c1_61 = arith.constant 1 : index
    %c0_62 = arith.constant 0 : index
    %240 = vector.load %arg32[%c1_61, %c0_62] : memref<32x64xf32, #tpu.memory_space<vmem>>, vector<1x64xf32>
    tpu.vector_store %arg32[%c1_61, %c0_62], %239 {strides = array<i32>} : memref<32x64xf32, #tpu.memory_space<vmem>>, vector<1x64xf32>,
    %241 = vector.extract_strided_slice %232 {offsets = [4, 0], sizes = [1, 64], strides = [1, 1]} : vector<8x64xf32> to vector<1x64xf32>
    %242 = vector.extract_strided_slice %232 {offsets = [5, 0], sizes = [1, 64], strides = [1, 1]} : vector<8x64xf32> to vector<1x64xf32>
    %243 = arith.maximumf %241, %242 : vector<1x64xf32>
    %c2_63 = arith.constant 2 : index
    %c0_64 = arith.constant 0 : index
    %244 = vector.load %arg32[%c2_63, %c0_64] : memref<32x64xf32, #tpu.memory_space<vmem>>, vector<1x64xf32>
    tpu.vector_store %arg32[%c2_63, %c0_64], %243 {strides = array<i32>} : memref<32x64xf32, #tpu.memory_space<vmem>>, vector<1x64xf32>,
    %245 = vector.extract_strided_slice %232 {offsets = [6, 0], sizes = [1, 64], strides = [1, 1]} : vector<8x64xf32> to vector<1x64xf32>
    %246 = vector.extract_strided_slice %232 {offsets = [7, 0], sizes = [1, 64], strides = [1, 1]} : vector<8x64xf32> to vector<1x64xf32>
    %247 = arith.maximumf %245, %246 : vector<1x64xf32>
    %c3_65 = arith.constant 3 : index
    %c0_66 = arith.constant 0 : index
    %248 = vector.load %arg32[%c3_65, %c0_66] : memref<32x64xf32, #tpu.memory_space<vmem>>, vector<1x64xf32>
    tpu.vector_store %arg32[%c3_65, %c0_66], %247 {strides = array<i32>} : memref<32x64xf32, #tpu.memory_space<vmem>>, vector<1x64xf32>,
    %249 = vector.extract_strided_slice %221 {offsets = [8, 0], sizes = [8, 64], strides = [1, 1]} : vector<64x64xf32> to vector<8x64xf32>
    %250 = vector.extract_strided_slice %223 {offsets = [1, 0], sizes = [1, 64], strides = [1, 1]} : vector<8x64xf32> to vector<1x64xf32>
    %251 = vector.broadcast %250 : vector<1x64xf32> to vector<8x64xf32>
    %252 = arith.addf %249, %251 : vector<8x64xf32>
    %253 = vector.broadcast %224 : vector<1x64xf32> to vector<8x64xf32>
    %254 = arith.addf %252, %253 : vector<8x64xf32>
    %cst_67 = arith.constant 0.000000e+00 : f32
    %255 = vector.broadcast %cst_67 : f32 to vector<8x64xf32>
    %256 = arith.maximumf %254, %255 : vector<8x64xf32>
    %257 = vector.extract_strided_slice %256 {offsets = [0, 0], sizes = [1, 64], strides = [1, 1]} : vector<8x64xf32> to vector<1x64xf32>
    %258 = vector.extract_strided_slice %256 {offsets = [1, 0], sizes = [1, 64], strides = [1, 1]} : vector<8x64xf32> to vector<1x64xf32>
    %259 = arith.maximumf %257, %258 : vector<1x64xf32>
    %c4_68 = arith.constant 4 : index
    %c0_69 = arith.constant 0 : index
    %260 = vector.load %arg32[%c4_68, %c0_69] : memref<32x64xf32, #tpu.memory_space<vmem>>, vector<1x64xf32>
    tpu.vector_store %arg32[%c4_68, %c0_69], %259 {strides = array<i32>} : memref<32x64xf32, #tpu.memory_space<vmem>>, vector<1x64xf32>,
    %261 = vector.extract_strided_slice %256 {offsets = [2, 0], sizes = [1, 64], strides = [1, 1]} : vector<8x64xf32> to vector<1x64xf32>
    %262 = vector.extract_strided_slice %256 {offsets = [3, 0], sizes = [1, 64], strides = [1, 1]} : vector<8x64xf32> to vector<1x64xf32>
    %263 = arith.maximumf %261, %262 : vector<1x64xf32>
    %c5_70 = arith.constant 5 : index
    %c0_71 = arith.constant 0 : index
    %264 = vector.load %arg32[%c5_70, %c0_71] : memref<32x64xf32, #tpu.memory_space<vmem>>, vector<1x64xf32>
    tpu.vector_store %arg32[%c5_70, %c0_71], %263 {strides = array<i32>} : memref<32x64xf32, #tpu.memory_space<vmem>>, vector<1x64xf32>,
    %265 = vector.extract_strided_slice %256 {offsets = [4, 0], sizes = [1, 64], strides = [1, 1]} : vector<8x64xf32> to vector<1x64xf32>
    %266 = vector.extract_strided_slice %256 {offsets = [5, 0], sizes = [1, 64], strides = [1, 1]} : vector<8x64xf32> to vector<1x64xf32>
    %267 = arith.maximumf %265, %266 : vector<1x64xf32>
    %c6_72 = arith.constant 6 : index
    %c0_73 = arith.constant 0 : index
    %268 = vector.load %arg32[%c6_72, %c0_73] : memref<32x64xf32, #tpu.memory_space<vmem>>, vector<1x64xf32>
    tpu.vector_store %arg32[%c6_72, %c0_73], %267 {strides = array<i32>} : memref<32x64xf32, #tpu.memory_space<vmem>>, vector<1x64xf32>,
    %269 = vector.extract_strided_slice %256 {offsets = [6, 0], sizes = [1, 64], strides = [1, 1]} : vector<8x64xf32> to vector<1x64xf32>
    %270 = vector.extract_strided_slice %256 {offsets = [7, 0], sizes = [1, 64], strides = [1, 1]} : vector<8x64xf32> to vector<1x64xf32>
    %271 = arith.maximumf %269, %270 : vector<1x64xf32>
    %c7_74 = arith.constant 7 : index
    %c0_75 = arith.constant 0 : index
    %272 = vector.load %arg32[%c7_74, %c0_75] : memref<32x64xf32, #tpu.memory_space<vmem>>, vector<1x64xf32>
    tpu.vector_store %arg32[%c7_74, %c0_75], %271 {strides = array<i32>} : memref<32x64xf32, #tpu.memory_space<vmem>>, vector<1x64xf32>,
    %273 = vector.extract_strided_slice %221 {offsets = [16, 0], sizes = [8, 64], strides = [1, 1]} : vector<64x64xf32> to vector<8x64xf32>
    %274 = vector.extract_strided_slice %223 {offsets = [2, 0], sizes = [1, 64], strides = [1, 1]} : vector<8x64xf32> to vector<1x64xf32>
    %275 = vector.broadcast %274 : vector<1x64xf32> to vector<8x64xf32>
    %276 = arith.addf %273, %275 : vector<8x64xf32>
    %277 = vector.broadcast %224 : vector<1x64xf32> to vector<8x64xf32>
    %278 = arith.addf %276, %277 : vector<8x64xf32>
    %cst_76 = arith.constant 0.000000e+00 : f32
    %279 = vector.broadcast %cst_76 : f32 to vector<8x64xf32>
    %280 = arith.maximumf %278, %279 : vector<8x64xf32>
    %281 = vector.extract_strided_slice %280 {offsets = [0, 0], sizes = [1, 64], strides = [1, 1]} : vector<8x64xf32> to vector<1x64xf32>
    %282 = vector.extract_strided_slice %280 {offsets = [1, 0], sizes = [1, 64], strides = [1, 1]} : vector<8x64xf32> to vector<1x64xf32>
    %283 = arith.maximumf %281, %282 : vector<1x64xf32>
    %c8 = arith.constant 8 : index
    %c0_77 = arith.constant 0 : index
    %284 = vector.load %arg32[%c8, %c0_77] : memref<32x64xf32, #tpu.memory_space<vmem>>, vector<1x64xf32>
    tpu.vector_store %arg32[%c8, %c0_77], %283 {strides = array<i32>} : memref<32x64xf32, #tpu.memory_space<vmem>>, vector<1x64xf32>,
    %285 = vector.extract_strided_slice %280 {offsets = [2, 0], sizes = [1, 64], strides = [1, 1]} : vector<8x64xf32> to vector<1x64xf32>
    %286 = vector.extract_strided_slice %280 {offsets = [3, 0], sizes = [1, 64], strides = [1, 1]} : vector<8x64xf32> to vector<1x64xf32>
    %287 = arith.maximumf %285, %286 : vector<1x64xf32>
    %c9 = arith.constant 9 : index
    %c0_78 = arith.constant 0 : index
    %288 = vector.load %arg32[%c9, %c0_78] : memref<32x64xf32, #tpu.memory_space<vmem>>, vector<1x64xf32>
    tpu.vector_store %arg32[%c9, %c0_78], %287 {strides = array<i32>} : memref<32x64xf32, #tpu.memory_space<vmem>>, vector<1x64xf32>,
    %289 = vector.extract_strided_slice %280 {offsets = [4, 0], sizes = [1, 64], strides = [1, 1]} : vector<8x64xf32> to vector<1x64xf32>
    %290 = vector.extract_strided_slice %280 {offsets = [5, 0], sizes = [1, 64], strides = [1, 1]} : vector<8x64xf32> to vector<1x64xf32>
    %291 = arith.maximumf %289, %290 : vector<1x64xf32>
    %c10 = arith.constant 10 : index
    %c0_79 = arith.constant 0 : index
    %292 = vector.load %arg32[%c10, %c0_79] : memref<32x64xf32, #tpu.memory_space<vmem>>, vector<1x64xf32>
    tpu.vector_store %arg32[%c10, %c0_79], %291 {strides = array<i32>} : memref<32x64xf32, #tpu.memory_space<vmem>>, vector<1x64xf32>,
    %293 = vector.extract_strided_slice %280 {offsets = [6, 0], sizes = [1, 64], strides = [1, 1]} : vector<8x64xf32> to vector<1x64xf32>
    %294 = vector.extract_strided_slice %280 {offsets = [7, 0], sizes = [1, 64], strides = [1, 1]} : vector<8x64xf32> to vector<1x64xf32>
    %295 = arith.maximumf %293, %294 : vector<1x64xf32>
    %c11 = arith.constant 11 : index
    %c0_80 = arith.constant 0 : index
    %296 = vector.load %arg32[%c11, %c0_80] : memref<32x64xf32, #tpu.memory_space<vmem>>, vector<1x64xf32>
    tpu.vector_store %arg32[%c11, %c0_80], %295 {strides = array<i32>} : memref<32x64xf32, #tpu.memory_space<vmem>>, vector<1x64xf32>,
    %297 = vector.extract_strided_slice %221 {offsets = [24, 0], sizes = [8, 64], strides = [1, 1]} : vector<64x64xf32> to vector<8x64xf32>
    %298 = vector.extract_strided_slice %223 {offsets = [3, 0], sizes = [1, 64], strides = [1, 1]} : vector<8x64xf32> to vector<1x64xf32>
    %299 = vector.broadcast %298 : vector<1x64xf32> to vector<8x64xf32>
    %300 = arith.addf %297, %299 : vector<8x64xf32>
    %301 = vector.broadcast %224 : vector<1x64xf32> to vector<8x64xf32>
    %302 = arith.addf %300, %301 : vector<8x64xf32>
    %cst_81 = arith.constant 0.000000e+00 : f32
    %303 = vector.broadcast %cst_81 : f32 to vector<8x64xf32>
    %304 = arith.maximumf %302, %303 : vector<8x64xf32>
    %305 = vector.extract_strided_slice %304 {offsets = [0, 0], sizes = [1, 64], strides = [1, 1]} : vector<8x64xf32> to vector<1x64xf32>
    %306 = vector.extract_strided_slice %304 {offsets = [1, 0], sizes = [1, 64], strides = [1, 1]} : vector<8x64xf32> to vector<1x64xf32>
    %307 = arith.maximumf %305, %306 : vector<1x64xf32>
    %c12 = arith.constant 12 : index
    %c0_82 = arith.constant 0 : index
    %308 = vector.load %arg32[%c12, %c0_82] : memref<32x64xf32, #tpu.memory_space<vmem>>, vector<1x64xf32>
    tpu.vector_store %arg32[%c12, %c0_82], %307 {strides = array<i32>} : memref<32x64xf32, #tpu.memory_space<vmem>>, vector<1x64xf32>,
    %309 = vector.extract_strided_slice %304 {offsets = [2, 0], sizes = [1, 64], strides = [1, 1]} : vector<8x64xf32> to vector<1x64xf32>
    %310 = vector.extract_strided_slice %304 {offsets = [3, 0], sizes = [1, 64], strides = [1, 1]} : vector<8x64xf32> to vector<1x64xf32>
    %311 = arith.maximumf %309, %310 : vector<1x64xf32>
    %c13 = arith.constant 13 : index
    %c0_83 = arith.constant 0 : index
    %312 = vector.load %arg32[%c13, %c0_83] : memref<32x64xf32, #tpu.memory_space<vmem>>, vector<1x64xf32>
    tpu.vector_store %arg32[%c13, %c0_83], %311 {strides = array<i32>} : memref<32x64xf32, #tpu.memory_space<vmem>>, vector<1x64xf32>,
    %313 = vector.extract_strided_slice %304 {offsets = [4, 0], sizes = [1, 64], strides = [1, 1]} : vector<8x64xf32> to vector<1x64xf32>
    %314 = vector.extract_strided_slice %304 {offsets = [5, 0], sizes = [1, 64], strides = [1, 1]} : vector<8x64xf32> to vector<1x64xf32>
    %315 = arith.maximumf %313, %314 : vector<1x64xf32>
    %c14 = arith.constant 14 : index
    %c0_84 = arith.constant 0 : index
    %316 = vector.load %arg32[%c14, %c0_84] : memref<32x64xf32, #tpu.memory_space<vmem>>, vector<1x64xf32>
    tpu.vector_store %arg32[%c14, %c0_84], %315 {strides = array<i32>} : memref<32x64xf32, #tpu.memory_space<vmem>>, vector<1x64xf32>,
    %317 = vector.extract_strided_slice %304 {offsets = [6, 0], sizes = [1, 64], strides = [1, 1]} : vector<8x64xf32> to vector<1x64xf32>
    %318 = vector.extract_strided_slice %304 {offsets = [7, 0], sizes = [1, 64], strides = [1, 1]} : vector<8x64xf32> to vector<1x64xf32>
    %319 = arith.maximumf %317, %318 : vector<1x64xf32>
    %c15 = arith.constant 15 : index
    %c0_85 = arith.constant 0 : index
    %320 = vector.load %arg32[%c15, %c0_85] : memref<32x64xf32, #tpu.memory_space<vmem>>, vector<1x64xf32>
    tpu.vector_store %arg32[%c15, %c0_85], %319 {strides = array<i32>} : memref<32x64xf32, #tpu.memory_space<vmem>>, vector<1x64xf32>,
    %321 = vector.extract_strided_slice %221 {offsets = [32, 0], sizes = [8, 64], strides = [1, 1]} : vector<64x64xf32> to vector<8x64xf32>
    %322 = vector.extract_strided_slice %223 {offsets = [4, 0], sizes = [1, 64], strides = [1, 1]} : vector<8x64xf32> to vector<1x64xf32>
    %323 = vector.broadcast %322 : vector<1x64xf32> to vector<8x64xf32>
    %324 = arith.addf %321, %323 : vector<8x64xf32>
    %325 = vector.broadcast %224 : vector<1x64xf32> to vector<8x64xf32>
    %326 = arith.addf %324, %325 : vector<8x64xf32>
    %cst_86 = arith.constant 0.000000e+00 : f32
    %327 = vector.broadcast %cst_86 : f32 to vector<8x64xf32>
    %328 = arith.maximumf %326, %327 : vector<8x64xf32>
    %329 = vector.extract_strided_slice %328 {offsets = [0, 0], sizes = [1, 64], strides = [1, 1]} : vector<8x64xf32> to vector<1x64xf32>
    %330 = vector.extract_strided_slice %328 {offsets = [1, 0], sizes = [1, 64], strides = [1, 1]} : vector<8x64xf32> to vector<1x64xf32>
    %331 = arith.maximumf %329, %330 : vector<1x64xf32>
    %c16 = arith.constant 16 : index
    %c0_87 = arith.constant 0 : index
    %332 = vector.load %arg32[%c16, %c0_87] : memref<32x64xf32, #tpu.memory_space<vmem>>, vector<1x64xf32>
    tpu.vector_store %arg32[%c16, %c0_87], %331 {strides = array<i32>} : memref<32x64xf32, #tpu.memory_space<vmem>>, vector<1x64xf32>,
    %333 = vector.extract_strided_slice %328 {offsets = [2, 0], sizes = [1, 64], strides = [1, 1]} : vector<8x64xf32> to vector<1x64xf32>
    %334 = vector.extract_strided_slice %328 {offsets = [3, 0], sizes = [1, 64], strides = [1, 1]} : vector<8x64xf32> to vector<1x64xf32>
    %335 = arith.maximumf %333, %334 : vector<1x64xf32>
    %c17 = arith.constant 17 : index
    %c0_88 = arith.constant 0 : index
    %336 = vector.load %arg32[%c17, %c0_88] : memref<32x64xf32, #tpu.memory_space<vmem>>, vector<1x64xf32>
    tpu.vector_store %arg32[%c17, %c0_88], %335 {strides = array<i32>} : memref<32x64xf32, #tpu.memory_space<vmem>>, vector<1x64xf32>,
    %337 = vector.extract_strided_slice %328 {offsets = [4, 0], sizes = [1, 64], strides = [1, 1]} : vector<8x64xf32> to vector<1x64xf32>
    %338 = vector.extract_strided_slice %328 {offsets = [5, 0], sizes = [1, 64], strides = [1, 1]} : vector<8x64xf32> to vector<1x64xf32>
    %339 = arith.maximumf %337, %338 : vector<1x64xf32>
    %c18 = arith.constant 18 : index
    %c0_89 = arith.constant 0 : index
    %340 = vector.load %arg32[%c18, %c0_89] : memref<32x64xf32, #tpu.memory_space<vmem>>, vector<1x64xf32>
    tpu.vector_store %arg32[%c18, %c0_89], %339 {strides = array<i32>} : memref<32x64xf32, #tpu.memory_space<vmem>>, vector<1x64xf32>,
    %341 = vector.extract_strided_slice %328 {offsets = [6, 0], sizes = [1, 64], strides = [1, 1]} : vector<8x64xf32> to vector<1x64xf32>
    %342 = vector.extract_strided_slice %328 {offsets = [7, 0], sizes = [1, 64], strides = [1, 1]} : vector<8x64xf32> to vector<1x64xf32>
    %343 = arith.maximumf %341, %342 : vector<1x64xf32>
    %c19 = arith.constant 19 : index
    %c0_90 = arith.constant 0 : index
    %344 = vector.load %arg32[%c19, %c0_90] : memref<32x64xf32, #tpu.memory_space<vmem>>, vector<1x64xf32>
    tpu.vector_store %arg32[%c19, %c0_90], %343 {strides = array<i32>} : memref<32x64xf32, #tpu.memory_space<vmem>>, vector<1x64xf32>,
    %345 = vector.extract_strided_slice %221 {offsets = [40, 0], sizes = [8, 64], strides = [1, 1]} : vector<64x64xf32> to vector<8x64xf32>
    %346 = vector.extract_strided_slice %223 {offsets = [5, 0], sizes = [1, 64], strides = [1, 1]} : vector<8x64xf32> to vector<1x64xf32>
    %347 = vector.broadcast %346 : vector<1x64xf32> to vector<8x64xf32>
    %348 = arith.addf %345, %347 : vector<8x64xf32>
    %349 = vector.broadcast %224 : vector<1x64xf32> to vector<8x64xf32>
    %350 = arith.addf %348, %349 : vector<8x64xf32>
    %cst_91 = arith.constant 0.000000e+00 : f32
    %351 = vector.broadcast %cst_91 : f32 to vector<8x64xf32>
    %352 = arith.maximumf %350, %351 : vector<8x64xf32>
    %353 = vector.extract_strided_slice %352 {offsets = [0, 0], sizes = [1, 64], strides = [1, 1]} : vector<8x64xf32> to vector<1x64xf32>
    %354 = vector.extract_strided_slice %352 {offsets = [1, 0], sizes = [1, 64], strides = [1, 1]} : vector<8x64xf32> to vector<1x64xf32>
    %355 = arith.maximumf %353, %354 : vector<1x64xf32>
    %c20 = arith.constant 20 : index
    %c0_92 = arith.constant 0 : index
    %356 = vector.load %arg32[%c20, %c0_92] : memref<32x64xf32, #tpu.memory_space<vmem>>, vector<1x64xf32>
    tpu.vector_store %arg32[%c20, %c0_92], %355 {strides = array<i32>} : memref<32x64xf32, #tpu.memory_space<vmem>>, vector<1x64xf32>,
    %357 = vector.extract_strided_slice %352 {offsets = [2, 0], sizes = [1, 64], strides = [1, 1]} : vector<8x64xf32> to vector<1x64xf32>
    %358 = vector.extract_strided_slice %352 {offsets = [3, 0], sizes = [1, 64], strides = [1, 1]} : vector<8x64xf32> to vector<1x64xf32>
    %359 = arith.maximumf %357, %358 : vector<1x64xf32>
    %c21 = arith.constant 21 : index
    %c0_93 = arith.constant 0 : index
    %360 = vector.load %arg32[%c21, %c0_93] : memref<32x64xf32, #tpu.memory_space<vmem>>, vector<1x64xf32>
    tpu.vector_store %arg32[%c21, %c0_93], %359 {strides = array<i32>} : memref<32x64xf32, #tpu.memory_space<vmem>>, vector<1x64xf32>,
    %361 = vector.extract_strided_slice %352 {offsets = [4, 0], sizes = [1, 64], strides = [1, 1]} : vector<8x64xf32> to vector<1x64xf32>
    %362 = vector.extract_strided_slice %352 {offsets = [5, 0], sizes = [1, 64], strides = [1, 1]} : vector<8x64xf32> to vector<1x64xf32>
    %363 = arith.maximumf %361, %362 : vector<1x64xf32>
    %c22 = arith.constant 22 : index
    %c0_94 = arith.constant 0 : index
    %364 = vector.load %arg32[%c22, %c0_94] : memref<32x64xf32, #tpu.memory_space<vmem>>, vector<1x64xf32>
    tpu.vector_store %arg32[%c22, %c0_94], %363 {strides = array<i32>} : memref<32x64xf32, #tpu.memory_space<vmem>>, vector<1x64xf32>,
    %365 = vector.extract_strided_slice %352 {offsets = [6, 0], sizes = [1, 64], strides = [1, 1]} : vector<8x64xf32> to vector<1x64xf32>
    %366 = vector.extract_strided_slice %352 {offsets = [7, 0], sizes = [1, 64], strides = [1, 1]} : vector<8x64xf32> to vector<1x64xf32>
    %367 = arith.maximumf %365, %366 : vector<1x64xf32>
    %c23 = arith.constant 23 : index
    %c0_95 = arith.constant 0 : index
    %368 = vector.load %arg32[%c23, %c0_95] : memref<32x64xf32, #tpu.memory_space<vmem>>, vector<1x64xf32>
    tpu.vector_store %arg32[%c23, %c0_95], %367 {strides = array<i32>} : memref<32x64xf32, #tpu.memory_space<vmem>>, vector<1x64xf32>,
    %369 = vector.extract_strided_slice %221 {offsets = [48, 0], sizes = [8, 64], strides = [1, 1]} : vector<64x64xf32> to vector<8x64xf32>
    %370 = vector.extract_strided_slice %223 {offsets = [6, 0], sizes = [1, 64], strides = [1, 1]} : vector<8x64xf32> to vector<1x64xf32>
    %371 = vector.broadcast %370 : vector<1x64xf32> to vector<8x64xf32>
    %372 = arith.addf %369, %371 : vector<8x64xf32>
    %373 = vector.broadcast %224 : vector<1x64xf32> to vector<8x64xf32>
    %374 = arith.addf %372, %373 : vector<8x64xf32>
    %cst_96 = arith.constant 0.000000e+00 : f32
    %375 = vector.broadcast %cst_96 : f32 to vector<8x64xf32>
    %376 = arith.maximumf %374, %375 : vector<8x64xf32>
    %377 = vector.extract_strided_slice %376 {offsets = [0, 0], sizes = [1, 64], strides = [1, 1]} : vector<8x64xf32> to vector<1x64xf32>
    %378 = vector.extract_strided_slice %376 {offsets = [1, 0], sizes = [1, 64], strides = [1, 1]} : vector<8x64xf32> to vector<1x64xf32>
    %379 = arith.maximumf %377, %378 : vector<1x64xf32>
    %c24 = arith.constant 24 : index
    %c0_97 = arith.constant 0 : index
    %380 = vector.load %arg32[%c24, %c0_97] : memref<32x64xf32, #tpu.memory_space<vmem>>, vector<1x64xf32>
    tpu.vector_store %arg32[%c24, %c0_97], %379 {strides = array<i32>} : memref<32x64xf32, #tpu.memory_space<vmem>>, vector<1x64xf32>,
    %381 = vector.extract_strided_slice %376 {offsets = [2, 0], sizes = [1, 64], strides = [1, 1]} : vector<8x64xf32> to vector<1x64xf32>
    %382 = vector.extract_strided_slice %376 {offsets = [3, 0], sizes = [1, 64], strides = [1, 1]} : vector<8x64xf32> to vector<1x64xf32>
    %383 = arith.maximumf %381, %382 : vector<1x64xf32>
    %c25 = arith.constant 25 : index
    %c0_98 = arith.constant 0 : index
    %384 = vector.load %arg32[%c25, %c0_98] : memref<32x64xf32, #tpu.memory_space<vmem>>, vector<1x64xf32>
    tpu.vector_store %arg32[%c25, %c0_98], %383 {strides = array<i32>} : memref<32x64xf32, #tpu.memory_space<vmem>>, vector<1x64xf32>,
    %385 = vector.extract_strided_slice %376 {offsets = [4, 0], sizes = [1, 64], strides = [1, 1]} : vector<8x64xf32> to vector<1x64xf32>
    %386 = vector.extract_strided_slice %376 {offsets = [5, 0], sizes = [1, 64], strides = [1, 1]} : vector<8x64xf32> to vector<1x64xf32>
    %387 = arith.maximumf %385, %386 : vector<1x64xf32>
    %c26 = arith.constant 26 : index
    %c0_99 = arith.constant 0 : index
    %388 = vector.load %arg32[%c26, %c0_99] : memref<32x64xf32, #tpu.memory_space<vmem>>, vector<1x64xf32>
    tpu.vector_store %arg32[%c26, %c0_99], %387 {strides = array<i32>} : memref<32x64xf32, #tpu.memory_space<vmem>>, vector<1x64xf32>,
    %389 = vector.extract_strided_slice %376 {offsets = [6, 0], sizes = [1, 64], strides = [1, 1]} : vector<8x64xf32> to vector<1x64xf32>
    %390 = vector.extract_strided_slice %376 {offsets = [7, 0], sizes = [1, 64], strides = [1, 1]} : vector<8x64xf32> to vector<1x64xf32>
    %391 = arith.maximumf %389, %390 : vector<1x64xf32>
    %c27 = arith.constant 27 : index
    %c0_100 = arith.constant 0 : index
    %392 = vector.load %arg32[%c27, %c0_100] : memref<32x64xf32, #tpu.memory_space<vmem>>, vector<1x64xf32>
    tpu.vector_store %arg32[%c27, %c0_100], %391 {strides = array<i32>} : memref<32x64xf32, #tpu.memory_space<vmem>>, vector<1x64xf32>,
    %393 = vector.extract_strided_slice %221 {offsets = [56, 0], sizes = [8, 64], strides = [1, 1]} : vector<64x64xf32> to vector<8x64xf32>
    %394 = vector.extract_strided_slice %223 {offsets = [7, 0], sizes = [1, 64], strides = [1, 1]} : vector<8x64xf32> to vector<1x64xf32>
    %395 = vector.broadcast %394 : vector<1x64xf32> to vector<8x64xf32>
    %396 = arith.addf %393, %395 : vector<8x64xf32>
    %397 = vector.broadcast %224 : vector<1x64xf32> to vector<8x64xf32>
    %398 = arith.addf %396, %397 : vector<8x64xf32>
    %cst_101 = arith.constant 0.000000e+00 : f32
    %399 = vector.broadcast %cst_101 : f32 to vector<8x64xf32>
    %400 = arith.maximumf %398, %399 : vector<8x64xf32>
    %401 = vector.extract_strided_slice %400 {offsets = [0, 0], sizes = [1, 64], strides = [1, 1]} : vector<8x64xf32> to vector<1x64xf32>
    %402 = vector.extract_strided_slice %400 {offsets = [1, 0], sizes = [1, 64], strides = [1, 1]} : vector<8x64xf32> to vector<1x64xf32>
    %403 = arith.maximumf %401, %402 : vector<1x64xf32>
    %c28 = arith.constant 28 : index
    %c0_102 = arith.constant 0 : index
    %404 = vector.load %arg32[%c28, %c0_102] : memref<32x64xf32, #tpu.memory_space<vmem>>, vector<1x64xf32>
    tpu.vector_store %arg32[%c28, %c0_102], %403 {strides = array<i32>} : memref<32x64xf32, #tpu.memory_space<vmem>>, vector<1x64xf32>,
    %405 = vector.extract_strided_slice %400 {offsets = [2, 0], sizes = [1, 64], strides = [1, 1]} : vector<8x64xf32> to vector<1x64xf32>
    %406 = vector.extract_strided_slice %400 {offsets = [3, 0], sizes = [1, 64], strides = [1, 1]} : vector<8x64xf32> to vector<1x64xf32>
    %407 = arith.maximumf %405, %406 : vector<1x64xf32>
    %c29 = arith.constant 29 : index
    %c0_103 = arith.constant 0 : index
    %408 = vector.load %arg32[%c29, %c0_103] : memref<32x64xf32, #tpu.memory_space<vmem>>, vector<1x64xf32>
    tpu.vector_store %arg32[%c29, %c0_103], %407 {strides = array<i32>} : memref<32x64xf32, #tpu.memory_space<vmem>>, vector<1x64xf32>,
    %409 = vector.extract_strided_slice %400 {offsets = [4, 0], sizes = [1, 64], strides = [1, 1]} : vector<8x64xf32> to vector<1x64xf32>
    %410 = vector.extract_strided_slice %400 {offsets = [5, 0], sizes = [1, 64], strides = [1, 1]} : vector<8x64xf32> to vector<1x64xf32>
    %411 = arith.maximumf %409, %410 : vector<1x64xf32>
    %c30 = arith.constant 30 : index
    %c0_104 = arith.constant 0 : index
    %412 = vector.load %arg32[%c30, %c0_104] : memref<32x64xf32, #tpu.memory_space<vmem>>, vector<1x64xf32>
    tpu.vector_store %arg32[%c30, %c0_104], %411 {strides = array<i32>} : memref<32x64xf32, #tpu.memory_space<vmem>>, vector<1x64xf32>,
    %413 = vector.extract_strided_slice %400 {offsets = [6, 0], sizes = [1, 64], strides = [1, 1]} : vector<8x64xf32> to vector<1x64xf32>
    %414 = vector.extract_strided_slice %400 {offsets = [7, 0], sizes = [1, 64], strides = [1, 1]} : vector<8x64xf32> to vector<1x64xf32>
    %415 = arith.maximumf %413, %414 : vector<1x64xf32>
    %c31 = arith.constant 31 : index
    %c0_105 = arith.constant 0 : index
    %416 = vector.load %arg32[%c31, %c0_105] : memref<32x64xf32, #tpu.memory_space<vmem>>, vector<1x64xf32>
    tpu.vector_store %arg32[%c31, %c0_105], %415 {strides = array<i32>} : memref<32x64xf32, #tpu.memory_space<vmem>>, vector<1x64xf32>,
    %c0_106 = arith.constant 0 : index
    %c0_107 = arith.constant 0 : index
    %417 = vector.load %arg32[%c0_106, %c0_107] : memref<32x64xf32, #tpu.memory_space<vmem>>, vector<32x64xf32>
    %418 = vector.extract_strided_slice %417 {offsets = [0, 0], sizes = [4, 64], strides = [1, 1]} : vector<32x64xf32> to vector<4x64xf32>
    %419 = vector.extract_strided_slice %418 {offsets = [0, 0], sizes = [2, 64], strides = [1, 1]} : vector<4x64xf32> to vector<2x64xf32>
    %420 = vector.extract_strided_slice %418 {offsets = [2, 0], sizes = [2, 64], strides = [1, 1]} : vector<4x64xf32> to vector<2x64xf32>
    %421 = arith.maximumf %419, %420 : vector<2x64xf32>
    %422 = vector.extract_strided_slice %421 {offsets = [0, 0], sizes = [1, 64], strides = [1, 1]} : vector<2x64xf32> to vector<1x64xf32>
    %423 = vector.extract_strided_slice %421 {offsets = [1, 0], sizes = [1, 64], strides = [1, 1]} : vector<2x64xf32> to vector<1x64xf32>
    %424 = arith.maximumf %422, %423 : vector<1x64xf32>
    %c0_108 = arith.constant 0 : index
    %c0_109 = arith.constant 0 : index
    %425 = vector.load %arg33[%c0_108, %c0_109] : memref<8x64xf32, #tpu.memory_space<vmem>>, vector<1x64xf32>
    tpu.vector_store %arg33[%c0_108, %c0_109], %424 {strides = array<i32>} : memref<8x64xf32, #tpu.memory_space<vmem>>, vector<1x64xf32>,
    %426 = vector.extract_strided_slice %417 {offsets = [4, 0], sizes = [4, 64], strides = [1, 1]} : vector<32x64xf32> to vector<4x64xf32>
    %427 = vector.extract_strided_slice %426 {offsets = [0, 0], sizes = [2, 64], strides = [1, 1]} : vector<4x64xf32> to vector<2x64xf32>
    %428 = vector.extract_strided_slice %426 {offsets = [2, 0], sizes = [2, 64], strides = [1, 1]} : vector<4x64xf32> to vector<2x64xf32>
    %429 = arith.maximumf %427, %428 : vector<2x64xf32>
    %430 = vector.extract_strided_slice %429 {offsets = [0, 0], sizes = [1, 64], strides = [1, 1]} : vector<2x64xf32> to vector<1x64xf32>
    %431 = vector.extract_strided_slice %429 {offsets = [1, 0], sizes = [1, 64], strides = [1, 1]} : vector<2x64xf32> to vector<1x64xf32>
    %432 = arith.maximumf %430, %431 : vector<1x64xf32>
    %c1_110 = arith.constant 1 : index
    %c0_111 = arith.constant 0 : index
    %433 = vector.load %arg33[%c1_110, %c0_111] : memref<8x64xf32, #tpu.memory_space<vmem>>, vector<1x64xf32>
    tpu.vector_store %arg33[%c1_110, %c0_111], %432 {strides = array<i32>} : memref<8x64xf32, #tpu.memory_space<vmem>>, vector<1x64xf32>,
    %434 = vector.extract_strided_slice %417 {offsets = [8, 0], sizes = [4, 64], strides = [1, 1]} : vector<32x64xf32> to vector<4x64xf32>
    %435 = vector.extract_strided_slice %434 {offsets = [0, 0], sizes = [2, 64], strides = [1, 1]} : vector<4x64xf32> to vector<2x64xf32>
    %436 = vector.extract_strided_slice %434 {offsets = [2, 0], sizes = [2, 64], strides = [1, 1]} : vector<4x64xf32> to vector<2x64xf32>
    %437 = arith.maximumf %435, %436 : vector<2x64xf32>
    %438 = vector.extract_strided_slice %437 {offsets = [0, 0], sizes = [1, 64], strides = [1, 1]} : vector<2x64xf32> to vector<1x64xf32>
    %439 = vector.extract_strided_slice %437 {offsets = [1, 0], sizes = [1, 64], strides = [1, 1]} : vector<2x64xf32> to vector<1x64xf32>
    %440 = arith.maximumf %438, %439 : vector<1x64xf32>
    %c2_112 = arith.constant 2 : index
    %c0_113 = arith.constant 0 : index
    %441 = vector.load %arg33[%c2_112, %c0_113] : memref<8x64xf32, #tpu.memory_space<vmem>>, vector<1x64xf32>
    tpu.vector_store %arg33[%c2_112, %c0_113], %440 {strides = array<i32>} : memref<8x64xf32, #tpu.memory_space<vmem>>, vector<1x64xf32>,
    %442 = vector.extract_strided_slice %417 {offsets = [12, 0], sizes = [4, 64], strides = [1, 1]} : vector<32x64xf32> to vector<4x64xf32>
    %443 = vector.extract_strided_slice %442 {offsets = [0, 0], sizes = [2, 64], strides = [1, 1]} : vector<4x64xf32> to vector<2x64xf32>
    %444 = vector.extract_strided_slice %442 {offsets = [2, 0], sizes = [2, 64], strides = [1, 1]} : vector<4x64xf32> to vector<2x64xf32>
    %445 = arith.maximumf %443, %444 : vector<2x64xf32>
    %446 = vector.extract_strided_slice %445 {offsets = [0, 0], sizes = [1, 64], strides = [1, 1]} : vector<2x64xf32> to vector<1x64xf32>
    %447 = vector.extract_strided_slice %445 {offsets = [1, 0], sizes = [1, 64], strides = [1, 1]} : vector<2x64xf32> to vector<1x64xf32>
    %448 = arith.maximumf %446, %447 : vector<1x64xf32>
    %c3_114 = arith.constant 3 : index
    %c0_115 = arith.constant 0 : index
    %449 = vector.load %arg33[%c3_114, %c0_115] : memref<8x64xf32, #tpu.memory_space<vmem>>, vector<1x64xf32>
    tpu.vector_store %arg33[%c3_114, %c0_115], %448 {strides = array<i32>} : memref<8x64xf32, #tpu.memory_space<vmem>>, vector<1x64xf32>,
    %450 = vector.extract_strided_slice %417 {offsets = [16, 0], sizes = [4, 64], strides = [1, 1]} : vector<32x64xf32> to vector<4x64xf32>
    %451 = vector.extract_strided_slice %450 {offsets = [0, 0], sizes = [2, 64], strides = [1, 1]} : vector<4x64xf32> to vector<2x64xf32>
    %452 = vector.extract_strided_slice %450 {offsets = [2, 0], sizes = [2, 64], strides = [1, 1]} : vector<4x64xf32> to vector<2x64xf32>
    %453 = arith.maximumf %451, %452 : vector<2x64xf32>
    %454 = vector.extract_strided_slice %453 {offsets = [0, 0], sizes = [1, 64], strides = [1, 1]} : vector<2x64xf32> to vector<1x64xf32>
    %455 = vector.extract_strided_slice %453 {offsets = [1, 0], sizes = [1, 64], strides = [1, 1]} : vector<2x64xf32> to vector<1x64xf32>
    %456 = arith.maximumf %454, %455 : vector<1x64xf32>
    %c4_116 = arith.constant 4 : index
    %c0_117 = arith.constant 0 : index
    %457 = vector.load %arg33[%c4_116, %c0_117] : memref<8x64xf32, #tpu.memory_space<vmem>>, vector<1x64xf32>
    tpu.vector_store %arg33[%c4_116, %c0_117], %456 {strides = array<i32>} : memref<8x64xf32, #tpu.memory_space<vmem>>, vector<1x64xf32>,
    %458 = vector.extract_strided_slice %417 {offsets = [20, 0], sizes = [4, 64], strides = [1, 1]} : vector<32x64xf32> to vector<4x64xf32>
    %459 = vector.extract_strided_slice %458 {offsets = [0, 0], sizes = [2, 64], strides = [1, 1]} : vector<4x64xf32> to vector<2x64xf32>
    %460 = vector.extract_strided_slice %458 {offsets = [2, 0], sizes = [2, 64], strides = [1, 1]} : vector<4x64xf32> to vector<2x64xf32>
    %461 = arith.maximumf %459, %460 : vector<2x64xf32>
    %462 = vector.extract_strided_slice %461 {offsets = [0, 0], sizes = [1, 64], strides = [1, 1]} : vector<2x64xf32> to vector<1x64xf32>
    %463 = vector.extract_strided_slice %461 {offsets = [1, 0], sizes = [1, 64], strides = [1, 1]} : vector<2x64xf32> to vector<1x64xf32>
    %464 = arith.maximumf %462, %463 : vector<1x64xf32>
    %c5_118 = arith.constant 5 : index
    %c0_119 = arith.constant 0 : index
    %465 = vector.load %arg33[%c5_118, %c0_119] : memref<8x64xf32, #tpu.memory_space<vmem>>, vector<1x64xf32>
    tpu.vector_store %arg33[%c5_118, %c0_119], %464 {strides = array<i32>} : memref<8x64xf32, #tpu.memory_space<vmem>>, vector<1x64xf32>,
    %466 = vector.extract_strided_slice %417 {offsets = [24, 0], sizes = [4, 64], strides = [1, 1]} : vector<32x64xf32> to vector<4x64xf32>
    %467 = vector.extract_strided_slice %466 {offsets = [0, 0], sizes = [2, 64], strides = [1, 1]} : vector<4x64xf32> to vector<2x64xf32>
    %468 = vector.extract_strided_slice %466 {offsets = [2, 0], sizes = [2, 64], strides = [1, 1]} : vector<4x64xf32> to vector<2x64xf32>
    %469 = arith.maximumf %467, %468 : vector<2x64xf32>
    %470 = vector.extract_strided_slice %469 {offsets = [0, 0], sizes = [1, 64], strides = [1, 1]} : vector<2x64xf32> to vector<1x64xf32>
    %471 = vector.extract_strided_slice %469 {offsets = [1, 0], sizes = [1, 64], strides = [1, 1]} : vector<2x64xf32> to vector<1x64xf32>
    %472 = arith.maximumf %470, %471 : vector<1x64xf32>
    %c6_120 = arith.constant 6 : index
    %c0_121 = arith.constant 0 : index
    %473 = vector.load %arg33[%c6_120, %c0_121] : memref<8x64xf32, #tpu.memory_space<vmem>>, vector<1x64xf32>
    tpu.vector_store %arg33[%c6_120, %c0_121], %472 {strides = array<i32>} : memref<8x64xf32, #tpu.memory_space<vmem>>, vector<1x64xf32>,
    %474 = vector.extract_strided_slice %417 {offsets = [28, 0], sizes = [4, 64], strides = [1, 1]} : vector<32x64xf32> to vector<4x64xf32>
    %475 = vector.extract_strided_slice %474 {offsets = [0, 0], sizes = [2, 64], strides = [1, 1]} : vector<4x64xf32> to vector<2x64xf32>
    %476 = vector.extract_strided_slice %474 {offsets = [2, 0], sizes = [2, 64], strides = [1, 1]} : vector<4x64xf32> to vector<2x64xf32>
    %477 = arith.maximumf %475, %476 : vector<2x64xf32>
    %478 = vector.extract_strided_slice %477 {offsets = [0, 0], sizes = [1, 64], strides = [1, 1]} : vector<2x64xf32> to vector<1x64xf32>
    %479 = vector.extract_strided_slice %477 {offsets = [1, 0], sizes = [1, 64], strides = [1, 1]} : vector<2x64xf32> to vector<1x64xf32>
    %480 = arith.maximumf %478, %479 : vector<1x64xf32>
    %c7_122 = arith.constant 7 : index
    %c0_123 = arith.constant 0 : index
    %481 = vector.load %arg33[%c7_122, %c0_123] : memref<8x64xf32, #tpu.memory_space<vmem>>, vector<1x64xf32>
    tpu.vector_store %arg33[%c7_122, %c0_123], %480 {strides = array<i32>} : memref<8x64xf32, #tpu.memory_space<vmem>>, vector<1x64xf32>,
    %c0_124 = arith.constant 0 : index
    %c0_125 = arith.constant 0 : index
    %482 = vector.load %arg33[%c0_124, %c0_125] : memref<8x64xf32, #tpu.memory_space<vmem>>, vector<8x64xf32>
    %c0_126 = arith.constant 0 : index
    %c0_127 = arith.constant 0 : index
    %483 = vector.load %arg12[%c0_126, %c0_127] : memref<96x384xf32, #tpu.memory_space<vmem>>, vector<96x384xf32>
    %cst_128 = arith.constant dense<0.000000e+00> : vector<8x384xf32>
    %484 = tpu.matmul %219, %483, %cst_128 {dimension_numbers = #tpu.dot_dimension_numbers<[1], [0], [0], [1], [0, 0, 1, 1], [], []>} : vector<8x96xf32>, vector<96x384xf32>, vector<8x384xf32> -> vector<8x384xf32>
    %c0_129 = arith.constant 0 : index
    %c0_130 = arith.constant 0 : index
    %485 = vector.load %arg13[%c0_129, %c0_130] : memref<64x384xf32, #tpu.memory_space<vmem>>, vector<64x384xf32>
    %cst_131 = arith.constant dense<0.000000e+00> : vector<8x384xf32>
    %486 = tpu.matmul %482, %485, %cst_131 {dimension_numbers = #tpu.dot_dimension_numbers<[1], [0], [0], [1], [0, 0, 1, 1], [], []>} : vector<8x64xf32>, vector<64x384xf32>, vector<8x384xf32> -> vector<8x384xf32>
    %487 = arith.addf %484, %486 : vector<8x384xf32>
    %c0_132 = arith.constant 0 : index
    %c0_133 = arith.constant 0 : index
    %488 = vector.load %arg14[%c0_132, %c0_133] : memref<1x384xf32, #tpu.memory_space<vmem>>, vector<1x384xf32>
    %489 = vector.broadcast %488 : vector<1x384xf32> to vector<8x384xf32>
    %490 = arith.addf %487, %489 : vector<8x384xf32>
    %cst_134 = arith.constant 0.000000e+00 : f32
    %491 = vector.broadcast %cst_134 : f32 to vector<8x384xf32>
    %492 = arith.maximumf %490, %491 : vector<8x384xf32>
    %c0_135 = arith.constant 0 : index
    %c0_136 = arith.constant 0 : index
    %493 = vector.load %arg15[%c0_135, %c0_136] : memref<64x256xf32, #tpu.memory_space<vmem>>, vector<64x256xf32>
    %cst_137 = arith.constant dense<0.000000e+00> : vector<32x256xf32>
    %494 = tpu.matmul %417, %493, %cst_137 {dimension_numbers = #tpu.dot_dimension_numbers<[1], [0], [0], [1], [0, 0, 1, 1], [], []>} : vector<32x64xf32>, vector<64x256xf32>, vector<32x256xf32> -> vector<32x256xf32>
    %c0_138 = arith.constant 0 : index
    %c0_139 = arith.constant 0 : index
    %495 = vector.load %arg16[%c0_138, %c0_139] : memref<96x256xf32, #tpu.memory_space<vmem>>, vector<96x256xf32>
    %cst_140 = arith.constant dense<0.000000e+00> : vector<8x256xf32>
    %496 = tpu.matmul %219, %495, %cst_140 {dimension_numbers = #tpu.dot_dimension_numbers<[1], [0], [0], [1], [0, 0, 1, 1], [], []>} : vector<8x96xf32>, vector<96x256xf32>, vector<8x256xf32> -> vector<8x256xf32>
    %c0_141 = arith.constant 0 : index
    %c0_142 = arith.constant 0 : index
    %497 = vector.load %arg17[%c0_141, %c0_142] : memref<1x256xf32, #tpu.memory_space<vmem>>, vector<1x256xf32>
    %498 = vector.extract_strided_slice %494 {offsets = [0, 0], sizes = [4, 256], strides = [1, 1]} : vector<32x256xf32> to vector<4x256xf32>
    %499 = vector.extract_strided_slice %496 {offsets = [0, 0], sizes = [1, 256], strides = [1, 1]} : vector<8x256xf32> to vector<1x256xf32>
    %500 = vector.broadcast %499 : vector<1x256xf32> to vector<4x256xf32>
    %501 = arith.addf %498, %500 : vector<4x256xf32>
    %502 = vector.broadcast %497 : vector<1x256xf32> to vector<4x256xf32>
    %503 = arith.addf %501, %502 : vector<4x256xf32>
    %cst_143 = arith.constant 0.000000e+00 : f32
    %504 = vector.broadcast %cst_143 : f32 to vector<4x256xf32>
    %505 = arith.maximumf %503, %504 : vector<4x256xf32>
    %506 = vector.extract_strided_slice %505 {offsets = [0, 0], sizes = [1, 256], strides = [1, 1]} : vector<4x256xf32> to vector<1x256xf32>
    %507 = vector.extract_strided_slice %505 {offsets = [1, 0], sizes = [1, 256], strides = [1, 1]} : vector<4x256xf32> to vector<1x256xf32>
    %508 = arith.maximumf %506, %507 : vector<1x256xf32>
    %c0_144 = arith.constant 0 : index
    %c0_145 = arith.constant 0 : index
    %509 = vector.load %arg34[%c0_144, %c0_145] : memref<16x256xf32, #tpu.memory_space<vmem>>, vector<1x256xf32>
    tpu.vector_store %arg34[%c0_144, %c0_145], %508 {strides = array<i32>} : memref<16x256xf32, #tpu.memory_space<vmem>>, vector<1x256xf32>,
    %510 = vector.extract_strided_slice %505 {offsets = [2, 0], sizes = [1, 256], strides = [1, 1]} : vector<4x256xf32> to vector<1x256xf32>
    %511 = vector.extract_strided_slice %505 {offsets = [3, 0], sizes = [1, 256], strides = [1, 1]} : vector<4x256xf32> to vector<1x256xf32>
    %512 = arith.maximumf %510, %511 : vector<1x256xf32>
    %c1_146 = arith.constant 1 : index
    %c0_147 = arith.constant 0 : index
    %513 = vector.load %arg34[%c1_146, %c0_147] : memref<16x256xf32, #tpu.memory_space<vmem>>, vector<1x256xf32>
    tpu.vector_store %arg34[%c1_146, %c0_147], %512 {strides = array<i32>} : memref<16x256xf32, #tpu.memory_space<vmem>>, vector<1x256xf32>,
    %514 = vector.extract_strided_slice %494 {offsets = [4, 0], sizes = [4, 256], strides = [1, 1]} : vector<32x256xf32> to vector<4x256xf32>
    %515 = vector.extract_strided_slice %496 {offsets = [1, 0], sizes = [1, 256], strides = [1, 1]} : vector<8x256xf32> to vector<1x256xf32>
    %516 = vector.broadcast %515 : vector<1x256xf32> to vector<4x256xf32>
    %517 = arith.addf %514, %516 : vector<4x256xf32>
    %518 = vector.broadcast %497 : vector<1x256xf32> to vector<4x256xf32>
    %519 = arith.addf %517, %518 : vector<4x256xf32>
    %cst_148 = arith.constant 0.000000e+00 : f32
    %520 = vector.broadcast %cst_148 : f32 to vector<4x256xf32>
    %521 = arith.maximumf %519, %520 : vector<4x256xf32>
    %522 = vector.extract_strided_slice %521 {offsets = [0, 0], sizes = [1, 256], strides = [1, 1]} : vector<4x256xf32> to vector<1x256xf32>
    %523 = vector.extract_strided_slice %521 {offsets = [1, 0], sizes = [1, 256], strides = [1, 1]} : vector<4x256xf32> to vector<1x256xf32>
    %524 = arith.maximumf %522, %523 : vector<1x256xf32>
    %c2_149 = arith.constant 2 : index
    %c0_150 = arith.constant 0 : index
    %525 = vector.load %arg34[%c2_149, %c0_150] : memref<16x256xf32, #tpu.memory_space<vmem>>, vector<1x256xf32>
    tpu.vector_store %arg34[%c2_149, %c0_150], %524 {strides = array<i32>} : memref<16x256xf32, #tpu.memory_space<vmem>>, vector<1x256xf32>,
    %526 = vector.extract_strided_slice %521 {offsets = [2, 0], sizes = [1, 256], strides = [1, 1]} : vector<4x256xf32> to vector<1x256xf32>
    %527 = vector.extract_strided_slice %521 {offsets = [3, 0], sizes = [1, 256], strides = [1, 1]} : vector<4x256xf32> to vector<1x256xf32>
    %528 = arith.maximumf %526, %527 : vector<1x256xf32>
    %c3_151 = arith.constant 3 : index
    %c0_152 = arith.constant 0 : index
    %529 = vector.load %arg34[%c3_151, %c0_152] : memref<16x256xf32, #tpu.memory_space<vmem>>, vector<1x256xf32>
    tpu.vector_store %arg34[%c3_151, %c0_152], %528 {strides = array<i32>} : memref<16x256xf32, #tpu.memory_space<vmem>>, vector<1x256xf32>,
    %530 = vector.extract_strided_slice %494 {offsets = [8, 0], sizes = [4, 256], strides = [1, 1]} : vector<32x256xf32> to vector<4x256xf32>
    %531 = vector.extract_strided_slice %496 {offsets = [2, 0], sizes = [1, 256], strides = [1, 1]} : vector<8x256xf32> to vector<1x256xf32>
    %532 = vector.broadcast %531 : vector<1x256xf32> to vector<4x256xf32>
    %533 = arith.addf %530, %532 : vector<4x256xf32>
    %534 = vector.broadcast %497 : vector<1x256xf32> to vector<4x256xf32>
    %535 = arith.addf %533, %534 : vector<4x256xf32>
    %cst_153 = arith.constant 0.000000e+00 : f32
    %536 = vector.broadcast %cst_153 : f32 to vector<4x256xf32>
    %537 = arith.maximumf %535, %536 : vector<4x256xf32>
    %538 = vector.extract_strided_slice %537 {offsets = [0, 0], sizes = [1, 256], strides = [1, 1]} : vector<4x256xf32> to vector<1x256xf32>
    %539 = vector.extract_strided_slice %537 {offsets = [1, 0], sizes = [1, 256], strides = [1, 1]} : vector<4x256xf32> to vector<1x256xf32>
    %540 = arith.maximumf %538, %539 : vector<1x256xf32>
    %c4_154 = arith.constant 4 : index
    %c0_155 = arith.constant 0 : index
    %541 = vector.load %arg34[%c4_154, %c0_155] : memref<16x256xf32, #tpu.memory_space<vmem>>, vector<1x256xf32>
    tpu.vector_store %arg34[%c4_154, %c0_155], %540 {strides = array<i32>} : memref<16x256xf32, #tpu.memory_space<vmem>>, vector<1x256xf32>,
    %542 = vector.extract_strided_slice %537 {offsets = [2, 0], sizes = [1, 256], strides = [1, 1]} : vector<4x256xf32> to vector<1x256xf32>
    %543 = vector.extract_strided_slice %537 {offsets = [3, 0], sizes = [1, 256], strides = [1, 1]} : vector<4x256xf32> to vector<1x256xf32>
    %544 = arith.maximumf %542, %543 : vector<1x256xf32>
    %c5_156 = arith.constant 5 : index
    %c0_157 = arith.constant 0 : index
    %545 = vector.load %arg34[%c5_156, %c0_157] : memref<16x256xf32, #tpu.memory_space<vmem>>, vector<1x256xf32>
    tpu.vector_store %arg34[%c5_156, %c0_157], %544 {strides = array<i32>} : memref<16x256xf32, #tpu.memory_space<vmem>>, vector<1x256xf32>,
    %546 = vector.extract_strided_slice %494 {offsets = [12, 0], sizes = [4, 256], strides = [1, 1]} : vector<32x256xf32> to vector<4x256xf32>
    %547 = vector.extract_strided_slice %496 {offsets = [3, 0], sizes = [1, 256], strides = [1, 1]} : vector<8x256xf32> to vector<1x256xf32>
    %548 = vector.broadcast %547 : vector<1x256xf32> to vector<4x256xf32>
    %549 = arith.addf %546, %548 : vector<4x256xf32>
    %550 = vector.broadcast %497 : vector<1x256xf32> to vector<4x256xf32>
    %551 = arith.addf %549, %550 : vector<4x256xf32>
    %cst_158 = arith.constant 0.000000e+00 : f32
    %552 = vector.broadcast %cst_158 : f32 to vector<4x256xf32>
    %553 = arith.maximumf %551, %552 : vector<4x256xf32>
    %554 = vector.extract_strided_slice %553 {offsets = [0, 0], sizes = [1, 256], strides = [1, 1]} : vector<4x256xf32> to vector<1x256xf32>
    %555 = vector.extract_strided_slice %553 {offsets = [1, 0], sizes = [1, 256], strides = [1, 1]} : vector<4x256xf32> to vector<1x256xf32>
    %556 = arith.maximumf %554, %555 : vector<1x256xf32>
    %c6_159 = arith.constant 6 : index
    %c0_160 = arith.constant 0 : index
    %557 = vector.load %arg34[%c6_159, %c0_160] : memref<16x256xf32, #tpu.memory_space<vmem>>, vector<1x256xf32>
    tpu.vector_store %arg34[%c6_159, %c0_160], %556 {strides = array<i32>} : memref<16x256xf32, #tpu.memory_space<vmem>>, vector<1x256xf32>,
    %558 = vector.extract_strided_slice %553 {offsets = [2, 0], sizes = [1, 256], strides = [1, 1]} : vector<4x256xf32> to vector<1x256xf32>
    %559 = vector.extract_strided_slice %553 {offsets = [3, 0], sizes = [1, 256], strides = [1, 1]} : vector<4x256xf32> to vector<1x256xf32>
    %560 = arith.maximumf %558, %559 : vector<1x256xf32>
    %c7_161 = arith.constant 7 : index
    %c0_162 = arith.constant 0 : index
    %561 = vector.load %arg34[%c7_161, %c0_162] : memref<16x256xf32, #tpu.memory_space<vmem>>, vector<1x256xf32>
    tpu.vector_store %arg34[%c7_161, %c0_162], %560 {strides = array<i32>} : memref<16x256xf32, #tpu.memory_space<vmem>>, vector<1x256xf32>,
    %562 = vector.extract_strided_slice %494 {offsets = [16, 0], sizes = [4, 256], strides = [1, 1]} : vector<32x256xf32> to vector<4x256xf32>
    %563 = vector.extract_strided_slice %496 {offsets = [4, 0], sizes = [1, 256], strides = [1, 1]} : vector<8x256xf32> to vector<1x256xf32>
    %564 = vector.broadcast %563 : vector<1x256xf32> to vector<4x256xf32>
    %565 = arith.addf %562, %564 : vector<4x256xf32>
    %566 = vector.broadcast %497 : vector<1x256xf32> to vector<4x256xf32>
    %567 = arith.addf %565, %566 : vector<4x256xf32>
    %cst_163 = arith.constant 0.000000e+00 : f32
    %568 = vector.broadcast %cst_163 : f32 to vector<4x256xf32>
    %569 = arith.maximumf %567, %568 : vector<4x256xf32>
    %570 = vector.extract_strided_slice %569 {offsets = [0, 0], sizes = [1, 256], strides = [1, 1]} : vector<4x256xf32> to vector<1x256xf32>
    %571 = vector.extract_strided_slice %569 {offsets = [1, 0], sizes = [1, 256], strides = [1, 1]} : vector<4x256xf32> to vector<1x256xf32>
    %572 = arith.maximumf %570, %571 : vector<1x256xf32>
    %c8_164 = arith.constant 8 : index
    %c0_165 = arith.constant 0 : index
    %573 = vector.load %arg34[%c8_164, %c0_165] : memref<16x256xf32, #tpu.memory_space<vmem>>, vector<1x256xf32>
    tpu.vector_store %arg34[%c8_164, %c0_165], %572 {strides = array<i32>} : memref<16x256xf32, #tpu.memory_space<vmem>>, vector<1x256xf32>,
    %574 = vector.extract_strided_slice %569 {offsets = [2, 0], sizes = [1, 256], strides = [1, 1]} : vector<4x256xf32> to vector<1x256xf32>
    %575 = vector.extract_strided_slice %569 {offsets = [3, 0], sizes = [1, 256], strides = [1, 1]} : vector<4x256xf32> to vector<1x256xf32>
    %576 = arith.maximumf %574, %575 : vector<1x256xf32>
    %c9_166 = arith.constant 9 : index
    %c0_167 = arith.constant 0 : index
    %577 = vector.load %arg34[%c9_166, %c0_167] : memref<16x256xf32, #tpu.memory_space<vmem>>, vector<1x256xf32>
    tpu.vector_store %arg34[%c9_166, %c0_167], %576 {strides = array<i32>} : memref<16x256xf32, #tpu.memory_space<vmem>>, vector<1x256xf32>,
    %578 = vector.extract_strided_slice %494 {offsets = [20, 0], sizes = [4, 256], strides = [1, 1]} : vector<32x256xf32> to vector<4x256xf32>
    %579 = vector.extract_strided_slice %496 {offsets = [5, 0], sizes = [1, 256], strides = [1, 1]} : vector<8x256xf32> to vector<1x256xf32>
    %580 = vector.broadcast %579 : vector<1x256xf32> to vector<4x256xf32>
    %581 = arith.addf %578, %580 : vector<4x256xf32>
    %582 = vector.broadcast %497 : vector<1x256xf32> to vector<4x256xf32>
    %583 = arith.addf %581, %582 : vector<4x256xf32>
    %cst_168 = arith.constant 0.000000e+00 : f32
    %584 = vector.broadcast %cst_168 : f32 to vector<4x256xf32>
    %585 = arith.maximumf %583, %584 : vector<4x256xf32>
    %586 = vector.extract_strided_slice %585 {offsets = [0, 0], sizes = [1, 256], strides = [1, 1]} : vector<4x256xf32> to vector<1x256xf32>
    %587 = vector.extract_strided_slice %585 {offsets = [1, 0], sizes = [1, 256], strides = [1, 1]} : vector<4x256xf32> to vector<1x256xf32>
    %588 = arith.maximumf %586, %587 : vector<1x256xf32>
    %c10_169 = arith.constant 10 : index
    %c0_170 = arith.constant 0 : index
    %589 = vector.load %arg34[%c10_169, %c0_170] : memref<16x256xf32, #tpu.memory_space<vmem>>, vector<1x256xf32>
    tpu.vector_store %arg34[%c10_169, %c0_170], %588 {strides = array<i32>} : memref<16x256xf32, #tpu.memory_space<vmem>>, vector<1x256xf32>,
    %590 = vector.extract_strided_slice %585 {offsets = [2, 0], sizes = [1, 256], strides = [1, 1]} : vector<4x256xf32> to vector<1x256xf32>
    %591 = vector.extract_strided_slice %585 {offsets = [3, 0], sizes = [1, 256], strides = [1, 1]} : vector<4x256xf32> to vector<1x256xf32>
    %592 = arith.maximumf %590, %591 : vector<1x256xf32>
    %c11_171 = arith.constant 11 : index
    %c0_172 = arith.constant 0 : index
    %593 = vector.load %arg34[%c11_171, %c0_172] : memref<16x256xf32, #tpu.memory_space<vmem>>, vector<1x256xf32>
    tpu.vector_store %arg34[%c11_171, %c0_172], %592 {strides = array<i32>} : memref<16x256xf32, #tpu.memory_space<vmem>>, vector<1x256xf32>,
    %594 = vector.extract_strided_slice %494 {offsets = [24, 0], sizes = [4, 256], strides = [1, 1]} : vector<32x256xf32> to vector<4x256xf32>
    %595 = vector.extract_strided_slice %496 {offsets = [6, 0], sizes = [1, 256], strides = [1, 1]} : vector<8x256xf32> to vector<1x256xf32>
    %596 = vector.broadcast %595 : vector<1x256xf32> to vector<4x256xf32>
    %597 = arith.addf %594, %596 : vector<4x256xf32>
    %598 = vector.broadcast %497 : vector<1x256xf32> to vector<4x256xf32>
    %599 = arith.addf %597, %598 : vector<4x256xf32>
    %cst_173 = arith.constant 0.000000e+00 : f32
    %600 = vector.broadcast %cst_173 : f32 to vector<4x256xf32>
    %601 = arith.maximumf %599, %600 : vector<4x256xf32>
    %602 = vector.extract_strided_slice %601 {offsets = [0, 0], sizes = [1, 256], strides = [1, 1]} : vector<4x256xf32> to vector<1x256xf32>
    %603 = vector.extract_strided_slice %601 {offsets = [1, 0], sizes = [1, 256], strides = [1, 1]} : vector<4x256xf32> to vector<1x256xf32>
    %604 = arith.maximumf %602, %603 : vector<1x256xf32>
    %c12_174 = arith.constant 12 : index
    %c0_175 = arith.constant 0 : index
    %605 = vector.load %arg34[%c12_174, %c0_175] : memref<16x256xf32, #tpu.memory_space<vmem>>, vector<1x256xf32>
    tpu.vector_store %arg34[%c12_174, %c0_175], %604 {strides = array<i32>} : memref<16x256xf32, #tpu.memory_space<vmem>>, vector<1x256xf32>,
    %606 = vector.extract_strided_slice %601 {offsets = [2, 0], sizes = [1, 256], strides = [1, 1]} : vector<4x256xf32> to vector<1x256xf32>
    %607 = vector.extract_strided_slice %601 {offsets = [3, 0], sizes = [1, 256], strides = [1, 1]} : vector<4x256xf32> to vector<1x256xf32>
    %608 = arith.maximumf %606, %607 : vector<1x256xf32>
    %c13_176 = arith.constant 13 : index
    %c0_177 = arith.constant 0 : index
    %609 = vector.load %arg34[%c13_176, %c0_177] : memref<16x256xf32, #tpu.memory_space<vmem>>, vector<1x256xf32>
    tpu.vector_store %arg34[%c13_176, %c0_177], %608 {strides = array<i32>} : memref<16x256xf32, #tpu.memory_space<vmem>>, vector<1x256xf32>,
    %610 = vector.extract_strided_slice %494 {offsets = [28, 0], sizes = [4, 256], strides = [1, 1]} : vector<32x256xf32> to vector<4x256xf32>
    %611 = vector.extract_strided_slice %496 {offsets = [7, 0], sizes = [1, 256], strides = [1, 1]} : vector<8x256xf32> to vector<1x256xf32>
    %612 = vector.broadcast %611 : vector<1x256xf32> to vector<4x256xf32>
    %613 = arith.addf %610, %612 : vector<4x256xf32>
    %614 = vector.broadcast %497 : vector<1x256xf32> to vector<4x256xf32>
    %615 = arith.addf %613, %614 : vector<4x256xf32>
    %cst_178 = arith.constant 0.000000e+00 : f32
    %616 = vector.broadcast %cst_178 : f32 to vector<4x256xf32>
    %617 = arith.maximumf %615, %616 : vector<4x256xf32>
    %618 = vector.extract_strided_slice %617 {offsets = [0, 0], sizes = [1, 256], strides = [1, 1]} : vector<4x256xf32> to vector<1x256xf32>
    %619 = vector.extract_strided_slice %617 {offsets = [1, 0], sizes = [1, 256], strides = [1, 1]} : vector<4x256xf32> to vector<1x256xf32>
    %620 = arith.maximumf %618, %619 : vector<1x256xf32>
    %c14_179 = arith.constant 14 : index
    %c0_180 = arith.constant 0 : index
    %621 = vector.load %arg34[%c14_179, %c0_180] : memref<16x256xf32, #tpu.memory_space<vmem>>, vector<1x256xf32>
    tpu.vector_store %arg34[%c14_179, %c0_180], %620 {strides = array<i32>} : memref<16x256xf32, #tpu.memory_space<vmem>>, vector<1x256xf32>,
    %622 = vector.extract_strided_slice %617 {offsets = [2, 0], sizes = [1, 256], strides = [1, 1]} : vector<4x256xf32> to vector<1x256xf32>
    %623 = vector.extract_strided_slice %617 {offsets = [3, 0], sizes = [1, 256], strides = [1, 1]} : vector<4x256xf32> to vector<1x256xf32>
    %624 = arith.maximumf %622, %623 : vector<1x256xf32>
    %c15_181 = arith.constant 15 : index
    %c0_182 = arith.constant 0 : index
    %625 = vector.load %arg34[%c15_181, %c0_182] : memref<16x256xf32, #tpu.memory_space<vmem>>, vector<1x256xf32>
    tpu.vector_store %arg34[%c15_181, %c0_182], %624 {strides = array<i32>} : memref<16x256xf32, #tpu.memory_space<vmem>>, vector<1x256xf32>,
    %c0_183 = arith.constant 0 : index
    %c0_184 = arith.constant 0 : index
    %626 = vector.load %arg34[%c0_183, %c0_184] : memref<16x256xf32, #tpu.memory_space<vmem>>, vector<16x256xf32>
    %627 = vector.extract_strided_slice %208 {offsets = [0, 0], sizes = [4, 24], strides = [1, 1]} : vector<8x24xf32> to vector<4x24xf32>
    %628 = vector.extract_strided_slice %627 {offsets = [0, 0], sizes = [2, 24], strides = [1, 1]} : vector<4x24xf32> to vector<2x24xf32>
    %629 = vector.extract_strided_slice %627 {offsets = [2, 0], sizes = [2, 24], strides = [1, 1]} : vector<4x24xf32> to vector<2x24xf32>
    %630 = arith.maximumf %628, %629 : vector<2x24xf32>
    %631 = vector.extract_strided_slice %630 {offsets = [0, 0], sizes = [1, 24], strides = [1, 1]} : vector<2x24xf32> to vector<1x24xf32>
    %632 = vector.extract_strided_slice %630 {offsets = [1, 0], sizes = [1, 24], strides = [1, 1]} : vector<2x24xf32> to vector<1x24xf32>
    %633 = arith.maximumf %631, %632 : vector<1x24xf32>
    %634 = vector.extract_strided_slice %219 {offsets = [0, 0], sizes = [4, 96], strides = [1, 1]} : vector<8x96xf32> to vector<4x96xf32>
    %635 = vector.extract_strided_slice %634 {offsets = [0, 0], sizes = [2, 96], strides = [1, 1]} : vector<4x96xf32> to vector<2x96xf32>
    %636 = vector.extract_strided_slice %634 {offsets = [2, 0], sizes = [2, 96], strides = [1, 1]} : vector<4x96xf32> to vector<2x96xf32>
    %637 = arith.maximumf %635, %636 : vector<2x96xf32>
    %638 = vector.extract_strided_slice %637 {offsets = [0, 0], sizes = [1, 96], strides = [1, 1]} : vector<2x96xf32> to vector<1x96xf32>
    %639 = vector.extract_strided_slice %637 {offsets = [1, 0], sizes = [1, 96], strides = [1, 1]} : vector<2x96xf32> to vector<1x96xf32>
    %640 = arith.maximumf %638, %639 : vector<1x96xf32>
    %641 = vector.extract_strided_slice %492 {offsets = [0, 0], sizes = [4, 384], strides = [1, 1]} : vector<8x384xf32> to vector<4x384xf32>
    %642 = vector.extract_strided_slice %641 {offsets = [0, 0], sizes = [2, 384], strides = [1, 1]} : vector<4x384xf32> to vector<2x384xf32>
    %643 = vector.extract_strided_slice %641 {offsets = [2, 0], sizes = [2, 384], strides = [1, 1]} : vector<4x384xf32> to vector<2x384xf32>
    %644 = arith.maximumf %642, %643 : vector<2x384xf32>
    %645 = vector.extract_strided_slice %644 {offsets = [0, 0], sizes = [1, 384], strides = [1, 1]} : vector<2x384xf32> to vector<1x384xf32>
    %646 = vector.extract_strided_slice %644 {offsets = [1, 0], sizes = [1, 384], strides = [1, 1]} : vector<2x384xf32> to vector<1x384xf32>
    %647 = arith.maximumf %645, %646 : vector<1x384xf32>
    %648 = vector.extract_strided_slice %31 {offsets = [0, 0], sizes = [32, 16], strides = [1, 1]} : vector<64x16xf32> to vector<32x16xf32>
    %649 = vector.extract_strided_slice %648 {offsets = [0, 0], sizes = [16, 16], strides = [1, 1]} : vector<32x16xf32> to vector<16x16xf32>
    %650 = vector.extract_strided_slice %648 {offsets = [16, 0], sizes = [16, 16], strides = [1, 1]} : vector<32x16xf32> to vector<16x16xf32>
    %651 = arith.maximumf %649, %650 : vector<16x16xf32>
    %652 = vector.extract_strided_slice %651 {offsets = [0, 0], sizes = [8, 16], strides = [1, 1]} : vector<16x16xf32> to vector<8x16xf32>
    %653 = vector.extract_strided_slice %651 {offsets = [8, 0], sizes = [8, 16], strides = [1, 1]} : vector<16x16xf32> to vector<8x16xf32>
    %654 = arith.maximumf %652, %653 : vector<8x16xf32>
    %655 = vector.extract_strided_slice %654 {offsets = [0, 0], sizes = [4, 16], strides = [1, 1]} : vector<8x16xf32> to vector<4x16xf32>
    %656 = vector.extract_strided_slice %654 {offsets = [4, 0], sizes = [4, 16], strides = [1, 1]} : vector<8x16xf32> to vector<4x16xf32>
    %657 = arith.maximumf %655, %656 : vector<4x16xf32>
    %658 = vector.extract_strided_slice %657 {offsets = [0, 0], sizes = [2, 16], strides = [1, 1]} : vector<4x16xf32> to vector<2x16xf32>
    %659 = vector.extract_strided_slice %657 {offsets = [2, 0], sizes = [2, 16], strides = [1, 1]} : vector<4x16xf32> to vector<2x16xf32>
    %660 = arith.maximumf %658, %659 : vector<2x16xf32>
    %661 = vector.extract_strided_slice %660 {offsets = [0, 0], sizes = [1, 16], strides = [1, 1]} : vector<2x16xf32> to vector<1x16xf32>
    %662 = vector.extract_strided_slice %660 {offsets = [1, 0], sizes = [1, 16], strides = [1, 1]} : vector<2x16xf32> to vector<1x16xf32>
    %663 = arith.maximumf %661, %662 : vector<1x16xf32>
    %664 = vector.extract_strided_slice %417 {offsets = [0, 0], sizes = [16, 64], strides = [1, 1]} : vector<32x64xf32> to vector<16x64xf32>
    %665 = vector.extract_strided_slice %664 {offsets = [0, 0], sizes = [8, 64], strides = [1, 1]} : vector<16x64xf32> to vector<8x64xf32>
    %666 = vector.extract_strided_slice %664 {offsets = [8, 0], sizes = [8, 64], strides = [1, 1]} : vector<16x64xf32> to vector<8x64xf32>
    %667 = arith.maximumf %665, %666 : vector<8x64xf32>
    %668 = vector.extract_strided_slice %667 {offsets = [0, 0], sizes = [4, 64], strides = [1, 1]} : vector<8x64xf32> to vector<4x64xf32>
    %669 = vector.extract_strided_slice %667 {offsets = [4, 0], sizes = [4, 64], strides = [1, 1]} : vector<8x64xf32> to vector<4x64xf32>
    %670 = arith.maximumf %668, %669 : vector<4x64xf32>
    %671 = vector.extract_strided_slice %670 {offsets = [0, 0], sizes = [2, 64], strides = [1, 1]} : vector<4x64xf32> to vector<2x64xf32>
    %672 = vector.extract_strided_slice %670 {offsets = [2, 0], sizes = [2, 64], strides = [1, 1]} : vector<4x64xf32> to vector<2x64xf32>
    %673 = arith.maximumf %671, %672 : vector<2x64xf32>
    %674 = vector.extract_strided_slice %673 {offsets = [0, 0], sizes = [1, 64], strides = [1, 1]} : vector<2x64xf32> to vector<1x64xf32>
    %675 = vector.extract_strided_slice %673 {offsets = [1, 0], sizes = [1, 64], strides = [1, 1]} : vector<2x64xf32> to vector<1x64xf32>
    %676 = arith.maximumf %674, %675 : vector<1x64xf32>
    %677 = vector.extract_strided_slice %626 {offsets = [0, 0], sizes = [8, 256], strides = [1, 1]} : vector<16x256xf32> to vector<8x256xf32>
    %678 = vector.extract_strided_slice %677 {offsets = [0, 0], sizes = [4, 256], strides = [1, 1]} : vector<8x256xf32> to vector<4x256xf32>
    %679 = vector.extract_strided_slice %677 {offsets = [4, 0], sizes = [4, 256], strides = [1, 1]} : vector<8x256xf32> to vector<4x256xf32>
    %680 = arith.maximumf %678, %679 : vector<4x256xf32>
    %681 = vector.extract_strided_slice %680 {offsets = [0, 0], sizes = [2, 256], strides = [1, 1]} : vector<4x256xf32> to vector<2x256xf32>
    %682 = vector.extract_strided_slice %680 {offsets = [2, 0], sizes = [2, 256], strides = [1, 1]} : vector<4x256xf32> to vector<2x256xf32>
    %683 = arith.maximumf %681, %682 : vector<2x256xf32>
    %684 = vector.extract_strided_slice %683 {offsets = [0, 0], sizes = [1, 256], strides = [1, 1]} : vector<2x256xf32> to vector<1x256xf32>
    %685 = vector.extract_strided_slice %683 {offsets = [1, 0], sizes = [1, 256], strides = [1, 1]} : vector<2x256xf32> to vector<1x256xf32>
    %686 = arith.maximumf %684, %685 : vector<1x256xf32>
    %c0_185 = arith.constant 0 : index
    %c0_186 = arith.constant 0 : index
    %687 = vector.load %arg18[%c0_185, %c0_186] : memref<24x191xf32, #tpu.memory_space<vmem>>, vector<24x191xf32>
    %cst_187 = arith.constant dense<0.000000e+00> : vector<1x191xf32>
    %688 = tpu.matmul %633, %687, %cst_187 {dimension_numbers = #tpu.dot_dimension_numbers<[1], [0], [0], [1], [0, 0, 1, 1], [], []>} : vector<1x24xf32>, vector<24x191xf32>, vector<1x191xf32> -> vector<1x191xf32>
    %c0_188 = arith.constant 0 : index
    %c0_189 = arith.constant 0 : index
    %689 = vector.load %arg19[%c0_188, %c0_189] : memref<96x191xf32, #tpu.memory_space<vmem>>, vector<96x191xf32>
    %cst_190 = arith.constant dense<0.000000e+00> : vector<1x191xf32>
    %690 = tpu.matmul %640, %689, %cst_190 {dimension_numbers = #tpu.dot_dimension_numbers<[1], [0], [0], [1], [0, 0, 1, 1], [], []>} : vector<1x96xf32>, vector<96x191xf32>, vector<1x191xf32> -> vector<1x191xf32>
    %691 = arith.addf %688, %690 : vector<1x191xf32>
    %c0_191 = arith.constant 0 : index
    %c0_192 = arith.constant 0 : index
    %692 = vector.load %arg20[%c0_191, %c0_192] : memref<384x191xf32, #tpu.memory_space<vmem>>, vector<384x191xf32>
    %cst_193 = arith.constant dense<0.000000e+00> : vector<1x191xf32>
    %693 = tpu.matmul %647, %692, %cst_193 {dimension_numbers = #tpu.dot_dimension_numbers<[1], [0], [0], [1], [0, 0, 1, 1], [], []>} : vector<1x384xf32>, vector<384x191xf32>, vector<1x191xf32> -> vector<1x191xf32>
    %694 = arith.addf %691, %693 : vector<1x191xf32>
    %c0_194 = arith.constant 0 : index
    %c0_195 = arith.constant 0 : index
    %695 = vector.load %arg21[%c0_194, %c0_195] : memref<16x191xf32, #tpu.memory_space<vmem>>, vector<16x191xf32>
    %cst_196 = arith.constant dense<0.000000e+00> : vector<1x191xf32>
    %696 = tpu.matmul %663, %695, %cst_196 {dimension_numbers = #tpu.dot_dimension_numbers<[1], [0], [0], [1], [0, 0, 1, 1], [], []>} : vector<1x16xf32>, vector<16x191xf32>, vector<1x191xf32> -> vector<1x191xf32>
    %697 = arith.addf %694, %696 : vector<1x191xf32>
    %c0_197 = arith.constant 0 : index
    %c0_198 = arith.constant 0 : index
    %698 = vector.load %arg22[%c0_197, %c0_198] : memref<64x191xf32, #tpu.memory_space<vmem>>, vector<64x191xf32>
    %cst_199 = arith.constant dense<0.000000e+00> : vector<1x191xf32>
    %699 = tpu.matmul %676, %698, %cst_199 {dimension_numbers = #tpu.dot_dimension_numbers<[1], [0], [0], [1], [0, 0, 1, 1], [], []>} : vector<1x64xf32>, vector<64x191xf32>, vector<1x191xf32> -> vector<1x191xf32>
    %700 = arith.addf %697, %699 : vector<1x191xf32>
    %c0_200 = arith.constant 0 : index
    %c0_201 = arith.constant 0 : index
    %701 = vector.load %arg23[%c0_200, %c0_201] : memref<256x191xf32, #tpu.memory_space<vmem>>, vector<256x191xf32>
    %cst_202 = arith.constant dense<0.000000e+00> : vector<1x191xf32>
    %702 = tpu.matmul %686, %701, %cst_202 {dimension_numbers = #tpu.dot_dimension_numbers<[1], [0], [0], [1], [0, 0, 1, 1], [], []>} : vector<1x256xf32>, vector<256x191xf32>, vector<1x191xf32> -> vector<1x191xf32>
    %703 = arith.addf %700, %702 : vector<1x191xf32>
    %c0_203 = arith.constant 0 : index
    %c0_204 = arith.constant 0 : index
    %704 = vector.load %arg24[%c0_203, %c0_204] : memref<1x191xf32, #tpu.memory_space<vmem>>, vector<1x191xf32>
    %705 = arith.addf %703, %704 : vector<1x191xf32>
    %cst_205 = arith.constant 0.000000e+00 : f32
    %706 = vector.broadcast %cst_205 : f32 to vector<1x191xf32>
    %707 = arith.maximumf %705, %706 : vector<1x191xf32>
    %c0_206 = arith.constant 0 : index
    %c0_207 = arith.constant 0 : index
    %708 = vector.load %arg25[%c0_206, %c0_207] : memref<191x43xf32, #tpu.memory_space<vmem>>, vector<191x43xf32>
    %cst_208 = arith.constant dense<0.000000e+00> : vector<1x43xf32>
    %709 = tpu.matmul %707, %708, %cst_208 {dimension_numbers = #tpu.dot_dimension_numbers<[1], [0], [0], [1], [0, 0, 1, 1], [], []>} : vector<1x191xf32>, vector<191x43xf32>, vector<1x43xf32> -> vector<1x43xf32>
    %c0_209 = arith.constant 0 : index
    %c0_210 = arith.constant 0 : index
    %710 = vector.load %arg26[%c0_209, %c0_210] : memref<1x43xf32, #tpu.memory_space<vmem>>, vector<1x43xf32>
    %711 = arith.addf %709, %710 : vector<1x43xf32>
    %cst_211 = arith.constant 0.000000e+00 : f32
    %712 = vector.broadcast %cst_211 : f32 to vector<1x43xf32>
    %713 = arith.maximumf %711, %712 : vector<1x43xf32>
    %c0_212 = arith.constant 0 : index
    %c0_213 = arith.constant 0 : index
    %714 = vector.load %arg27[%c0_212, %c0_213] : memref<43x10xf32, #tpu.memory_space<vmem>>, vector<43x10xf32>
    %cst_214 = arith.constant dense<0.000000e+00> : vector<1x10xf32>
    %715 = tpu.matmul %713, %714, %cst_214 {dimension_numbers = #tpu.dot_dimension_numbers<[1], [0], [0], [1], [0, 0, 1, 1], [], []>} : vector<1x43xf32>, vector<43x10xf32>, vector<1x10xf32> -> vector<1x10xf32>
    %c0_215 = arith.constant 0 : index
    %c0_216 = arith.constant 0 : index
    %716 = vector.load %arg28[%c0_215, %c0_216] : memref<1x10xf32, #tpu.memory_space<vmem>>, vector<1x10xf32>
    %717 = arith.addf %715, %716 : vector<1x10xf32>
    %cst_217 = arith.constant dense<0xFF800000> : vector<1xf32>
    %718 = vector.multi_reduction <maximumf>, %717, %cst_217 [1] : vector<1x10xf32> to vector<1xf32>
    %719 = vector.shape_cast %718 : vector<1xf32> to vector<1x1xf32>
    %720 = vector.broadcast %719 : vector<1x1xf32> to vector<1x10xf32>
    %721 = arith.subf %717, %720 : vector<1x10xf32>
    %722 = math.exp %721 : vector<1x10xf32>
    %cst_218 = arith.constant dense<0.000000e+00> : vector<1xf32>
    %723 = vector.multi_reduction <add>, %722, %cst_218 [1] : vector<1x10xf32> to vector<1xf32>
    %724 = vector.shape_cast %723 : vector<1xf32> to vector<1x1xf32>
    %725 = math.log %724 : vector<1x1xf32>
    %726 = vector.broadcast %725 : vector<1x1xf32> to vector<1x10xf32>
    %727 = arith.subf %721, %726 : vector<1x10xf32>
    %c0_219 = arith.constant 0 : index
    %c0_220 = arith.constant 0 : index
    %728 = vector.load %arg29[%c0_219, %c0_220] : memref<2x10xf32, #tpu.memory_space<vmem>>, vector<1x10xf32>
    tpu.vector_store %arg29[%c0_219, %c0_220], %727 {strides = array<i32>} : memref<2x10xf32, #tpu.memory_space<vmem>>, vector<1x10xf32>,
    %729 = vector.extract_strided_slice %208 {offsets = [4, 0], sizes = [4, 24], strides = [1, 1]} : vector<8x24xf32> to vector<4x24xf32>
    %730 = vector.extract_strided_slice %729 {offsets = [0, 0], sizes = [2, 24], strides = [1, 1]} : vector<4x24xf32> to vector<2x24xf32>
    %731 = vector.extract_strided_slice %729 {offsets = [2, 0], sizes = [2, 24], strides = [1, 1]} : vector<4x24xf32> to vector<2x24xf32>
    %732 = arith.maximumf %730, %731 : vector<2x24xf32>
    %733 = vector.extract_strided_slice %732 {offsets = [0, 0], sizes = [1, 24], strides = [1, 1]} : vector<2x24xf32> to vector<1x24xf32>
    %734 = vector.extract_strided_slice %732 {offsets = [1, 0], sizes = [1, 24], strides = [1, 1]} : vector<2x24xf32> to vector<1x24xf32>
    %735 = arith.maximumf %733, %734 : vector<1x24xf32>
    %736 = vector.extract_strided_slice %219 {offsets = [4, 0], sizes = [4, 96], strides = [1, 1]} : vector<8x96xf32> to vector<4x96xf32>
    %737 = vector.extract_strided_slice %736 {offsets = [0, 0], sizes = [2, 96], strides = [1, 1]} : vector<4x96xf32> to vector<2x96xf32>
    %738 = vector.extract_strided_slice %736 {offsets = [2, 0], sizes = [2, 96], strides = [1, 1]} : vector<4x96xf32> to vector<2x96xf32>
    %739 = arith.maximumf %737, %738 : vector<2x96xf32>
    %740 = vector.extract_strided_slice %739 {offsets = [0, 0], sizes = [1, 96], strides = [1, 1]} : vector<2x96xf32> to vector<1x96xf32>
    %741 = vector.extract_strided_slice %739 {offsets = [1, 0], sizes = [1, 96], strides = [1, 1]} : vector<2x96xf32> to vector<1x96xf32>
    %742 = arith.maximumf %740, %741 : vector<1x96xf32>
    %743 = vector.extract_strided_slice %492 {offsets = [4, 0], sizes = [4, 384], strides = [1, 1]} : vector<8x384xf32> to vector<4x384xf32>
    %744 = vector.extract_strided_slice %743 {offsets = [0, 0], sizes = [2, 384], strides = [1, 1]} : vector<4x384xf32> to vector<2x384xf32>
    %745 = vector.extract_strided_slice %743 {offsets = [2, 0], sizes = [2, 384], strides = [1, 1]} : vector<4x384xf32> to vector<2x384xf32>
    %746 = arith.maximumf %744, %745 : vector<2x384xf32>
    %747 = vector.extract_strided_slice %746 {offsets = [0, 0], sizes = [1, 384], strides = [1, 1]} : vector<2x384xf32> to vector<1x384xf32>
    %748 = vector.extract_strided_slice %746 {offsets = [1, 0], sizes = [1, 384], strides = [1, 1]} : vector<2x384xf32> to vector<1x384xf32>
    %749 = arith.maximumf %747, %748 : vector<1x384xf32>
    %750 = vector.extract_strided_slice %31 {offsets = [32, 0], sizes = [32, 16], strides = [1, 1]} : vector<64x16xf32> to vector<32x16xf32>
    %751 = vector.extract_strided_slice %750 {offsets = [0, 0], sizes = [16, 16], strides = [1, 1]} : vector<32x16xf32> to vector<16x16xf32>
    %752 = vector.extract_strided_slice %750 {offsets = [16, 0], sizes = [16, 16], strides = [1, 1]} : vector<32x16xf32> to vector<16x16xf32>
    %753 = arith.maximumf %751, %752 : vector<16x16xf32>
    %754 = vector.extract_strided_slice %753 {offsets = [0, 0], sizes = [8, 16], strides = [1, 1]} : vector<16x16xf32> to vector<8x16xf32>
    %755 = vector.extract_strided_slice %753 {offsets = [8, 0], sizes = [8, 16], strides = [1, 1]} : vector<16x16xf32> to vector<8x16xf32>
    %756 = arith.maximumf %754, %755 : vector<8x16xf32>
    %757 = vector.extract_strided_slice %756 {offsets = [0, 0], sizes = [4, 16], strides = [1, 1]} : vector<8x16xf32> to vector<4x16xf32>
    %758 = vector.extract_strided_slice %756 {offsets = [4, 0], sizes = [4, 16], strides = [1, 1]} : vector<8x16xf32> to vector<4x16xf32>
    %759 = arith.maximumf %757, %758 : vector<4x16xf32>
    %760 = vector.extract_strided_slice %759 {offsets = [0, 0], sizes = [2, 16], strides = [1, 1]} : vector<4x16xf32> to vector<2x16xf32>
    %761 = vector.extract_strided_slice %759 {offsets = [2, 0], sizes = [2, 16], strides = [1, 1]} : vector<4x16xf32> to vector<2x16xf32>
    %762 = arith.maximumf %760, %761 : vector<2x16xf32>
    %763 = vector.extract_strided_slice %762 {offsets = [0, 0], sizes = [1, 16], strides = [1, 1]} : vector<2x16xf32> to vector<1x16xf32>
    %764 = vector.extract_strided_slice %762 {offsets = [1, 0], sizes = [1, 16], strides = [1, 1]} : vector<2x16xf32> to vector<1x16xf32>
    %765 = arith.maximumf %763, %764 : vector<1x16xf32>
    %766 = vector.extract_strided_slice %417 {offsets = [16, 0], sizes = [16, 64], strides = [1, 1]} : vector<32x64xf32> to vector<16x64xf32>
    %767 = vector.extract_strided_slice %766 {offsets = [0, 0], sizes = [8, 64], strides = [1, 1]} : vector<16x64xf32> to vector<8x64xf32>
    %768 = vector.extract_strided_slice %766 {offsets = [8, 0], sizes = [8, 64], strides = [1, 1]} : vector<16x64xf32> to vector<8x64xf32>
    %769 = arith.maximumf %767, %768 : vector<8x64xf32>
    %770 = vector.extract_strided_slice %769 {offsets = [0, 0], sizes = [4, 64], strides = [1, 1]} : vector<8x64xf32> to vector<4x64xf32>
    %771 = vector.extract_strided_slice %769 {offsets = [4, 0], sizes = [4, 64], strides = [1, 1]} : vector<8x64xf32> to vector<4x64xf32>
    %772 = arith.maximumf %770, %771 : vector<4x64xf32>
    %773 = vector.extract_strided_slice %772 {offsets = [0, 0], sizes = [2, 64], strides = [1, 1]} : vector<4x64xf32> to vector<2x64xf32>
    %774 = vector.extract_strided_slice %772 {offsets = [2, 0], sizes = [2, 64], strides = [1, 1]} : vector<4x64xf32> to vector<2x64xf32>
    %775 = arith.maximumf %773, %774 : vector<2x64xf32>
    %776 = vector.extract_strided_slice %775 {offsets = [0, 0], sizes = [1, 64], strides = [1, 1]} : vector<2x64xf32> to vector<1x64xf32>
    %777 = vector.extract_strided_slice %775 {offsets = [1, 0], sizes = [1, 64], strides = [1, 1]} : vector<2x64xf32> to vector<1x64xf32>
    %778 = arith.maximumf %776, %777 : vector<1x64xf32>
    %779 = vector.extract_strided_slice %626 {offsets = [8, 0], sizes = [8, 256], strides = [1, 1]} : vector<16x256xf32> to vector<8x256xf32>
    %780 = vector.extract_strided_slice %779 {offsets = [0, 0], sizes = [4, 256], strides = [1, 1]} : vector<8x256xf32> to vector<4x256xf32>
    %781 = vector.extract_strided_slice %779 {offsets = [4, 0], sizes = [4, 256], strides = [1, 1]} : vector<8x256xf32> to vector<4x256xf32>
    %782 = arith.maximumf %780, %781 : vector<4x256xf32>
    %783 = vector.extract_strided_slice %782 {offsets = [0, 0], sizes = [2, 256], strides = [1, 1]} : vector<4x256xf32> to vector<2x256xf32>
    %784 = vector.extract_strided_slice %782 {offsets = [2, 0], sizes = [2, 256], strides = [1, 1]} : vector<4x256xf32> to vector<2x256xf32>
    %785 = arith.maximumf %783, %784 : vector<2x256xf32>
    %786 = vector.extract_strided_slice %785 {offsets = [0, 0], sizes = [1, 256], strides = [1, 1]} : vector<2x256xf32> to vector<1x256xf32>
    %787 = vector.extract_strided_slice %785 {offsets = [1, 0], sizes = [1, 256], strides = [1, 1]} : vector<2x256xf32> to vector<1x256xf32>
    %788 = arith.maximumf %786, %787 : vector<1x256xf32>
    %c0_221 = arith.constant 0 : index
    %c0_222 = arith.constant 0 : index
    %789 = vector.load %arg18[%c0_221, %c0_222] : memref<24x191xf32, #tpu.memory_space<vmem>>, vector<24x191xf32>
    %cst_223 = arith.constant dense<0.000000e+00> : vector<1x191xf32>
    %790 = tpu.matmul %735, %789, %cst_223 {dimension_numbers = #tpu.dot_dimension_numbers<[1], [0], [0], [1], [0, 0, 1, 1], [], []>} : vector<1x24xf32>, vector<24x191xf32>, vector<1x191xf32> -> vector<1x191xf32>
    %c0_224 = arith.constant 0 : index
    %c0_225 = arith.constant 0 : index
    %791 = vector.load %arg19[%c0_224, %c0_225] : memref<96x191xf32, #tpu.memory_space<vmem>>, vector<96x191xf32>
    %cst_226 = arith.constant dense<0.000000e+00> : vector<1x191xf32>
    %792 = tpu.matmul %742, %791, %cst_226 {dimension_numbers = #tpu.dot_dimension_numbers<[1], [0], [0], [1], [0, 0, 1, 1], [], []>} : vector<1x96xf32>, vector<96x191xf32>, vector<1x191xf32> -> vector<1x191xf32>
    %793 = arith.addf %790, %792 : vector<1x191xf32>
    %c0_227 = arith.constant 0 : index
    %c0_228 = arith.constant 0 : index
    %794 = vector.load %arg20[%c0_227, %c0_228] : memref<384x191xf32, #tpu.memory_space<vmem>>, vector<384x191xf32>
    %cst_229 = arith.constant dense<0.000000e+00> : vector<1x191xf32>
    %795 = tpu.matmul %749, %794, %cst_229 {dimension_numbers = #tpu.dot_dimension_numbers<[1], [0], [0], [1], [0, 0, 1, 1], [], []>} : vector<1x384xf32>, vector<384x191xf32>, vector<1x191xf32> -> vector<1x191xf32>
    %796 = arith.addf %793, %795 : vector<1x191xf32>
    %c0_230 = arith.constant 0 : index
    %c0_231 = arith.constant 0 : index
    %797 = vector.load %arg21[%c0_230, %c0_231] : memref<16x191xf32, #tpu.memory_space<vmem>>, vector<16x191xf32>
    %cst_232 = arith.constant dense<0.000000e+00> : vector<1x191xf32>
    %798 = tpu.matmul %765, %797, %cst_232 {dimension_numbers = #tpu.dot_dimension_numbers<[1], [0], [0], [1], [0, 0, 1, 1], [], []>} : vector<1x16xf32>, vector<16x191xf32>, vector<1x191xf32> -> vector<1x191xf32>
    %799 = arith.addf %796, %798 : vector<1x191xf32>
    %c0_233 = arith.constant 0 : index
    %c0_234 = arith.constant 0 : index
    %800 = vector.load %arg22[%c0_233, %c0_234] : memref<64x191xf32, #tpu.memory_space<vmem>>, vector<64x191xf32>
    %cst_235 = arith.constant dense<0.000000e+00> : vector<1x191xf32>
    %801 = tpu.matmul %778, %800, %cst_235 {dimension_numbers = #tpu.dot_dimension_numbers<[1], [0], [0], [1], [0, 0, 1, 1], [], []>} : vector<1x64xf32>, vector<64x191xf32>, vector<1x191xf32> -> vector<1x191xf32>
    %802 = arith.addf %799, %801 : vector<1x191xf32>
    %c0_236 = arith.constant 0 : index
    %c0_237 = arith.constant 0 : index
    %803 = vector.load %arg23[%c0_236, %c0_237] : memref<256x191xf32, #tpu.memory_space<vmem>>, vector<256x191xf32>
    %cst_238 = arith.constant dense<0.000000e+00> : vector<1x191xf32>
    %804 = tpu.matmul %788, %803, %cst_238 {dimension_numbers = #tpu.dot_dimension_numbers<[1], [0], [0], [1], [0, 0, 1, 1], [], []>} : vector<1x256xf32>, vector<256x191xf32>, vector<1x191xf32> -> vector<1x191xf32>
    %805 = arith.addf %802, %804 : vector<1x191xf32>
    %c0_239 = arith.constant 0 : index
    %c0_240 = arith.constant 0 : index
    %806 = vector.load %arg24[%c0_239, %c0_240] : memref<1x191xf32, #tpu.memory_space<vmem>>, vector<1x191xf32>
    %807 = arith.addf %805, %806 : vector<1x191xf32>
    %cst_241 = arith.constant 0.000000e+00 : f32
    %808 = vector.broadcast %cst_241 : f32 to vector<1x191xf32>
    %809 = arith.maximumf %807, %808 : vector<1x191xf32>
    %c0_242 = arith.constant 0 : index
    %c0_243 = arith.constant 0 : index
    %810 = vector.load %arg25[%c0_242, %c0_243] : memref<191x43xf32, #tpu.memory_space<vmem>>, vector<191x43xf32>
    %cst_244 = arith.constant dense<0.000000e+00> : vector<1x43xf32>
    %811 = tpu.matmul %809, %810, %cst_244 {dimension_numbers = #tpu.dot_dimension_numbers<[1], [0], [0], [1], [0, 0, 1, 1], [], []>} : vector<1x191xf32>, vector<191x43xf32>, vector<1x43xf32> -> vector<1x43xf32>
    %c0_245 = arith.constant 0 : index
    %c0_246 = arith.constant 0 : index
    %812 = vector.load %arg26[%c0_245, %c0_246] : memref<1x43xf32, #tpu.memory_space<vmem>>, vector<1x43xf32>
    %813 = arith.addf %811, %812 : vector<1x43xf32>
    %cst_247 = arith.constant 0.000000e+00 : f32
    %814 = vector.broadcast %cst_247 : f32 to vector<1x43xf32>
    %815 = arith.maximumf %813, %814 : vector<1x43xf32>
    %c0_248 = arith.constant 0 : index
    %c0_249 = arith.constant 0 : index
    %816 = vector.load %arg27[%c0_248, %c0_249] : memref<43x10xf32, #tpu.memory_space<vmem>>, vector<43x10xf32>
    %cst_250 = arith.constant dense<0.000000e+00> : vector<1x10xf32>
    %817 = tpu.matmul %815, %816, %cst_250 {dimension_numbers = #tpu.dot_dimension_numbers<[1], [0], [0], [1], [0, 0, 1, 1], [], []>} : vector<1x43xf32>, vector<43x10xf32>, vector<1x10xf32> -> vector<1x10xf32>
    %c0_251 = arith.constant 0 : index
    %c0_252 = arith.constant 0 : index
    %818 = vector.load %arg28[%c0_251, %c0_252] : memref<1x10xf32, #tpu.memory_space<vmem>>, vector<1x10xf32>
    %819 = arith.addf %817, %818 : vector<1x10xf32>
    %cst_253 = arith.constant dense<0xFF800000> : vector<1xf32>
    %820 = vector.multi_reduction <maximumf>, %819, %cst_253 [1] : vector<1x10xf32> to vector<1xf32>
    %821 = vector.shape_cast %820 : vector<1xf32> to vector<1x1xf32>
    %822 = vector.broadcast %821 : vector<1x1xf32> to vector<1x10xf32>
    %823 = arith.subf %819, %822 : vector<1x10xf32>
    %824 = math.exp %823 : vector<1x10xf32>
    %cst_254 = arith.constant dense<0.000000e+00> : vector<1xf32>
    %825 = vector.multi_reduction <add>, %824, %cst_254 [1] : vector<1x10xf32> to vector<1xf32>
    %826 = vector.shape_cast %825 : vector<1xf32> to vector<1x1xf32>
    %827 = math.log %826 : vector<1x1xf32>
    %828 = vector.broadcast %827 : vector<1x1xf32> to vector<1x10xf32>
    %829 = arith.subf %823, %828 : vector<1x10xf32>
    %c1_255 = arith.constant 1 : index
    %c0_256 = arith.constant 0 : index
    %830 = vector.load %arg29[%c1_255, %c0_256] : memref<2x10xf32, #tpu.memory_space<vmem>>, vector<1x10xf32>
    tpu.vector_store %arg29[%c1_255, %c0_256], %829 {strides = array<i32>} : memref<2x10xf32, #tpu.memory_space<vmem>>, vector<1x10xf32>,
    return
  }
}

</mosaic_0001>

<llo_original>
// kernel: sdgraph_cls_forward.1
$region0: #{sdgraph_cls_forward.1}
  #allocation0 [shape = 'u32[]', space=smem, size = 0x4, offset = 0x4, fixed_abs, tag = 'smem constant byte address 0x4 - core index']
  #allocation1 [shape = 'u32[144,128]{1,0:T(1,128)}', space=vmem, size = 0x12000, scoped, tag = 'internal scratch']
  #allocation2 [shape = 'f32[8,24]{1,0:T(8,128)}', space=vmem, size = 0x1000, scoped, tag = 'scratch operand']
  #allocation3 [shape = 'f32[8,16]{1,0:T(8,128)}', space=vmem, size = 0x1000, scoped, tag = 'scratch operand']
  #allocation4 [shape = 'f32[32,64]{1,0:T(8,128)}', space=vmem, size = 0x4000, scoped, tag = 'scratch operand']
  #allocation5 [shape = 'f32[8,64]{1,0:T(8,128)}', space=vmem, size = 0x1000, scoped, tag = 'scratch operand']
  #allocation6 [shape = 'f32[16,256]{1,0:T(8,128)}', space=vmem, size = 0x4000, scoped, tag = 'scratch operand']
  %s0 = inlined_call_operand.smem [shape: u32[30], index: -1, kind: input, shape index: {}]
  %s1 = sld [smem:[%s0]]
  %s2 = scalar_lea.smem %s0, 1
  %s3 = sld [smem:[%s2]]
  %s4 = scalar_lea.smem %s0, 2
  %s5 = sld [smem:[%s4]]
  %s6 = scalar_lea.smem %s0, 3
  %s7 = sld [smem:[%s6]]
  %s8 = scalar_lea.smem %s0, 4
  %s9 = sld [smem:[%s8]]
  %s10 = scalar_lea.smem %s0, 5
  %s11 = sld [smem:[%s10]]
  %s12 = scalar_lea.smem %s0, 6
  %s13 = sld [smem:[%s12]]
  %s14 = scalar_lea.smem %s0, 7
  %s15 = sld [smem:[%s14]]
  %s16 = scalar_lea.smem %s0, 8
  %s17 = sld [smem:[%s16]]
  %s18 = scalar_lea.smem %s0, 9
  %s19 = sld [smem:[%s18]]
  %s20 = scalar_lea.smem %s0, 10
  %s21 = sld [smem:[%s20]]
  %s22 = scalar_lea.smem %s0, 11
  %s23 = sld [smem:[%s22]]
  %s24 = scalar_lea.smem %s0, 12
  %s25 = sld [smem:[%s24]]
  %s26 = scalar_lea.smem %s0, 13
  %s27 = sld [smem:[%s26]]
  %s28 = scalar_lea.smem %s0, 14
  %s29 = sld [smem:[%s28]]
  %s30 = scalar_lea.smem %s0, 15
  %s31 = sld [smem:[%s30]]
  %s32 = scalar_lea.smem %s0, 16
  %s33 = sld [smem:[%s32]]
  %s34 = scalar_lea.smem %s0, 17
  %s35 = sld [smem:[%s34]]
  %s36 = scalar_lea.smem %s0, 18
  %s37 = sld [smem:[%s36]]
  %s38 = scalar_lea.smem %s0, 19
  %s39 = sld [smem:[%s38]]
  %s40 = scalar_lea.smem %s0, 20
  %s41 = sld [smem:[%s40]]
  %s42 = scalar_lea.smem %s0, 21
  %s43 = sld [smem:[%s42]]
  %s44 = scalar_lea.smem %s0, 22
  %s45 = sld [smem:[%s44]]
  %s46 = scalar_lea.smem %s0, 23
  %s47 = sld [smem:[%s46]]
  %s48 = scalar_lea.smem %s0, 24
  %s49 = sld [smem:[%s48]]
  %s50 = scalar_lea.smem %s0, 25
  %s51 = sld [smem:[%s50]]
  %s52 = scalar_lea.smem %s0, 26
  %s53 = sld [smem:[%s52]]
  %s54 = scalar_lea.smem %s0, 27
  %s55 = sld [smem:[%s54]]
  %s56 = scalar_lea.smem %s0, 28
  %s57 = sld [smem:[%s56]]
  %s58 = scalar_lea.smem %s0, 29
  %s59 = sld [smem:[%s58]]
  %s60 = sld [smem:[#allocation0]]
  $region126: #{sdgraph_cls_forward.1} parent=0
    _
  %s62 = ssub.s32 1, %s60
  %s63 = scalar_select 0, %s62, %s60
  $region1: #{sdgraph_cls_forward.1} parent=0
    #allocation7 [shape = 'u8[1024]{0}', space=vmem, size = 0x400, scoped, tag = 'output window, operand 0, single buffered']
    #allocation8 [shape = 's32[1]{0}', space=sflag, size = 0x4, scoped, tag = 'scoped memory for sdgraph_cls_forward.1']
    %64 = vsyncpa [#allocation8], 0
    // Predicated region
    $region2: #{sdgraph_cls_forward.1} parent=1 // pred_check
      _
    $region3: #{sdgraph_cls_forward.1} parent=1 // pred_check_branch
      %66 = sbr.rel (0) target = $region5
    $region4: #{sdgraph_cls_forward.1} parent=1 // pred_region
      _
    $region5: #{sdgraph_cls_forward.1} parent=1 // pred_fallthru
      _
    // Predicated region
    $region6: #{sdgraph_cls_forward.1} parent=1 // pred_check
      _
    $region7: #{sdgraph_cls_forward.1} parent=1 // pred_check_branch
      %68 = sbr.rel (0) target = $region9
    $region8: #{sdgraph_cls_forward.1} parent=1 // pred_region
      _
    $region9: #{sdgraph_cls_forward.1} parent=1 // pred_fallthru
      _
    // Predicated region
    $region10: #{sdgraph_cls_forward.1} parent=1 // pred_check
      _
    $region11: #{sdgraph_cls_forward.1} parent=1 // pred_check_branch
      %70 = sbr.rel (0) target = $region13
    $region12: #{sdgraph_cls_forward.1} parent=1 // pred_region
      _
    $region13: #{sdgraph_cls_forward.1} parent=1 // pred_fallthru
      _
    // Predicated region
    $region14: #{sdgraph_cls_forward.1} parent=1 // pred_check
      _
    $region15: #{sdgraph_cls_forward.1} parent=1 // pred_check_branch
      %72 = sbr.rel (0) target = $region17
    $region16: #{sdgraph_cls_forward.1} parent=1 // pred_region
      _
    $region17: #{sdgraph_cls_forward.1} parent=1 // pred_fallthru
      _
    // Predicated region
    $region18: #{sdgraph_cls_forward.1} parent=1 // pred_check
      _
    $region19: #{sdgraph_cls_forward.1} parent=1 // pred_check_branch
      %74 = sbr.rel (0) target = $region21
    $region20: #{sdgraph_cls_forward.1} parent=1 // pred_region
      _
    $region21: #{sdgraph_cls_forward.1} parent=1 // pred_fallthru
      _
    // Predicated region
    $region22: #{sdgraph_cls_forward.1} parent=1 // pred_check
      _
    $region23: #{sdgraph_cls_forward.1} parent=1 // pred_check_branch
      %76 = sbr.rel (0) target = $region25
    $region24: #{sdgraph_cls_forward.1} parent=1 // pred_region
      _
    $region25: #{sdgraph_cls_forward.1} parent=1 // pred_fallthru
      _
    // Predicated region
    $region26: #{sdgraph_cls_forward.1} parent=1 // pred_check
      _
    $region27: #{sdgraph_cls_forward.1} parent=1 // pred_check_branch
      %78 = sbr.rel (0) target = $region29
    $region28: #{sdgraph_cls_forward.1} parent=1 // pred_region
      _
    $region29: #{sdgraph_cls_forward.1} parent=1 // pred_fallthru
      _
    // Predicated region
    $region30: #{sdgraph_cls_forward.1} parent=1 // pred_check
      _
    $region31: #{sdgraph_cls_forward.1} parent=1 // pred_check_branch
      %80 = sbr.rel (0) target = $region33
    $region32: #{sdgraph_cls_forward.1} parent=1 // pred_region
      _
    $region33: #{sdgraph_cls_forward.1} parent=1 // pred_fallthru
      _
    // Predicated region
    $region34: #{sdgraph_cls_forward.1} parent=1 // pred_check
      _
    $region35: #{sdgraph_cls_forward.1} parent=1 // pred_check_branch
      %82 = sbr.rel (0) target = $region37
    $region36: #{sdgraph_cls_forward.1} parent=1 // pred_region
      _
    $region37: #{sdgraph_cls_forward.1} parent=1 // pred_fallthru
      _
    // Predicated region
    $region38: #{sdgraph_cls_forward.1} parent=1 // pred_check
      _
    $region39: #{sdgraph_cls_forward.1} parent=1 // pred_check_branch
      %84 = sbr.rel (0) target = $region41
    $region40: #{sdgraph_cls_forward.1} parent=1 // pred_region
      _
    $region41: #{sdgraph_cls_forward.1} parent=1 // pred_fallthru
      _
    // Predicated region
    $region42: #{sdgraph_cls_forward.1} parent=1 // pred_check
      _
    $region43: #{sdgraph_cls_forward.1} parent=1 // pred_check_branch
      %86 = sbr.rel (0) target = $region45
    $region44: #{sdgraph_cls_forward.1} parent=1 // pred_region
      _
    $region45: #{sdgraph_cls_forward.1} parent=1 // pred_fallthru
      _
    // Predicated region
    $region46: #{sdgraph_cls_forward.1} parent=1 // pred_check
      _
    $region47: #{sdgraph_cls_forward.1} parent=1 // pred_check_branch
      %88 = sbr.rel (0) target = $region49
    $region48: #{sdgraph_cls_forward.1} parent=1 // pred_region
      _
    $region49: #{sdgraph_cls_forward.1} parent=1 // pred_fallthru
      _
    // Predicated region
    $region50: #{sdgraph_cls_forward.1} parent=1 // pred_check
      _
    $region51: #{sdgraph_cls_forward.1} parent=1 // pred_check_branch
      %90 = sbr.rel (0) target = $region53
    $region52: #{sdgraph_cls_forward.1} parent=1 // pred_region
      _
    $region53: #{sdgraph_cls_forward.1} parent=1 // pred_fallthru
      _
    // Predicated region
    $region54: #{sdgraph_cls_forward.1} parent=1 // pred_check
      _
    $region55: #{sdgraph_cls_forward.1} parent=1 // pred_check_branch
      %92 = sbr.rel (0) target = $region57
    $region56: #{sdgraph_cls_forward.1} parent=1 // pred_region
      _
    $region57: #{sdgraph_cls_forward.1} parent=1 // pred_fallthru
      _
    // Predicated region
    $region58: #{sdgraph_cls_forward.1} parent=1 // pred_check
      _
    $region59: #{sdgraph_cls_forward.1} parent=1 // pred_check_branch
      %94 = sbr.rel (0) target = $region61
    $region60: #{sdgraph_cls_forward.1} parent=1 // pred_region
      _
    $region61: #{sdgraph_cls_forward.1} parent=1 // pred_fallthru
      _
    // Predicated region
    $region62: #{sdgraph_cls_forward.1} parent=1 // pred_check
      _
    $region63: #{sdgraph_cls_forward.1} parent=1 // pred_check_branch
      %96 = sbr.rel (0) target = $region65
    $region64: #{sdgraph_cls_forward.1} parent=1 // pred_region
      _
    $region65: #{sdgraph_cls_forward.1} parent=1 // pred_fallthru
      _
    // Predicated region
    $region66: #{sdgraph_cls_forward.1} parent=1 // pred_check
      _
    $region67: #{sdgraph_cls_forward.1} parent=1 // pred_check_branch
      %98 = sbr.rel (0) target = $region69
    $region68: #{sdgraph_cls_forward.1} parent=1 // pred_region
      _
    $region69: #{sdgraph_cls_forward.1} parent=1 // pred_fallthru
      _
    // Predicated region
    $region70: #{sdgraph_cls_forward.1} parent=1 // pred_check
      _
    $region71: #{sdgraph_cls_forward.1} parent=1 // pred_check_branch
      %100 = sbr.rel (0) target = $region73
    $region72: #{sdgraph_cls_forward.1} parent=1 // pred_region
      _
    $region73: #{sdgraph_cls_forward.1} parent=1 // pred_fallthru
      _
    // Predicated region
    $region74: #{sdgraph_cls_forward.1} parent=1 // pred_check
      _
    $region75: #{sdgraph_cls_forward.1} parent=1 // pred_check_branch
      %102 = sbr.rel (0) target = $region77
    $region76: #{sdgraph_cls_forward.1} parent=1 // pred_region
      _
    $region77: #{sdgraph_cls_forward.1} parent=1 // pred_fallthru
      _
    // Predicated region
    $region78: #{sdgraph_cls_forward.1} parent=1 // pred_check
      _
    $region79: #{sdgraph_cls_forward.1} parent=1 // pred_check_branch
      %104 = sbr.rel (0) target = $region81
    $region80: #{sdgraph_cls_forward.1} parent=1 // pred_region
      _
    $region81: #{sdgraph_cls_forward.1} parent=1 // pred_fallthru
      _
    // Predicated region
    $region82: #{sdgraph_cls_forward.1} parent=1 // pred_check
      _
    $region83: #{sdgraph_cls_forward.1} parent=1 // pred_check_branch
      %106 = sbr.rel (0) target = $region85
    $region84: #{sdgraph_cls_forward.1} parent=1 // pred_region
      _
    $region85: #{sdgraph_cls_forward.1} parent=1 // pred_fallthru
      _
    // Predicated region
    $region86: #{sdgraph_cls_forward.1} parent=1 // pred_check
      _
    $region87: #{sdgraph_cls_forward.1} parent=1 // pred_check_branch
      %108 = sbr.rel (0) target = $region89
    $region88: #{sdgraph_cls_forward.1} parent=1 // pred_region
      _
    $region89: #{sdgraph_cls_forward.1} parent=1 // pred_fallthru
      _
    // Predicated region
    $region90: #{sdgraph_cls_forward.1} parent=1 // pred_check
      _
    $region91: #{sdgraph_cls_forward.1} parent=1 // pred_check_branch
      %110 = sbr.rel (0) target = $region93
    $region92: #{sdgraph_cls_forward.1} parent=1 // pred_region
      _
    $region93: #{sdgraph_cls_forward.1} parent=1 // pred_fallthru
      _
    // Predicated region
    $region94: #{sdgraph_cls_forward.1} parent=1 // pred_check
      _
    $region95: #{sdgraph_cls_forward.1} parent=1 // pred_check_branch
      %112 = sbr.rel (0) target = $region97
    $region96: #{sdgraph_cls_forward.1} parent=1 // pred_region
      _
    $region97: #{sdgraph_cls_forward.1} parent=1 // pred_fallthru
      _
    // Predicated region
    $region98: #{sdgraph_cls_forward.1} parent=1 // pred_check
      _
    $region99: #{sdgraph_cls_forward.1} parent=1 // pred_check_branch
      %114 = sbr.rel (0) target = $region101
    $region100: #{sdgraph_cls_forward.1} parent=1 // pred_region
      _
    $region101: #{sdgraph_cls_forward.1} parent=1 // pred_fallthru
      _
    // Predicated region
    $region102: #{sdgraph_cls_forward.1} parent=1 // pred_check
      _
    $region103: #{sdgraph_cls_forward.1} parent=1 // pred_check_branch
      %116 = sbr.rel (0) target = $region105
    $region104: #{sdgraph_cls_forward.1} parent=1 // pred_region
      _
    $region105: #{sdgraph_cls_forward.1} parent=1 // pred_fallthru
      _
    // Predicated region
    $region106: #{sdgraph_cls_forward.1} parent=1 // pred_check
      _
    $region107: #{sdgraph_cls_forward.1} parent=1 // pred_check_branch
      %118 = sbr.rel (0) target = $region109
    $region108: #{sdgraph_cls_forward.1} parent=1 // pred_region
      _
    $region109: #{sdgraph_cls_forward.1} parent=1 // pred_fallthru
      _
    // Predicated region
    $region110: #{sdgraph_cls_forward.1} parent=1 // pred_check
      _
    $region111: #{sdgraph_cls_forward.1} parent=1 // pred_check_branch
      %120 = sbr.rel (0) target = $region113
    $region112: #{sdgraph_cls_forward.1} parent=1 // pred_region
      _
    $region113: #{sdgraph_cls_forward.1} parent=1 // pred_fallthru
      _
    // Predicated region
    $region114: #{sdgraph_cls_forward.1} parent=1 // pred_check
      _
    $region115: #{sdgraph_cls_forward.1} parent=1 // pred_check_branch
      %122 = sbr.rel (0) target = $region117
    $region116: #{sdgraph_cls_forward.1} parent=1 // pred_region
      _
    $region117: #{sdgraph_cls_forward.1} parent=1 // pred_fallthru
      _
    %v123 = vld [vmem:[%s1] sm:$0xff]
    %v124 = vld [vmem:[%s1 + $0x8] sm:$0xff]
    %v125 = vld [vmem:[%s1 + $0x10] sm:$0xff]
    %v126 = vld [vmem:[%s1 + $0x18] sm:$0xff]
    %v127 = vld [vmem:[%s1 + $0x20] sm:$0xff]
    %v128 = vld [vmem:[%s1 + $0x28] sm:$0xff]
    %v129 = vld [vmem:[%s1 + $0x30] sm:$0xff]
    %v130 = vld [vmem:[%s1 + $0x38] sm:$0xff]
    %v131 = vld [vmem:[%s3] sm:$0xff]
    %v132 = vld [vmem:[%s3 + $0x8] sm:$0xff]
    %v133 = vld [vmem:[%s3 + $0x10] sm:$0xff]
    %v134 = vld [vmem:[%s3 + $0x18] sm:$0xff]
    %v135 = vld [vmem:[%s3 + $0x20] sm:$0xff]
    %v136 = vld [vmem:[%s3 + $0x28] sm:$0xff]
    %v137 = vld [vmem:[%s3 + $0x30] sm:$0xff]
    %v138 = vld [vmem:[%s3 + $0x38] sm:$0xff]
    %v139 = vld [vmem:[%s5] sm:$0x3]
    %141 = vset.pattern.permute.xlu0 0
    %142 = vperm.xlu0 %141, %v123
    %v143 = vpop.permute.xlu0 %142
    %146 = vset.pattern.permute.xlu0 0
    %147 = vperm.xlu0 %146, %v124
    %v148 = vpop.permute.xlu0 %147
    %151 = vset.pattern.permute.xlu0 0
    %152 = vperm.xlu0 %151, %v125
    %v153 = vpop.permute.xlu0 %152
    %156 = vset.pattern.permute.xlu0 0
    %157 = vperm.xlu0 %156, %v126
    %v158 = vpop.permute.xlu0 %157
    %161 = vset.pattern.permute.xlu0 0
    %162 = vperm.xlu0 %161, %v127
    %v163 = vpop.permute.xlu0 %162
    %166 = vset.pattern.permute.xlu0 0
    %167 = vperm.xlu0 %166, %v128
    %v168 = vpop.permute.xlu0 %167
    %171 = vset.pattern.permute.xlu0 0
    %172 = vperm.xlu0 %171, %v129
    %v173 = vpop.permute.xlu0 %172
    %176 = vset.pattern.permute.xlu0 0
    %177 = vperm.xlu0 %176, %v130
    %v178 = vpop.permute.xlu0 %177
    %v180 = vlaneseq
    %v181 = vshrl.u32 %v180, 7
    %v182 = vsub.s32 0, %v181
    %v183 = vrot.slane %v139, %v182
    %v184 = vmul.f32 %v143, %v183
    %v185 = vmul.f32 %v148, %v183
    %v186 = vmul.f32 %v153, %v183
    %v187 = vmul.f32 %v158, %v183
    %v188 = vmul.f32 %v163, %v183
    %v189 = vmul.f32 %v168, %v183
    %v190 = vmul.f32 %v173, %v183
    %v191 = vmul.f32 %v178, %v183
    %193 = vset.pattern.permute.xlu0 0
    %194 = vperm.xlu0 %193, %v131
    %v195 = vpop.permute.xlu0 %194
    %198 = vset.pattern.permute.xlu0 0
    %199 = vperm.xlu0 %198, %v132
    %v200 = vpop.permute.xlu0 %199
    %203 = vset.pattern.permute.xlu0 0
    %204 = vperm.xlu0 %203, %v133
    %v205 = vpop.permute.xlu0 %204
    %208 = vset.pattern.permute.xlu0 0
    %209 = vperm.xlu0 %208, %v134
    %v210 = vpop.permute.xlu0 %209
    %213 = vset.pattern.permute.xlu0 0
    %214 = vperm.xlu0 %213, %v135
    %v215 = vpop.permute.xlu0 %214
    %218 = vset.pattern.permute.xlu0 0
    %219 = vperm.xlu0 %218, %v136
    %v220 = vpop.permute.xlu0 %219
    %223 = vset.pattern.permute.xlu0 0
    %224 = vperm.xlu0 %223, %v137
    %v225 = vpop.permute.xlu0 %224
    %228 = vset.pattern.permute.xlu0 0
    %229 = vperm.xlu0 %228, %v138
    %v230 = vpop.permute.xlu0 %229
    %v232 = vlaneseq
    %v233 = vshrl.u32 %v232, 7
    %v234 = vsub.s32 1, %v233
    %v235 = vrot.slane %v139, %v234
    %v236 = vmul.f32 %v195, %v235
    %v237 = vmul.f32 %v200, %v235
    %v238 = vmul.f32 %v205, %v235
    %v239 = vmul.f32 %v210, %v235
    %v240 = vmul.f32 %v215, %v235
    %v241 = vmul.f32 %v220, %v235
    %v242 = vmul.f32 %v225, %v235
    %v243 = vmul.f32 %v230, %v235
    %v244 = vadd.f32 %v184, %v236
    %v245 = vadd.f32 %v185, %v237
    %v246 = vadd.f32 %v186, %v238
    %v247 = vadd.f32 %v187, %v239
    %v248 = vadd.f32 %v188, %v240
    %v249 = vadd.f32 %v189, %v241
    %v250 = vadd.f32 %v190, %v242
    %v251 = vadd.f32 %v191, %v243
    %v252 = vld [vmem:[%s7] sm:$0x1]
    %v254 = vlaneseq
    %v255 = vshrl.u32 %v254, 7
    %v256 = vsub.s32 0, %v255
    %v257 = vrot.slane %v252, %v256
    %v259 = vadd.f32 %v244, %v257
    %v260 = vadd.f32 %v245, %v257
    %v261 = vadd.f32 %v246, %v257
    %v262 = vadd.f32 %v247, %v257
    %v263 = vadd.f32 %v248, %v257
    %v264 = vadd.f32 %v249, %v257
    %v265 = vadd.f32 %v250, %v257
    %v266 = vadd.f32 %v251, %v257
    %v267 = vmax.f32 %v259, 0.0
    %v268 = vmax.f32 %v260, 0.0
    %v269 = vmax.f32 %v261, 0.0
    %v270 = vmax.f32 %v262, 0.0
    %v271 = vmax.f32 %v263, 0.0
    %v272 = vmax.f32 %v264, 0.0
    %v273 = vmax.f32 %v265, 0.0
    %v274 = vmax.f32 %v266, 0.0
    %v275 = vld [vmem:[%s9] sm:$0x3]
    %v276 = vlaneseq
    %v277 = vshrl.u32 %v276, 7
    %v278 = vsub.s32 0, %v277
    %v279 = vrot.slane %v275, %v278
    %v280 = vmul.f32 %v143, %v279
    %v281 = vmul.f32 %v148, %v279
    %v282 = vmul.f32 %v153, %v279
    %v283 = vmul.f32 %v158, %v279
    %v284 = vmul.f32 %v163, %v279
    %v285 = vmul.f32 %v168, %v279
    %v286 = vmul.f32 %v173, %v279
    %v287 = vmul.f32 %v178, %v279
    %v288 = vlaneseq
    %v289 = vshrl.u32 %v288, 7
    %v290 = vsub.s32 1, %v289
    %v291 = vrot.slane %v275, %v290
    %v292 = vmul.f32 %v195, %v291
    %v293 = vmul.f32 %v200, %v291
    %v294 = vmul.f32 %v205, %v291
    %v295 = vmul.f32 %v210, %v291
    %v296 = vmul.f32 %v215, %v291
    %v297 = vmul.f32 %v220, %v291
    %v298 = vmul.f32 %v225, %v291
    %v299 = vmul.f32 %v230, %v291
    %v300 = vadd.f32 %v280, %v292
    %v301 = vadd.f32 %v281, %v293
    %v302 = vadd.f32 %v282, %v294
    %v303 = vadd.f32 %v283, %v295
    %v304 = vadd.f32 %v284, %v296
    %v305 = vadd.f32 %v285, %v297
    %v306 = vadd.f32 %v286, %v298
    %v307 = vadd.f32 %v287, %v299
    %v308 = vld [vmem:[%s11] sm:$0x1]
    %v310 = vlaneseq
    %v311 = vshrl.u32 %v310, 7
    %v312 = vsub.s32 0, %v311
    %v313 = vrot.slane %v308, %v312
    %v315 = vadd.f32 %v300, %v313
    %v316 = vadd.f32 %v301, %v313
    %v317 = vadd.f32 %v302, %v313
    %v318 = vadd.f32 %v303, %v313
    %v319 = vadd.f32 %v304, %v313
    %v320 = vadd.f32 %v305, %v313
    %v321 = vadd.f32 %v306, %v313
    %v322 = vadd.f32 %v307, %v313
    %v323 = vmax.f32 %v315, 0.0
    %v324 = vmax.f32 %v316, 0.0
    %v325 = vmax.f32 %v317, 0.0
    %v326 = vmax.f32 %v318, 0.0
    %v327 = vmax.f32 %v319, 0.0
    %v328 = vmax.f32 %v320, 0.0
    %v329 = vmax.f32 %v321, 0.0
    %v330 = vmax.f32 %v322, 0.0
    %v332 = vrot.slane %v267, 4
    %v334 = vmax.f32 %v267, %v332
    %v336 = vrot.slane %v334, 2
    %v338 = vmax.f32 %v334, %v336
    %v340 = vrot.slane %v338, 1
    %v342 = vmax.f32 %v338, %v340
    %vm343 = vcmask 188416
    %344 = vst.msk [vmem:[#allocation2] sm:$0x1] %vm343, %v342
    %v346 = vrot.slane %v268, 4
    %v348 = vmax.f32 %v268, %v346
    %v350 = vrot.slane %v348, 2
    %v352 = vmax.f32 %v348, %v350
    %v354 = vrot.slane %v352, 1
    %v356 = vmax.f32 %v352, %v354
    %357 = vst.msk [vmem:[#allocation2 + $0x1] sm:$0x1] %vm343, %v356
    %v359 = vrot.slane %v269, 4
    %v361 = vmax.f32 %v269, %v359
    %v363 = vrot.slane %v361, 2
    %v365 = vmax.f32 %v361, %v363
    %v367 = vrot.slane %v365, 1
    %v369 = vmax.f32 %v365, %v367
    %370 = vst.msk [vmem:[#allocation2 + $0x2] sm:$0x1] %vm343, %v369
    %v372 = vrot.slane %v270, 4
    %v374 = vmax.f32 %v270, %v372
    %v376 = vrot.slane %v374, 2
    %v378 = vmax.f32 %v374, %v376
    %v380 = vrot.slane %v378, 1
    %v382 = vmax.f32 %v378, %v380
    %383 = vst.msk [vmem:[#allocation2 + $0x3] sm:$0x1] %vm343, %v382
    %v385 = vrot.slane %v271, 4
    %v387 = vmax.f32 %v271, %v385
    %v389 = vrot.slane %v387, 2
    %v391 = vmax.f32 %v387, %v389
    %v393 = vrot.slane %v391, 1
    %v395 = vmax.f32 %v391, %v393
    %396 = vst.msk [vmem:[#allocation2 + $0x4] sm:$0x1] %vm343, %v395
    %v398 = vrot.slane %v272, 4
    %v400 = vmax.f32 %v272, %v398
    %v402 = vrot.slane %v400, 2
    %v404 = vmax.f32 %v400, %v402
    %v406 = vrot.slane %v404, 1
    %v408 = vmax.f32 %v404, %v406
    %409 = vst.msk [vmem:[#allocation2 + $0x5] sm:$0x1] %vm343, %v408
    %v411 = vrot.slane %v273, 4
    %v413 = vmax.f32 %v273, %v411
    %v415 = vrot.slane %v413, 2
    %v417 = vmax.f32 %v413, %v415
    %v419 = vrot.slane %v417, 1
    %v421 = vmax.f32 %v417, %v419
    %422 = vst.msk [vmem:[#allocation2 + $0x6] sm:$0x1] %vm343, %v421
    %v424 = vrot.slane %v274, 4
    %v426 = vmax.f32 %v274, %v424
    %v428 = vrot.slane %v426, 2
    %v430 = vmax.f32 %v426, %v428
    %v432 = vrot.slane %v430, 1
    %v434 = vmax.f32 %v430, %v432
    %435 = vst.msk [vmem:[#allocation2 + $0x7] sm:$0x1] %vm343, %v434
    %v437 = vrot.slane %v323, 4
    %v439 = vmax.f32 %v323, %v437
    %v441 = vrot.slane %v439, 2
    %v443 = vmax.f32 %v439, %v441
    %v445 = vrot.slane %v443, 1
    %v447 = vmax.f32 %v443, %v445
    %vm448 = vcmask 122880
    %449 = vst.msk [vmem:[#allocation3] sm:$0x1] %vm448, %v447
    %v451 = vrot.slane %v324, 4
    %v453 = vmax.f32 %v324, %v451
    %v455 = vrot.slane %v453, 2
    %v457 = vmax.f32 %v453, %v455
    %v459 = vrot.slane %v457, 1
    %v461 = vmax.f32 %v457, %v459
    %462 = vst.msk [vmem:[#allocation3 + $0x1] sm:$0x1] %vm448, %v461
    %v464 = vrot.slane %v325, 4
    %v466 = vmax.f32 %v325, %v464
    %v468 = vrot.slane %v466, 2
    %v470 = vmax.f32 %v466, %v468
    %v472 = vrot.slane %v470, 1
    %v474 = vmax.f32 %v470, %v472
    %475 = vst.msk [vmem:[#allocation3 + $0x2] sm:$0x1] %vm448, %v474
    %v477 = vrot.slane %v326, 4
    %v479 = vmax.f32 %v326, %v477
    %v481 = vrot.slane %v479, 2
    %v483 = vmax.f32 %v479, %v481
    %v485 = vrot.slane %v483, 1
    %v487 = vmax.f32 %v483, %v485
    %488 = vst.msk [vmem:[#allocation3 + $0x3] sm:$0x1] %vm448, %v487
    %v490 = vrot.slane %v327, 4
    %v492 = vmax.f32 %v327, %v490
    %v494 = vrot.slane %v492, 2
    %v496 = vmax.f32 %v492, %v494
    %v498 = vrot.slane %v496, 1
    %v500 = vmax.f32 %v496, %v498
    %501 = vst.msk [vmem:[#allocation3 + $0x4] sm:$0x1] %vm448, %v500
    %v503 = vrot.slane %v328, 4
    %v505 = vmax.f32 %v328, %v503
    %v507 = vrot.slane %v505, 2
    %v509 = vmax.f32 %v505, %v507
    %v511 = vrot.slane %v509, 1
    %v513 = vmax.f32 %v509, %v511
    %514 = vst.msk [vmem:[#allocation3 + $0x5] sm:$0x1] %vm448, %v513
    %v516 = vrot.slane %v329, 4
    %v518 = vmax.f32 %v329, %v516
    %v520 = vrot.slane %v518, 2
    %v522 = vmax.f32 %v518, %v520
    %v524 = vrot.slane %v522, 1
    %v526 = vmax.f32 %v522, %v524
    %527 = vst.msk [vmem:[#allocation3 + $0x6] sm:$0x1] %vm448, %v526
    %v529 = vrot.slane %v330, 4
    %v531 = vmax.f32 %v330, %v529
    %v533 = vrot.slane %v531, 2
    %v535 = vmax.f32 %v531, %v533
    %v537 = vrot.slane %v535, 1
    %v539 = vmax.f32 %v535, %v537
    %540 = vst.msk [vmem:[#allocation3 + $0x7] sm:$0x1] %vm448, %v539
    %v541 = vld [vmem:[#allocation2] sm:$0xff]
    %v542 = vld [vmem:[#allocation3] sm:$0xff]
    %v543 = vld [vmem:[%s13] sm:$0xff]
    %v544 = vld [vmem:[%s13 + $0x8] sm:$0xff]
    %v545 = vld [vmem:[%s13 + $0x10] sm:$0xff]
    %v546 = vld [vmem:[%s15] sm:$0xff]
    %v547 = vld [vmem:[%s15 + $0x8] sm:$0xff]
    %vm548 = vcmask 130048
    %v550 = vsel %vm548, %v542, 0
    %552 = vmatprep.subr.mxu0 0.0
    %553 = vmatpush1.msra.mxu0 0.0
    %554 = vmatprep.subr.mxu0 0.0
    %555 = vmatpush1.msra.mxu0 0.0
    %556 = vmatprep.subr.mxu0 0.0
    %557 = vmatpush1.msra.mxu0 0.0
    %558 = vmatprep.subr.mxu0 0.0
    %559 = vmatpush1.msra.mxu0 0.0
    %560 = vmatprep.subr.mxu0 0.0
    %561 = vmatpush1.msra.mxu0 0.0
    %562 = vmatprep.subr.mxu0 0.0
    %563 = vmatpush1.msra.mxu0 0.0
    %564 = vmatprep.subr.mxu0 0.0
    %565 = vmatpush1.msra.mxu0 0.0
    %566 = vmatprep.subr.mxu0 0.0
    %567 = vmatpush1.msra.mxu0 0.0
    %568 = vmatprep.subr.mxu0 0.0
    %569 = vmatpush1.msra.mxu0 0.0
    %570 = vmatprep.subr.mxu0 0.0
    %571 = vmatpush1.msra.mxu0 0.0
    %572 = vmatprep.subr.mxu0 0.0
    %573 = vmatpush1.msra.mxu0 0.0
    %574 = vmatprep.subr.mxu0 0.0
    %575 = vmatpush1.msra.mxu0 0.0
    %576 = vmatprep.subr.mxu0 0.0
    %577 = vmatpush1.msra.mxu0 0.0
    %578 = vmatprep.subr.mxu0 0.0
    %579 = vmatpush1.msra.mxu0 0.0
    %580 = vmatprep.subr.mxu0 0.0
    %581 = vmatpush1.msra.mxu0 %v547
    %582 = vmatprep.subr.mxu0 0.0
    %583 = vmatpush1.msra.mxu0 %v546
    %584 = vmatprep.subr.mxu0 0.0
    %585 = vmatpush2.msra.mxu0 0.0
    %586 = vmatprep.subr.mxu0 0.0
    %587 = vmatpush2.msra.mxu0 0.0
    %588 = vmatprep.subr.mxu0 0.0
    %589 = vmatpush2.msra.mxu0 0.0
    %590 = vmatprep.subr.mxu0 0.0
    %591 = vmatpush2.msra.mxu0 0.0
    %592 = vmatprep.subr.mxu0 0.0
    %593 = vmatpush2.msra.mxu0 0.0
    %594 = vmatprep.subr.mxu0 0.0
    %595 = vmatpush2.msra.mxu0 0.0
    %596 = vmatprep.subr.mxu0 0.0
    %597 = vmatpush2.msra.mxu0 0.0
    %598 = vmatprep.subr.mxu0 0.0
    %599 = vmatpush2.msra.mxu0 0.0
    %600 = vmatprep.subr.mxu0 0.0
    %601 = vmatpush2.msra.mxu0 0.0
    %602 = vmatprep.subr.mxu0 0.0
    %603 = vmatpush2.msra.mxu0 0.0
    %604 = vmatprep.subr.mxu0 0.0
    %605 = vmatpush2.msra.mxu0 0.0
    %606 = vmatprep.subr.mxu0 0.0
    %607 = vmatpush2.msra.mxu0 0.0
    %608 = vmatprep.subr.mxu0 0.0
    %609 = vmatpush2.msra.mxu0 0.0
    %610 = vmatprep.subr.mxu0 0.0
    %611 = vmatpush2.msra.mxu0 0.0
    %612 = vmatprep.subr.mxu0 0.0
    %613 = vmatpush2.msra.mxu0 0.0
    %614 = vmatprep.subr.mxu0 0.0
    %615 = vmatpush2.msra.mxu0 0.0
    %616 = vmatprep.mubr.f32.mxu0 0.0
    %617 = vmatmul.mubr.f32.gmra.mxu0 %v550
    %v618 = vpop.f32.mrf.mxu0
    %v619 = vadd.f32 0.0, %v618
    %v620 = vpop.f32.mrf.mxu0
    %621 = vdwg.mxu0
    %vm622 = vcmask 195584
    %v624 = vsel %vm622, %v541, 0
    %626 = vmatprep.subr.mxu0 0.0
    %627 = vmatpush1.msra.mxu0 0.0
    %628 = vmatprep.subr.mxu0 0.0
    %629 = vmatpush1.msra.mxu0 0.0
    %630 = vmatprep.subr.mxu0 0.0
    %631 = vmatpush1.msra.mxu0 0.0
    %632 = vmatprep.subr.mxu0 0.0
    %633 = vmatpush1.msra.mxu0 0.0
    %634 = vmatprep.subr.mxu0 0.0
    %635 = vmatpush1.msra.mxu0 0.0
    %636 = vmatprep.subr.mxu0 0.0
    %637 = vmatpush1.msra.mxu0 0.0
    %638 = vmatprep.subr.mxu0 0.0
    %639 = vmatpush1.msra.mxu0 0.0
    %640 = vmatprep.subr.mxu0 0.0
    %641 = vmatpush1.msra.mxu0 0.0
    %642 = vmatprep.subr.mxu0 0.0
    %643 = vmatpush1.msra.mxu0 0.0
    %644 = vmatprep.subr.mxu0 0.0
    %645 = vmatpush1.msra.mxu0 0.0
    %646 = vmatprep.subr.mxu0 0.0
    %647 = vmatpush1.msra.mxu0 0.0
    %648 = vmatprep.subr.mxu0 0.0
    %649 = vmatpush1.msra.mxu0 0.0
    %650 = vmatprep.subr.mxu0 0.0
    %651 = vmatpush1.msra.mxu0 0.0
    %652 = vmatprep.subr.mxu0 0.0
    %653 = vmatpush1.msra.mxu0 %v545
    %654 = vmatprep.subr.mxu0 0.0
    %655 = vmatpush1.msra.mxu0 %v544
    %656 = vmatprep.subr.mxu0 0.0
    %657 = vmatpush1.msra.mxu0 %v543
    %658 = vmatprep.subr.mxu0 0.0
    %659 = vmatpush2.msra.mxu0 0.0
    %660 = vmatprep.subr.mxu0 0.0
    %661 = vmatpush2.msra.mxu0 0.0
    %662 = vmatprep.subr.mxu0 0.0
    %663 = vmatpush2.msra.mxu0 0.0
    %664 = vmatprep.subr.mxu0 0.0
    %665 = vmatpush2.msra.mxu0 0.0
    %666 = vmatprep.subr.mxu0 0.0
    %667 = vmatpush2.msra.mxu0 0.0
    %668 = vmatprep.subr.mxu0 0.0
    %669 = vmatpush2.msra.mxu0 0.0
    %670 = vmatprep.subr.mxu0 0.0
    %671 = vmatpush2.msra.mxu0 0.0
    %672 = vmatprep.subr.mxu0 0.0
    %673 = vmatpush2.msra.mxu0 0.0
    %674 = vmatprep.subr.mxu0 0.0
    %675 = vmatpush2.msra.mxu0 0.0
    %676 = vmatprep.subr.mxu0 0.0
    %677 = vmatpush2.msra.mxu0 0.0
    %678 = vmatprep.subr.mxu0 0.0
    %679 = vmatpush2.msra.mxu0 0.0
    %680 = vmatprep.subr.mxu0 0.0
    %681 = vmatpush2.msra.mxu0 0.0
    %682 = vmatprep.subr.mxu0 0.0
    %683 = vmatpush2.msra.mxu0 0.0
    %684 = vmatprep.subr.mxu0 0.0
    %685 = vmatpush2.msra.mxu0 0.0
    %686 = vmatprep.subr.mxu0 0.0
    %687 = vmatpush2.msra.mxu0 0.0
    %688 = vmatprep.subr.mxu0 0.0
    %689 = vmatpush2.msra.mxu0 0.0
    %690 = vmatprep.mubr.f32.mxu0 0.0
    %691 = vmatmul.mubr.f32.gmra.mxu0 %v624
    %v692 = vpop.f32.mrf.mxu0
    %v693 = vadd.f32 %v619, %v692
    %v694 = vpop.f32.mrf.mxu0
    %695 = vdwg.mxu0
    %v696 = vld [vmem:[%s17] sm:$0x1]
    %v698 = vlaneseq
    %v699 = vshrl.u32 %v698, 7
    %v700 = vsub.s32 0, %v699
    %v701 = vrot.slane %v696, %v700
    %v703 = vadd.f32 %v693, %v701
    %v704 = vmax.f32 %v703, 0.0
    %v705 = vld [vmem:[%s19] sm:$0xff]
    %v706 = vld [vmem:[%s19 + $0x8] sm:$0xff]
    %v707 = vsel %vm548, %v323, 0
    %v709 = vsel %vm548, %v324, 0
    %v711 = vsel %vm548, %v325, 0
    %v713 = vsel %vm548, %v326, 0
    %v715 = vsel %vm548, %v327, 0
    %v717 = vsel %vm548, %v328, 0
    %v719 = vsel %vm548, %v329, 0
    %v721 = vsel %vm548, %v330, 0
    %723 = vmatprep.subr.mxu0 0.0
    %724 = vmatpush1.msra.mxu0 0.0
    %725 = vmatprep.subr.mxu0 0.0
    %726 = vmatpush1.msra.mxu0 0.0
    %727 = vmatprep.subr.mxu0 0.0
    %728 = vmatpush1.msra.mxu0 0.0
    %729 = vmatprep.subr.mxu0 0.0
    %730 = vmatpush1.msra.mxu0 0.0
    %731 = vmatprep.subr.mxu0 0.0
    %732 = vmatpush1.msra.mxu0 0.0
    %733 = vmatprep.subr.mxu0 0.0
    %734 = vmatpush1.msra.mxu0 0.0
    %735 = vmatprep.subr.mxu0 0.0
    %736 = vmatpush1.msra.mxu0 0.0
    %737 = vmatprep.subr.mxu0 0.0
    %738 = vmatpush1.msra.mxu0 0.0
    %739 = vmatprep.subr.mxu0 0.0
    %740 = vmatpush1.msra.mxu0 0.0
    %741 = vmatprep.subr.mxu0 0.0
    %742 = vmatpush1.msra.mxu0 0.0
    %743 = vmatprep.subr.mxu0 0.0
    %744 = vmatpush1.msra.mxu0 0.0
    %745 = vmatprep.subr.mxu0 0.0
    %746 = vmatpush1.msra.mxu0 0.0
    %747 = vmatprep.subr.mxu0 0.0
    %748 = vmatpush1.msra.mxu0 0.0
    %749 = vmatprep.subr.mxu0 0.0
    %750 = vmatpush1.msra.mxu0 0.0
    %751 = vmatprep.subr.mxu0 0.0
    %752 = vmatpush1.msra.mxu0 %v706
    %753 = vmatprep.subr.mxu0 0.0
    %754 = vmatpush1.msra.mxu0 %v705
    %755 = vmatprep.subr.mxu0 0.0
    %756 = vmatpush2.msra.mxu0 0.0
    %757 = vmatprep.subr.mxu0 0.0
    %758 = vmatpush2.msra.mxu0 0.0
    %759 = vmatprep.subr.mxu0 0.0
    %760 = vmatpush2.msra.mxu0 0.0
    %761 = vmatprep.subr.mxu0 0.0
    %762 = vmatpush2.msra.mxu0 0.0
    %763 = vmatprep.subr.mxu0 0.0
    %764 = vmatpush2.msra.mxu0 0.0
    %765 = vmatprep.subr.mxu0 0.0
    %766 = vmatpush2.msra.mxu0 0.0
    %767 = vmatprep.subr.mxu0 0.0
    %768 = vmatpush2.msra.mxu0 0.0
    %769 = vmatprep.subr.mxu0 0.0
    %770 = vmatpush2.msra.mxu0 0.0
    %771 = vmatprep.subr.mxu0 0.0
    %772 = vmatpush2.msra.mxu0 0.0
    %773 = vmatprep.subr.mxu0 0.0
    %774 = vmatpush2.msra.mxu0 0.0
    %775 = vmatprep.subr.mxu0 0.0
    %776 = vmatpush2.msra.mxu0 0.0
    %777 = vmatprep.subr.mxu0 0.0
    %778 = vmatpush2.msra.mxu0 0.0
    %779 = vmatprep.subr.mxu0 0.0
    %780 = vmatpush2.msra.mxu0 0.0
    %781 = vmatprep.subr.mxu0 0.0
    %782 = vmatpush2.msra.mxu0 0.0
    %783 = vmatprep.subr.mxu0 0.0
    %784 = vmatpush2.msra.mxu0 0.0
    %785 = vmatprep.subr.mxu0 0.0
    %786 = vmatpush2.msra.mxu0 0.0
    %787 = vmatprep.mubr.f32.mxu0 0.0
    %788 = vmatmul.mubr.f32.gmra.mxu0 %v707
    %v789 = vpop.f32.mrf.mxu0
    %v790 = vadd.f32 0.0, %v789
    %v791 = vpop.f32.mrf.mxu0
    %792 = vmatprep.mubr.f32.mxu0 0.0
    %793 = vmatmul.mubr.f32.gmra.mxu0 %v709
    %v794 = vpop.f32.mrf.mxu0
    %v795 = vadd.f32 0.0, %v794
    %v796 = vpop.f32.mrf.mxu0
    %797 = vmatprep.mubr.f32.mxu0 0.0
    %798 = vmatmul.mubr.f32.gmra.mxu0 %v711
    %v799 = vpop.f32.mrf.mxu0
    %v800 = vadd.f32 0.0, %v799
    %v801 = vpop.f32.mrf.mxu0
    %802 = vmatprep.mubr.f32.mxu0 0.0
    %803 = vmatmul.mubr.f32.gmra.mxu0 %v713
    %v804 = vpop.f32.mrf.mxu0
    %v805 = vadd.f32 0.0, %v804
    %v806 = vpop.f32.mrf.mxu0
    %807 = vmatprep.mubr.f32.mxu0 0.0
    %808 = vmatmul.mubr.f32.gmra.mxu0 %v715
    %v809 = vpop.f32.mrf.mxu0
    %v810 = vadd.f32 0.0, %v809
    %v811 = vpop.f32.mrf.mxu0
    %812 = vmatprep.mubr.f32.mxu0 0.0
    %813 = vmatmul.mubr.f32.gmra.mxu0 %v717
    %v814 = vpop.f32.mrf.mxu0
    %v815 = vadd.f32 0.0, %v814
    %v816 = vpop.f32.mrf.mxu0
    %817 = vmatprep.mubr.f32.mxu0 0.0
    %818 = vmatmul.mubr.f32.gmra.mxu0 %v719
    %v819 = vpop.f32.mrf.mxu0
    %v820 = vadd.f32 0.0, %v819
    %v821 = vpop.f32.mrf.mxu0
    %822 = vmatprep.mubr.f32.mxu0 0.0
    %823 = vmatmul.mubr.f32.gmra.mxu0 %v721
    %v824 = vpop.f32.mrf.mxu0
    %v825 = vadd.f32 0.0, %v824
    %v826 = vpop.f32.mrf.mxu0
    %827 = vdwg.mxu0
    %v828 = vld [vmem:[%s21] sm:$0xff]
    %v829 = vld [vmem:[%s21 + $0x8] sm:$0xff]
    %v830 = vld [vmem:[%s21 + $0x10] sm:$0xff]
    %831 = vmatprep.subr.mxu0 0.0
    %832 = vmatpush1.msra.mxu0 0.0
    %833 = vmatprep.subr.mxu0 0.0
    %834 = vmatpush1.msra.mxu0 0.0
    %835 = vmatprep.subr.mxu0 0.0
    %836 = vmatpush1.msra.mxu0 0.0
    %837 = vmatprep.subr.mxu0 0.0
    %838 = vmatpush1.msra.mxu0 0.0
    %839 = vmatprep.subr.mxu0 0.0
    %840 = vmatpush1.msra.mxu0 0.0
    %841 = vmatprep.subr.mxu0 0.0
    %842 = vmatpush1.msra.mxu0 0.0
    %843 = vmatprep.subr.mxu0 0.0
    %844 = vmatpush1.msra.mxu0 0.0
    %845 = vmatprep.subr.mxu0 0.0
    %846 = vmatpush1.msra.mxu0 0.0
    %847 = vmatprep.subr.mxu0 0.0
    %848 = vmatpush1.msra.mxu0 0.0
    %849 = vmatprep.subr.mxu0 0.0
    %850 = vmatpush1.msra.mxu0 0.0
    %851 = vmatprep.subr.mxu0 0.0
    %852 = vmatpush1.msra.mxu0 0.0
    %853 = vmatprep.subr.mxu0 0.0
    %854 = vmatpush1.msra.mxu0 0.0
    %855 = vmatprep.subr.mxu0 0.0
    %856 = vmatpush1.msra.mxu0 0.0
    %857 = vmatprep.subr.mxu0 0.0
    %858 = vmatpush1.msra.mxu0 %v830
    %859 = vmatprep.subr.mxu0 0.0
    %860 = vmatpush1.msra.mxu0 %v829
    %861 = vmatprep.subr.mxu0 0.0
    %862 = vmatpush1.msra.mxu0 %v828
    %863 = vmatprep.subr.mxu0 0.0
    %864 = vmatpush2.msra.mxu0 0.0
    %865 = vmatprep.subr.mxu0 0.0
    %866 = vmatpush2.msra.mxu0 0.0
    %867 = vmatprep.subr.mxu0 0.0
    %868 = vmatpush2.msra.mxu0 0.0
    %869 = vmatprep.subr.mxu0 0.0
    %870 = vmatpush2.msra.mxu0 0.0
    %871 = vmatprep.subr.mxu0 0.0
    %872 = vmatpush2.msra.mxu0 0.0
    %873 = vmatprep.subr.mxu0 0.0
    %874 = vmatpush2.msra.mxu0 0.0
    %875 = vmatprep.subr.mxu0 0.0
    %876 = vmatpush2.msra.mxu0 0.0
    %877 = vmatprep.subr.mxu0 0.0
    %878 = vmatpush2.msra.mxu0 0.0
    %879 = vmatprep.subr.mxu0 0.0
    %880 = vmatpush2.msra.mxu0 0.0
    %881 = vmatprep.subr.mxu0 0.0
    %882 = vmatpush2.msra.mxu0 0.0
    %883 = vmatprep.subr.mxu0 0.0
    %884 = vmatpush2.msra.mxu0 0.0
    %885 = vmatprep.subr.mxu0 0.0
    %886 = vmatpush2.msra.mxu0 0.0
    %887 = vmatprep.subr.mxu0 0.0
    %888 = vmatpush2.msra.mxu0 0.0
    %889 = vmatprep.subr.mxu0 0.0
    %890 = vmatpush2.msra.mxu0 0.0
    %891 = vmatprep.subr.mxu0 0.0
    %892 = vmatpush2.msra.mxu0 0.0
    %893 = vmatprep.subr.mxu0 0.0
    %894 = vmatpush2.msra.mxu0 0.0
    %895 = vmatprep.mubr.f32.mxu0 0.0
    %896 = vmatmul.mubr.f32.gmra.mxu0 %v624
    %v897 = vpop.f32.mrf.mxu0
    %v898 = vadd.f32 0.0, %v897
    %v899 = vpop.f32.mrf.mxu0
    %900 = vdwg.mxu0
    %v901 = vld [vmem:[%s23] sm:$0x1]
    %v902 = vlaneseq
    %v903 = vshrl.u32 %v902, 7
    %v904 = vsub.s32 0, %v903
    %v905 = vrot.slane %v898, %v904
    %v906 = vadd.f32 %v790, %v905
    %v908 = vlaneseq
    %v909 = vshrl.u32 %v908, 7
    %v910 = vsub.s32 0, %v909
    %v911 = vrot.slane %v901, %v910
    %v913 = vadd.f32 %v906, %v911
    %v914 = vmax.f32 %v913, 0.0
    %v916 = vrot.slane %v914, 1
    %v918 = vmax.f32 %v914, %v916
    %vm919 = vcmask 516096
    %920 = vst.msk [vmem:[#allocation4] sm:$0x1] %vm919, %v918
    %vm921 = vcmask 518146
    %922 = vst.msk [vmem:[#allocation4 - $0x1] sm:$0x4] %vm921, %v918
    %vm923 = vcmask 520196
    %924 = vst.msk [vmem:[#allocation4 - $0x2] sm:$0x10] %vm923, %v918
    %vm925 = vcmask 522246
    %926 = vst.msk [vmem:[#allocation4 - $0x3] sm:$0x40] %vm925, %v918
    %v927 = vlaneseq
    %v928 = vshrl.u32 %v927, 7
    %v929 = vsub.s32 1, %v928
    %v930 = vrot.slane %v898, %v929
    %v931 = vadd.f32 %v795, %v930
    %v932 = vadd.f32 %v931, %v911
    %v933 = vmax.f32 %v932, 0.0
    %v935 = vrot.slane %v933, 1
    %v937 = vmax.f32 %v933, %v935
    %938 = vst.msk [vmem:[#allocation4 + $0x4] sm:$0x1] %vm919, %v937
    %939 = vst.msk [vmem:[#allocation4 + $0x3] sm:$0x4] %vm921, %v937
    %940 = vst.msk [vmem:[#allocation4 + $0x2] sm:$0x10] %vm923, %v937
    %941 = vst.msk [vmem:[#allocation4 + $0x1] sm:$0x40] %vm925, %v937
    %v942 = vlaneseq
    %v943 = vshrl.u32 %v942, 7
    %v944 = vsub.s32 2, %v943
    %v945 = vrot.slane %v898, %v944
    %v946 = vadd.f32 %v800, %v945
    %v947 = vadd.f32 %v946, %v911
    %v948 = vmax.f32 %v947, 0.0
    %v950 = vrot.slane %v948, 1
    %v952 = vmax.f32 %v948, %v950
    %953 = vst.msk [vmem:[#allocation4 + $0x8] sm:$0x1] %vm919, %v952
    %954 = vst.msk [vmem:[#allocation4 + $0x7] sm:$0x4] %vm921, %v952
    %955 = vst.msk [vmem:[#allocation4 + $0x6] sm:$0x10] %vm923, %v952
    %956 = vst.msk [vmem:[#allocation4 + $0x5] sm:$0x40] %vm925, %v952
    %v957 = vlaneseq
    %v958 = vshrl.u32 %v957, 7
    %v959 = vsub.s32 3, %v958
    %v960 = vrot.slane %v898, %v959
    %v961 = vadd.f32 %v805, %v960
    %v962 = vadd.f32 %v961, %v911
    %v963 = vmax.f32 %v962, 0.0
    %v965 = vrot.slane %v963, 1
    %v967 = vmax.f32 %v963, %v965
    %968 = vst.msk [vmem:[#allocation4 + $0xc] sm:$0x1] %vm919, %v967
    %969 = vst.msk [vmem:[#allocation4 + $0xb] sm:$0x4] %vm921, %v967
    %970 = vst.msk [vmem:[#allocation4 + $0xa] sm:$0x10] %vm923, %v967
    %971 = vst.msk [vmem:[#allocation4 + $0x9] sm:$0x40] %vm925, %v967
    %v972 = vlaneseq
    %v973 = vshrl.u32 %v972, 7
    %v974 = vsub.s32 4, %v973
    %v975 = vrot.slane %v898, %v974
    %v976 = vadd.f32 %v810, %v975
    %v977 = vadd.f32 %v976, %v911
    %v978 = vmax.f32 %v977, 0.0
    %v980 = vrot.slane %v978, 1
    %v982 = vmax.f32 %v978, %v980
    %983 = vst.msk [vmem:[#allocation4 + $0x10] sm:$0x1] %vm919, %v982
    %984 = vst.msk [vmem:[#allocation4 + $0xf] sm:$0x4] %vm921, %v982
    %985 = vst.msk [vmem:[#allocation4 + $0xe] sm:$0x10] %vm923, %v982
    %986 = vst.msk [vmem:[#allocation4 + $0xd] sm:$0x40] %vm925, %v982
    %v987 = vlaneseq
    %v988 = vshrl.u32 %v987, 7
    %v989 = vsub.s32 5, %v988
    %v990 = vrot.slane %v898, %v989
    %v991 = vadd.f32 %v815, %v990
    %v992 = vadd.f32 %v991, %v911
    %v993 = vmax.f32 %v992, 0.0
    %v995 = vrot.slane %v993, 1
    %v997 = vmax.f32 %v993, %v995
    %998 = vst.msk [vmem:[#allocation4 + $0x14] sm:$0x1] %vm919, %v997
    %999 = vst.msk [vmem:[#allocation4 + $0x13] sm:$0x4] %vm921, %v997
    %1000 = vst.msk [vmem:[#allocation4 + $0x12] sm:$0x10] %vm923, %v997
    %1001 = vst.msk [vmem:[#allocation4 + $0x11] sm:$0x40] %vm925, %v997
    %v1002 = vlaneseq
    %v1003 = vshrl.u32 %v1002, 7
    %v1004 = vsub.s32 6, %v1003
    %v1005 = vrot.slane %v898, %v1004
    %v1006 = vadd.f32 %v820, %v1005
    %v1007 = vadd.f32 %v1006, %v911
    %v1008 = vmax.f32 %v1007, 0.0
    %v1010 = vrot.slane %v1008, 1
    %v1012 = vmax.f32 %v1008, %v1010
    %1013 = vst.msk [vmem:[#allocation4 + $0x18] sm:$0x1] %vm919, %v1012
    %1014 = vst.msk [vmem:[#allocation4 + $0x17] sm:$0x4] %vm921, %v1012
    %1015 = vst.msk [vmem:[#allocation4 + $0x16] sm:$0x10] %vm923, %v1012
    %1016 = vst.msk [vmem:[#allocation4 + $0x15] sm:$0x40] %vm925, %v1012
    %v1017 = vlaneseq
    %v1018 = vshrl.u32 %v1017, 7
    %v1019 = vsub.s32 7, %v1018
    %v1020 = vrot.slane %v898, %v1019
    %v1021 = vadd.f32 %v825, %v1020
    %v1022 = vadd.f32 %v1021, %v911
    %v1023 = vmax.f32 %v1022, 0.0
    %v1025 = vrot.slane %v1023, 1
    %v1027 = vmax.f32 %v1023, %v1025
    %1028 = vst.msk [vmem:[#allocation4 + $0x1c] sm:$0x1] %vm919, %v1027
    %1029 = vst.msk [vmem:[#allocation4 + $0x1b] sm:$0x4] %vm921, %v1027
    %1030 = vst.msk [vmem:[#allocation4 + $0x1a] sm:$0x10] %vm923, %v1027
    %1031 = vst.msk [vmem:[#allocation4 + $0x19] sm:$0x40] %vm925, %v1027
    %v1032 = vld [vmem:[#allocation4] sm:$0xff]
    %v1033 = vld [vmem:[#allocation4 + $0x8] sm:$0xff]
    %v1034 = vld [vmem:[#allocation4 + $0x10] sm:$0xff]
    %v1035 = vld [vmem:[#allocation4 + $0x18] sm:$0xff]
    %v1037 = vrot.slane %v1032, 2
    %v1039 = vmax.f32 %v1032, %v1037
    %v1041 = vrot.slane %v1039, 1
    %v1043 = vmax.f32 %v1039, %v1041
    %1044 = vst.msk [vmem:[#allocation5] sm:$0x1] %vm919, %v1043
    %1045 = vst.msk [vmem:[#allocation5 - $0x3] sm:$0x10] %vm923, %v1043
    %v1047 = vrot.slane %v1033, 2
    %v1049 = vmax.f32 %v1033, %v1047
    %v1051 = vrot.slane %v1049, 1
    %v1053 = vmax.f32 %v1049, %v1051
    %1054 = vst.msk [vmem:[#allocation5 + $0x2] sm:$0x1] %vm919, %v1053
    %1055 = vst.msk [vmem:[#allocation5 - $0x1] sm:$0x10] %vm923, %v1053
    %v1057 = vrot.slane %v1034, 2
    %v1059 = vmax.f32 %v1034, %v1057
    %v1061 = vrot.slane %v1059, 1
    %v1063 = vmax.f32 %v1059, %v1061
    %1064 = vst.msk [vmem:[#allocation5 + $0x4] sm:$0x1] %vm919, %v1063
    %1065 = vst.msk [vmem:[#allocation5 + $0x1] sm:$0x10] %vm923, %v1063
    %v1067 = vrot.slane %v1035, 2
    %v1069 = vmax.f32 %v1035, %v1067
    %v1071 = vrot.slane %v1069, 1
    %v1073 = vmax.f32 %v1069, %v1071
    %1074 = vst.msk [vmem:[#allocation5 + $0x6] sm:$0x1] %vm919, %v1073
    %1075 = vst.msk [vmem:[#allocation5 + $0x3] sm:$0x10] %vm923, %v1073
    %v1076 = vld [vmem:[#allocation5] sm:$0xff]
    %v1077 = vld [vmem:[%s25] sm:$0xff]
    %v1078 = vld [vmem:[%s25 + $0x8] sm:$0xff]
    %v1079 = vld [vmem:[%s25 + $0x10] sm:$0xff]
    %v1080 = vld [vmem:[%s25 + $0x18] sm:$0xff]
    %v1081 = vld [vmem:[%s25 + $0x20] sm:$0xff]
    %v1082 = vld [vmem:[%s25 + $0x28] sm:$0xff]
    %v1083 = vld [vmem:[%s25 + $0x30] sm:$0xff]
    %v1084 = vld [vmem:[%s25 + $0x38] sm:$0xff]
    %v1085 = vld [vmem:[%s25 + $0x40] sm:$0xff]
    %v1086 = vld [vmem:[%s25 + $0x48] sm:$0xff]
    %v1087 = vld [vmem:[%s25 + $0x50] sm:$0xff]
    %v1088 = vld [vmem:[%s25 + $0x58] sm:$0xff]
    %v1089 = vld [vmem:[%s25 + $0x60] sm:$0xff]
    %v1090 = vld [vmem:[%s25 + $0x68] sm:$0xff]
    %v1091 = vld [vmem:[%s25 + $0x70] sm:$0xff]
    %v1092 = vld [vmem:[%s25 + $0x78] sm:$0xff]
    %v1093 = vld [vmem:[%s25 + $0x80] sm:$0xff]
    %v1094 = vld [vmem:[%s25 + $0x88] sm:$0xff]
    %v1095 = vld [vmem:[%s25 + $0x90] sm:$0xff]
    %v1096 = vld [vmem:[%s25 + $0x98] sm:$0xff]
    %v1097 = vld [vmem:[%s25 + $0xa0] sm:$0xff]
    %v1098 = vld [vmem:[%s25 + $0xa8] sm:$0xff]
    %v1099 = vld [vmem:[%s25 + $0xb0] sm:$0xff]
    %v1100 = vld [vmem:[%s25 + $0xb8] sm:$0xff]
    %v1101 = vld [vmem:[%s25 + $0xc0] sm:$0xff]
    %v1102 = vld [vmem:[%s25 + $0xc8] sm:$0xff]
    %v1103 = vld [vmem:[%s25 + $0xd0] sm:$0xff]
    %v1104 = vld [vmem:[%s25 + $0xd8] sm:$0xff]
    %v1105 = vld [vmem:[%s25 + $0xe0] sm:$0xff]
    %v1106 = vld [vmem:[%s25 + $0xe8] sm:$0xff]
    %v1107 = vld [vmem:[%s25 + $0xf0] sm:$0xff]
    %v1108 = vld [vmem:[%s25 + $0xf8] sm:$0xff]
    %v1109 = vld [vmem:[%s25 + $0x100] sm:$0xff]
    %v1110 = vld [vmem:[%s25 + $0x108] sm:$0xff]
    %v1111 = vld [vmem:[%s25 + $0x110] sm:$0xff]
    %v1112 = vld [vmem:[%s25 + $0x118] sm:$0xff]
    %v1113 = vld [vmem:[%s27] sm:$0xff]
    %v1114 = vld [vmem:[%s27 + $0x8] sm:$0xff]
    %v1115 = vld [vmem:[%s27 + $0x10] sm:$0xff]
    %v1116 = vld [vmem:[%s27 + $0x18] sm:$0xff]
    %v1117 = vld [vmem:[%s27 + $0x20] sm:$0xff]
    %v1118 = vld [vmem:[%s27 + $0x28] sm:$0xff]
    %v1119 = vld [vmem:[%s27 + $0x30] sm:$0xff]
    %v1120 = vld [vmem:[%s27 + $0x38] sm:$0xff]
    %v1121 = vld [vmem:[%s27 + $0x40] sm:$0xff]
    %v1122 = vld [vmem:[%s27 + $0x48] sm:$0xff]
    %v1123 = vld [vmem:[%s27 + $0x50] sm:$0xff]
    %v1124 = vld [vmem:[%s27 + $0x58] sm:$0xff]
    %v1125 = vld [vmem:[%s27 + $0x60] sm:$0xff]
    %v1126 = vld [vmem:[%s27 + $0x68] sm:$0xff]
    %v1127 = vld [vmem:[%s27 + $0x70] sm:$0xff]
    %v1128 = vld [vmem:[%s27 + $0x78] sm:$0xff]
    %v1129 = vld [vmem:[%s27 + $0x80] sm:$0xff]
    %v1130 = vld [vmem:[%s27 + $0x88] sm:$0xff]
    %v1131 = vld [vmem:[%s27 + $0x90] sm:$0xff]
    %v1132 = vld [vmem:[%s27 + $0x98] sm:$0xff]
    %v1133 = vld [vmem:[%s27 + $0xa0] sm:$0xff]
    %v1134 = vld [vmem:[%s27 + $0xa8] sm:$0xff]
    %v1135 = vld [vmem:[%s27 + $0xb0] sm:$0xff]
    %v1136 = vld [vmem:[%s27 + $0xb8] sm:$0xff]
    %vm1137 = vcmask 523264
    %v1139 = vsel %vm1137, %v1076, 0
    %1141 = vmatprep.subr.mxu0 0.0
    %1142 = vmatpush1.msra.mxu0 0.0
    %1143 = vmatprep.subr.mxu0 0.0
    %1144 = vmatpush1.msra.mxu0 0.0
    %1145 = vmatprep.subr.mxu0 0.0
    %1146 = vmatpush1.msra.mxu0 0.0
    %1147 = vmatprep.subr.mxu0 0.0
    %1148 = vmatpush1.msra.mxu0 0.0
    %1149 = vmatprep.subr.mxu0 0.0
    %1150 = vmatpush1.msra.mxu0 0.0
    %1151 = vmatprep.subr.mxu0 0.0
    %1152 = vmatpush1.msra.mxu0 0.0
    %1153 = vmatprep.subr.mxu0 0.0
    %1154 = vmatpush1.msra.mxu0 0.0
    %1155 = vmatprep.subr.mxu0 0.0
    %1156 = vmatpush1.msra.mxu0 0.0
    %1157 = vmatprep.subr.mxu0 %v1135
    %1158 = vmatpush1.msra.mxu0 %v1134
    %1159 = vmatprep.subr.mxu0 %v1132
    %1160 = vmatpush1.msra.mxu0 %v1131
    %1161 = vmatprep.subr.mxu0 %v1129
    %1162 = vmatpush1.msra.mxu0 %v1128
    %1163 = vmatprep.subr.mxu0 %v1126
    %1164 = vmatpush1.msra.mxu0 %v1125
    %1165 = vmatprep.subr.mxu0 %v1123
    %1166 = vmatpush1.msra.mxu0 %v1122
    %1167 = vmatprep.subr.mxu0 %v1120
    %1168 = vmatpush1.msra.mxu0 %v1119
    %1169 = vmatprep.subr.mxu0 %v1117
    %1170 = vmatpush1.msra.mxu0 %v1116
    %1171 = vmatprep.subr.mxu0 %v1114
    %1172 = vmatpush1.msra.mxu0 %v1113
    %1173 = vmatprep.subr.mxu0 0.0
    %1174 = vmatpush2.msra.mxu0 0.0
    %1175 = vmatprep.subr.mxu0 0.0
    %1176 = vmatpush2.msra.mxu0 0.0
    %1177 = vmatprep.subr.mxu0 0.0
    %1178 = vmatpush2.msra.mxu0 0.0
    %1179 = vmatprep.subr.mxu0 0.0
    %1180 = vmatpush2.msra.mxu0 0.0
    %1181 = vmatprep.subr.mxu0 0.0
    %1182 = vmatpush2.msra.mxu0 0.0
    %1183 = vmatprep.subr.mxu0 0.0
    %1184 = vmatpush2.msra.mxu0 0.0
    %1185 = vmatprep.subr.mxu0 0.0
    %1186 = vmatpush2.msra.mxu0 0.0
    %1187 = vmatprep.subr.mxu0 0.0
    %1188 = vmatpush2.msra.mxu0 0.0
    %1189 = vmatprep.subr.mxu0 0.0
    %1190 = vmatpush2.msra.mxu0 0.0
    %1191 = vmatprep.subr.mxu0 0.0
    %1192 = vmatpush2.msra.mxu0 0.0
    %1193 = vmatprep.subr.mxu0 0.0
    %1194 = vmatpush2.msra.mxu0 0.0
    %1195 = vmatprep.subr.mxu0 0.0
    %1196 = vmatpush2.msra.mxu0 0.0
    %1197 = vmatprep.subr.mxu0 0.0
    %1198 = vmatpush2.msra.mxu0 0.0
    %1199 = vmatprep.subr.mxu0 0.0
    %1200 = vmatpush2.msra.mxu0 0.0
    %1201 = vmatprep.subr.mxu0 0.0
    %1202 = vmatpush2.msra.mxu0 0.0
    %1203 = vmatprep.subr.mxu0 0.0
    %1204 = vmatpush2.msra.mxu0 0.0
    %1205 = vmatprep.mubr.f32.mxu0 0.0
    %1206 = vmatmul.mubr.f32.gmra.mxu0 %v1139
    %v1207 = vpop.f32.mrf.mxu0
    %v1208 = vadd.f32 0.0, %v1207
    %v1209 = vpop.f32.mrf.mxu0
    %v1210 = vadd.f32 0.0, %v1209
    %1211 = vdwg.mxu0
    %1212 = vmatprep.subr.mxu0 0.0
    %1213 = vmatpush1.msra.mxu0 0.0
    %1214 = vmatprep.subr.mxu0 0.0
    %1215 = vmatpush1.msra.mxu0 0.0
    %1216 = vmatprep.subr.mxu0 0.0
    %1217 = vmatpush1.msra.mxu0 0.0
    %1218 = vmatprep.subr.mxu0 0.0
    %1219 = vmatpush1.msra.mxu0 0.0
    %1220 = vmatprep.subr.mxu0 0.0
    %1221 = vmatpush1.msra.mxu0 0.0
    %1222 = vmatprep.subr.mxu0 0.0
    %1223 = vmatpush1.msra.mxu0 0.0
    %1224 = vmatprep.subr.mxu0 0.0
    %1225 = vmatpush1.msra.mxu0 0.0
    %1226 = vmatprep.subr.mxu0 0.0
    %1227 = vmatpush1.msra.mxu0 0.0
    %1228 = vmatprep.subr.mxu0 0.0
    %1229 = vmatpush1.msra.mxu0 %v1136
    %1230 = vmatprep.subr.mxu0 0.0
    %1231 = vmatpush1.msra.mxu0 %v1133
    %1232 = vmatprep.subr.mxu0 0.0
    %1233 = vmatpush1.msra.mxu0 %v1130
    %1234 = vmatprep.subr.mxu0 0.0
    %1235 = vmatpush1.msra.mxu0 %v1127
    %1236 = vmatprep.subr.mxu0 0.0
    %1237 = vmatpush1.msra.mxu0 %v1124
    %1238 = vmatprep.subr.mxu0 0.0
    %1239 = vmatpush1.msra.mxu0 %v1121
    %1240 = vmatprep.subr.mxu0 0.0
    %1241 = vmatpush1.msra.mxu0 %v1118
    %1242 = vmatprep.subr.mxu0 0.0
    %1243 = vmatpush1.msra.mxu0 %v1115
    %1244 = vmatprep.subr.mxu0 0.0
    %1245 = vmatpush2.msra.mxu0 0.0
    %1246 = vmatprep.subr.mxu0 0.0
    %1247 = vmatpush2.msra.mxu0 0.0
    %1248 = vmatprep.subr.mxu0 0.0
    %1249 = vmatpush2.msra.mxu0 0.0
    %1250 = vmatprep.subr.mxu0 0.0
    %1251 = vmatpush2.msra.mxu0 0.0
    %1252 = vmatprep.subr.mxu0 0.0
    %1253 = vmatpush2.msra.mxu0 0.0
    %1254 = vmatprep.subr.mxu0 0.0
    %1255 = vmatpush2.msra.mxu0 0.0
    %1256 = vmatprep.subr.mxu0 0.0
    %1257 = vmatpush2.msra.mxu0 0.0
    %1258 = vmatprep.subr.mxu0 0.0
    %1259 = vmatpush2.msra.mxu0 0.0
    %1260 = vmatprep.subr.mxu0 0.0
    %1261 = vmatpush2.msra.mxu0 0.0
    %1262 = vmatprep.subr.mxu0 0.0
    %1263 = vmatpush2.msra.mxu0 0.0
    %1264 = vmatprep.subr.mxu0 0.0
    %1265 = vmatpush2.msra.mxu0 0.0
    %1266 = vmatprep.subr.mxu0 0.0
    %1267 = vmatpush2.msra.mxu0 0.0
    %1268 = vmatprep.subr.mxu0 0.0
    %1269 = vmatpush2.msra.mxu0 0.0
    %1270 = vmatprep.subr.mxu0 0.0
    %1271 = vmatpush2.msra.mxu0 0.0
    %1272 = vmatprep.subr.mxu0 0.0
    %1273 = vmatpush2.msra.mxu0 0.0
    %1274 = vmatprep.subr.mxu0 0.0
    %1275 = vmatpush2.msra.mxu0 0.0
    %1276 = vmatprep.mubr.f32.mxu0 0.0
    %1277 = vmatmul.mubr.f32.gmra.mxu0 %v1139
    %v1278 = vpop.f32.mrf.mxu0
    %v1279 = vadd.f32 0.0, %v1278
    %v1280 = vpop.f32.mrf.mxu0
    %1281 = vdwg.mxu0
    %vm1282 = vcmask 785408
    %v1284 = vsel %vm1282, %v704, 0
    %1286 = vmatprep.subr.mxu0 0.0
    %1287 = vmatpush1.msra.mxu0 0.0
    %1288 = vmatprep.subr.mxu0 0.0
    %1289 = vmatpush1.msra.mxu0 0.0
    %1290 = vmatprep.subr.mxu0 0.0
    %1291 = vmatpush1.msra.mxu0 0.0
    %1292 = vmatprep.subr.mxu0 0.0
    %1293 = vmatpush1.msra.mxu0 0.0
    %1294 = vmatprep.subr.mxu0 %v1111
    %1295 = vmatpush1.msra.mxu0 %v1110
    %1296 = vmatprep.subr.mxu0 %v1108
    %1297 = vmatpush1.msra.mxu0 %v1107
    %1298 = vmatprep.subr.mxu0 %v1105
    %1299 = vmatpush1.msra.mxu0 %v1104
    %1300 = vmatprep.subr.mxu0 %v1102
    %1301 = vmatpush1.msra.mxu0 %v1101
    %1302 = vmatprep.subr.mxu0 %v1099
    %1303 = vmatpush1.msra.mxu0 %v1098
    %1304 = vmatprep.subr.mxu0 %v1096
    %1305 = vmatpush1.msra.mxu0 %v1095
    %1306 = vmatprep.subr.mxu0 %v1093
    %1307 = vmatpush1.msra.mxu0 %v1092
    %1308 = vmatprep.subr.mxu0 %v1090
    %1309 = vmatpush1.msra.mxu0 %v1089
    %1310 = vmatprep.subr.mxu0 %v1087
    %1311 = vmatpush1.msra.mxu0 %v1086
    %1312 = vmatprep.subr.mxu0 %v1084
    %1313 = vmatpush1.msra.mxu0 %v1083
    %1314 = vmatprep.subr.mxu0 %v1081
    %1315 = vmatpush1.msra.mxu0 %v1080
    %1316 = vmatprep.subr.mxu0 %v1078
    %1317 = vmatpush1.msra.mxu0 %v1077
    %1318 = vmatprep.subr.mxu0 0.0
    %1319 = vmatpush2.msra.mxu0 0.0
    %1320 = vmatprep.subr.mxu0 0.0
    %1321 = vmatpush2.msra.mxu0 0.0
    %1322 = vmatprep.subr.mxu0 0.0
    %1323 = vmatpush2.msra.mxu0 0.0
    %1324 = vmatprep.subr.mxu0 0.0
    %1325 = vmatpush2.msra.mxu0 0.0
    %1326 = vmatprep.subr.mxu0 0.0
    %1327 = vmatpush2.msra.mxu0 0.0
    %1328 = vmatprep.subr.mxu0 0.0
    %1329 = vmatpush2.msra.mxu0 0.0
    %1330 = vmatprep.subr.mxu0 0.0
    %1331 = vmatpush2.msra.mxu0 0.0
    %1332 = vmatprep.subr.mxu0 0.0
    %1333 = vmatpush2.msra.mxu0 0.0
    %1334 = vmatprep.subr.mxu0 0.0
    %1335 = vmatpush2.msra.mxu0 0.0
    %1336 = vmatprep.subr.mxu0 0.0
    %1337 = vmatpush2.msra.mxu0 0.0
    %1338 = vmatprep.subr.mxu0 0.0
    %1339 = vmatpush2.msra.mxu0 0.0
    %1340 = vmatprep.subr.mxu0 0.0
    %1341 = vmatpush2.msra.mxu0 0.0
    %1342 = vmatprep.subr.mxu0 0.0
    %1343 = vmatpush2.msra.mxu0 0.0
    %1344 = vmatprep.subr.mxu0 0.0
    %1345 = vmatpush2.msra.mxu0 0.0
    %1346 = vmatprep.subr.mxu0 0.0
    %1347 = vmatpush2.msra.mxu0 0.0
    %1348 = vmatprep.subr.mxu0 0.0
    %1349 = vmatpush2.msra.mxu0 0.0
    %1350 = vmatprep.mubr.f32.mxu0 0.0
    %1351 = vmatmul.mubr.f32.gmra.mxu0 %v1284
    %v1352 = vpop.f32.mrf.mxu0
    %v1353 = vadd.f32 %v1208, %v1352
    %v1354 = vpop.f32.mrf.mxu0
    %v1355 = vadd.f32 %v1210, %v1354
    %1356 = vdwg.mxu0
    %1357 = vmatprep.subr.mxu0 0.0
    %1358 = vmatpush1.msra.mxu0 0.0
    %1359 = vmatprep.subr.mxu0 0.0
    %1360 = vmatpush1.msra.mxu0 0.0
    %1361 = vmatprep.subr.mxu0 0.0
    %1362 = vmatpush1.msra.mxu0 0.0
    %1363 = vmatprep.subr.mxu0 0.0
    %1364 = vmatpush1.msra.mxu0 0.0
    %1365 = vmatprep.subr.mxu0 0.0
    %1366 = vmatpush1.msra.mxu0 %v1112
    %1367 = vmatprep.subr.mxu0 0.0
    %1368 = vmatpush1.msra.mxu0 %v1109
    %1369 = vmatprep.subr.mxu0 0.0
    %1370 = vmatpush1.msra.mxu0 %v1106
    %1371 = vmatprep.subr.mxu0 0.0
    %1372 = vmatpush1.msra.mxu0 %v1103
    %1373 = vmatprep.subr.mxu0 0.0
    %1374 = vmatpush1.msra.mxu0 %v1100
    %1375 = vmatprep.subr.mxu0 0.0
    %1376 = vmatpush1.msra.mxu0 %v1097
    %1377 = vmatprep.subr.mxu0 0.0
    %1378 = vmatpush1.msra.mxu0 %v1094
    %1379 = vmatprep.subr.mxu0 0.0
    %1380 = vmatpush1.msra.mxu0 %v1091
    %1381 = vmatprep.subr.mxu0 0.0
    %1382 = vmatpush1.msra.mxu0 %v1088
    %1383 = vmatprep.subr.mxu0 0.0
    %1384 = vmatpush1.msra.mxu0 %v1085
    %1385 = vmatprep.subr.mxu0 0.0
    %1386 = vmatpush1.msra.mxu0 %v1082
    %1387 = vmatprep.subr.mxu0 0.0
    %1388 = vmatpush1.msra.mxu0 %v1079
    %1389 = vmatprep.subr.mxu0 0.0
    %1390 = vmatpush2.msra.mxu0 0.0
    %1391 = vmatprep.subr.mxu0 0.0
    %1392 = vmatpush2.msra.mxu0 0.0
    %1393 = vmatprep.subr.mxu0 0.0
    %1394 = vmatpush2.msra.mxu0 0.0
    %1395 = vmatprep.subr.mxu0 0.0
    %1396 = vmatpush2.msra.mxu0 0.0
    %1397 = vmatprep.subr.mxu0 0.0
    %1398 = vmatpush2.msra.mxu0 0.0
    %1399 = vmatprep.subr.mxu0 0.0
    %1400 = vmatpush2.msra.mxu0 0.0
    %1401 = vmatprep.subr.mxu0 0.0
    %1402 = vmatpush2.msra.mxu0 0.0
    %1403 = vmatprep.subr.mxu0 0.0
    %1404 = vmatpush2.msra.mxu0 0.0
    %1405 = vmatprep.subr.mxu0 0.0
    %1406 = vmatpush2.msra.mxu0 0.0
    %1407 = vmatprep.subr.mxu0 0.0
    %1408 = vmatpush2.msra.mxu0 0.0
    %1409 = vmatprep.subr.mxu0 0.0
    %1410 = vmatpush2.msra.mxu0 0.0
    %1411 = vmatprep.subr.mxu0 0.0
    %1412 = vmatpush2.msra.mxu0 0.0
    %1413 = vmatprep.subr.mxu0 0.0
    %1414 = vmatpush2.msra.mxu0 0.0
    %1415 = vmatprep.subr.mxu0 0.0
    %1416 = vmatpush2.msra.mxu0 0.0
    %1417 = vmatprep.subr.mxu0 0.0
    %1418 = vmatpush2.msra.mxu0 0.0
    %1419 = vmatprep.subr.mxu0 0.0
    %1420 = vmatpush2.msra.mxu0 0.0
    %1421 = vmatprep.mubr.f32.mxu0 0.0
    %1422 = vmatmul.mubr.f32.gmra.mxu0 %v1284
    %v1423 = vpop.f32.mrf.mxu0
    %v1424 = vadd.f32 %v1279, %v1423
    %v1425 = vpop.f32.mrf.mxu0
    %1426 = vdwg.mxu0
    %v1427 = vld [vmem:[%s29] sm:$0x7]
    %v1429 = vlaneseq
    %v1430 = vshrl.u32 %v1429, 7
    %v1431 = vsub.s32 0, %v1430
    %v1432 = vrot.slane %v1427, %v1431
    %v1433 = vlaneseq
    %v1434 = vshrl.u32 %v1433, 7
    %v1435 = vsub.s32 1, %v1434
    %v1436 = vrot.slane %v1427, %v1435
    %v1437 = vlaneseq
    %v1438 = vshrl.u32 %v1437, 7
    %v1439 = vsub.s32 2, %v1438
    %v1440 = vrot.slane %v1427, %v1439
    %v1444 = vadd.f32 %v1353, %v1432
    %v1445 = vadd.f32 %v1355, %v1436
    %v1446 = vadd.f32 %v1424, %v1440
    %v1447 = vmax.f32 %v1444, 0.0
    %v1448 = vmax.f32 %v1445, 0.0
    %v1449 = vmax.f32 %v1446, 0.0
    %v1450 = vld [vmem:[%s31] sm:$0xff]
    %v1451 = vld [vmem:[%s31 + $0x8] sm:$0xff]
    %v1452 = vld [vmem:[%s31 + $0x10] sm:$0xff]
    %v1453 = vld [vmem:[%s31 + $0x18] sm:$0xff]
    %v1454 = vld [vmem:[%s31 + $0x20] sm:$0xff]
    %v1455 = vld [vmem:[%s31 + $0x28] sm:$0xff]
    %v1456 = vld [vmem:[%s31 + $0x30] sm:$0xff]
    %v1457 = vld [vmem:[%s31 + $0x38] sm:$0xff]
    %v1458 = vld [vmem:[%s31 + $0x40] sm:$0xff]
    %v1459 = vld [vmem:[%s31 + $0x48] sm:$0xff]
    %v1460 = vld [vmem:[%s31 + $0x50] sm:$0xff]
    %v1461 = vld [vmem:[%s31 + $0x58] sm:$0xff]
    %v1462 = vld [vmem:[%s31 + $0x60] sm:$0xff]
    %v1463 = vld [vmem:[%s31 + $0x68] sm:$0xff]
    %v1464 = vld [vmem:[%s31 + $0x70] sm:$0xff]
    %v1465 = vld [vmem:[%s31 + $0x78] sm:$0xff]
    %v1466 = vsel %vm1137, %v1032, 0
    %v1468 = vsel %vm1137, %v1033, 0
    %v1470 = vsel %vm1137, %v1034, 0
    %v1472 = vsel %vm1137, %v1035, 0
    %1474 = vmatprep.subr.mxu0 0.0
    %1475 = vmatpush1.msra.mxu0 0.0
    %1476 = vmatprep.subr.mxu0 0.0
    %1477 = vmatpush1.msra.mxu0 0.0
    %1478 = vmatprep.subr.mxu0 0.0
    %1479 = vmatpush1.msra.mxu0 0.0
    %1480 = vmatprep.subr.mxu0 0.0
    %1481 = vmatpush1.msra.mxu0 0.0
    %1482 = vmatprep.subr.mxu0 0.0
    %1483 = vmatpush1.msra.mxu0 0.0
    %1484 = vmatprep.subr.mxu0 0.0
    %1485 = vmatpush1.msra.mxu0 0.0
    %1486 = vmatprep.subr.mxu0 0.0
    %1487 = vmatpush1.msra.mxu0 0.0
    %1488 = vmatprep.subr.mxu0 0.0
    %1489 = vmatpush1.msra.mxu0 0.0
    %1490 = vmatprep.subr.mxu0 %v1465
    %1491 = vmatpush1.msra.mxu0 %v1464
    %1492 = vmatprep.subr.mxu0 %v1463
    %1493 = vmatpush1.msra.mxu0 %v1462
    %1494 = vmatprep.subr.mxu0 %v1461
    %1495 = vmatpush1.msra.mxu0 %v1460
    %1496 = vmatprep.subr.mxu0 %v1459
    %1497 = vmatpush1.msra.mxu0 %v1458
    %1498 = vmatprep.subr.mxu0 %v1457
    %1499 = vmatpush1.msra.mxu0 %v1456
    %1500 = vmatprep.subr.mxu0 %v1455
    %1501 = vmatpush1.msra.mxu0 %v1454
    %1502 = vmatprep.subr.mxu0 %v1453
    %1503 = vmatpush1.msra.mxu0 %v1452
    %1504 = vmatprep.subr.mxu0 %v1451
    %1505 = vmatpush1.msra.mxu0 %v1450
    %1506 = vmatprep.subr.mxu0 0.0
    %1507 = vmatpush2.msra.mxu0 0.0
    %1508 = vmatprep.subr.mxu0 0.0
    %1509 = vmatpush2.msra.mxu0 0.0
    %1510 = vmatprep.subr.mxu0 0.0
    %1511 = vmatpush2.msra.mxu0 0.0
    %1512 = vmatprep.subr.mxu0 0.0
    %1513 = vmatpush2.msra.mxu0 0.0
    %1514 = vmatprep.subr.mxu0 0.0
    %1515 = vmatpush2.msra.mxu0 0.0
    %1516 = vmatprep.subr.mxu0 0.0
    %1517 = vmatpush2.msra.mxu0 0.0
    %1518 = vmatprep.subr.mxu0 0.0
    %1519 = vmatpush2.msra.mxu0 0.0
    %1520 = vmatprep.subr.mxu0 0.0
    %1521 = vmatpush2.msra.mxu0 0.0
    %1522 = vmatprep.subr.mxu0 0.0
    %1523 = vmatpush2.msra.mxu0 0.0
    %1524 = vmatprep.subr.mxu0 0.0
    %1525 = vmatpush2.msra.mxu0 0.0
    %1526 = vmatprep.subr.mxu0 0.0
    %1527 = vmatpush2.msra.mxu0 0.0
    %1528 = vmatprep.subr.mxu0 0.0
    %1529 = vmatpush2.msra.mxu0 0.0
    %1530 = vmatprep.subr.mxu0 0.0
    %1531 = vmatpush2.msra.mxu0 0.0
    %1532 = vmatprep.subr.mxu0 0.0
    %1533 = vmatpush2.msra.mxu0 0.0
    %1534 = vmatprep.subr.mxu0 0.0
    %1535 = vmatpush2.msra.mxu0 0.0
    %1536 = vmatprep.subr.mxu0 0.0
    %1537 = vmatpush2.msra.mxu0 0.0
    %1538 = vmatprep.mubr.f32.mxu0 0.0
    %1539 = vmatmul.mubr.f32.gmra.mxu0 %v1466
    %v1540 = vpop.f32.mrf.mxu0
    %v1541 = vadd.f32 0.0, %v1540
    %v1542 = vpop.f32.mrf.mxu0
    %v1543 = vadd.f32 0.0, %v1542
    %1544 = vmatprep.mubr.f32.mxu0 0.0
    %1545 = vmatmul.mubr.f32.gmra.mxu0 %v1468
    %v1546 = vpop.f32.mrf.mxu0
    %v1547 = vadd.f32 0.0, %v1546
    %v1548 = vpop.f32.mrf.mxu0
    %v1549 = vadd.f32 0.0, %v1548
    %1550 = vmatprep.mubr.f32.mxu0 0.0
    %1551 = vmatmul.mubr.f32.gmra.mxu0 %v1470
    %v1552 = vpop.f32.mrf.mxu0
    %v1553 = vadd.f32 0.0, %v1552
    %v1554 = vpop.f32.mrf.mxu0
    %v1555 = vadd.f32 0.0, %v1554
    %1556 = vmatprep.mubr.f32.mxu0 0.0
    %1557 = vmatmul.mubr.f32.gmra.mxu0 %v1472
    %v1558 = vpop.f32.mrf.mxu0
    %v1559 = vadd.f32 0.0, %v1558
    %v1560 = vpop.f32.mrf.mxu0
    %v1561 = vadd.f32 0.0, %v1560
    %1562 = vdwg.mxu0
    %v1563 = vld [vmem:[%s33] sm:$0xff]
    %v1564 = vld [vmem:[%s33 + $0x8] sm:$0xff]
    %v1565 = vld [vmem:[%s33 + $0x10] sm:$0xff]
    %v1566 = vld [vmem:[%s33 + $0x18] sm:$0xff]
    %v1567 = vld [vmem:[%s33 + $0x20] sm:$0xff]
    %v1568 = vld [vmem:[%s33 + $0x28] sm:$0xff]
    %v1569 = vld [vmem:[%s33 + $0x30] sm:$0xff]
    %v1570 = vld [vmem:[%s33 + $0x38] sm:$0xff]
    %v1571 = vld [vmem:[%s33 + $0x40] sm:$0xff]
    %v1572 = vld [vmem:[%s33 + $0x48] sm:$0xff]
    %v1573 = vld [vmem:[%s33 + $0x50] sm:$0xff]
    %v1574 = vld [vmem:[%s33 + $0x58] sm:$0xff]
    %v1575 = vld [vmem:[%s33 + $0x60] sm:$0xff]
    %v1576 = vld [vmem:[%s33 + $0x68] sm:$0xff]
    %v1577 = vld [vmem:[%s33 + $0x70] sm:$0xff]
    %v1578 = vld [vmem:[%s33 + $0x78] sm:$0xff]
    %v1579 = vld [vmem:[%s33 + $0x80] sm:$0xff]
    %v1580 = vld [vmem:[%s33 + $0x88] sm:$0xff]
    %v1581 = vld [vmem:[%s33 + $0x90] sm:$0xff]
    %v1582 = vld [vmem:[%s33 + $0x98] sm:$0xff]
    %v1583 = vld [vmem:[%s33 + $0xa0] sm:$0xff]
    %v1584 = vld [vmem:[%s33 + $0xa8] sm:$0xff]
    %v1585 = vld [vmem:[%s33 + $0xb0] sm:$0xff]
    %v1586 = vld [vmem:[%s33 + $0xb8] sm:$0xff]
    %1587 = vmatprep.subr.mxu0 0.0
    %1588 = vmatpush1.msra.mxu0 0.0
    %1589 = vmatprep.subr.mxu0 0.0
    %1590 = vmatpush1.msra.mxu0 0.0
    %1591 = vmatprep.subr.mxu0 0.0
    %1592 = vmatpush1.msra.mxu0 0.0
    %1593 = vmatprep.subr.mxu0 0.0
    %1594 = vmatpush1.msra.mxu0 0.0
    %1595 = vmatprep.subr.mxu0 %v1586
    %1596 = vmatpush1.msra.mxu0 %v1585
    %1597 = vmatprep.subr.mxu0 %v1584
    %1598 = vmatpush1.msra.mxu0 %v1583
    %1599 = vmatprep.subr.mxu0 %v1582
    %1600 = vmatpush1.msra.mxu0 %v1581
    %1601 = vmatprep.subr.mxu0 %v1580
    %1602 = vmatpush1.msra.mxu0 %v1579
    %1603 = vmatprep.subr.mxu0 %v1578
    %1604 = vmatpush1.msra.mxu0 %v1577
    %1605 = vmatprep.subr.mxu0 %v1576
    %1606 = vmatpush1.msra.mxu0 %v1575
    %1607 = vmatprep.subr.mxu0 %v1574
    %1608 = vmatpush1.msra.mxu0 %v1573
    %1609 = vmatprep.subr.mxu0 %v1572
    %1610 = vmatpush1.msra.mxu0 %v1571
    %1611 = vmatprep.subr.mxu0 %v1570
    %1612 = vmatpush1.msra.mxu0 %v1569
    %1613 = vmatprep.subr.mxu0 %v1568
    %1614 = vmatpush1.msra.mxu0 %v1567
    %1615 = vmatprep.subr.mxu0 %v1566
    %1616 = vmatpush1.msra.mxu0 %v1565
    %1617 = vmatprep.subr.mxu0 %v1564
    %1618 = vmatpush1.msra.mxu0 %v1563
    %1619 = vmatprep.subr.mxu0 0.0
    %1620 = vmatpush2.msra.mxu0 0.0
    %1621 = vmatprep.subr.mxu0 0.0
    %1622 = vmatpush2.msra.mxu0 0.0
    %1623 = vmatprep.subr.mxu0 0.0
    %1624 = vmatpush2.msra.mxu0 0.0
    %1625 = vmatprep.subr.mxu0 0.0
    %1626 = vmatpush2.msra.mxu0 0.0
    %1627 = vmatprep.subr.mxu0 0.0
    %1628 = vmatpush2.msra.mxu0 0.0
    %1629 = vmatprep.subr.mxu0 0.0
    %1630 = vmatpush2.msra.mxu0 0.0
    %1631 = vmatprep.subr.mxu0 0.0
    %1632 = vmatpush2.msra.mxu0 0.0
    %1633 = vmatprep.subr.mxu0 0.0
    %1634 = vmatpush2.msra.mxu0 0.0
    %1635 = vmatprep.subr.mxu0 0.0
    %1636 = vmatpush2.msra.mxu0 0.0
    %1637 = vmatprep.subr.mxu0 0.0
    %1638 = vmatpush2.msra.mxu0 0.0
    %1639 = vmatprep.subr.mxu0 0.0
    %1640 = vmatpush2.msra.mxu0 0.0
    %1641 = vmatprep.subr.mxu0 0.0
    %1642 = vmatpush2.msra.mxu0 0.0
    %1643 = vmatprep.subr.mxu0 0.0
    %1644 = vmatpush2.msra.mxu0 0.0
    %1645 = vmatprep.subr.mxu0 0.0
    %1646 = vmatpush2.msra.mxu0 0.0
    %1647 = vmatprep.subr.mxu0 0.0
    %1648 = vmatpush2.msra.mxu0 0.0
    %1649 = vmatprep.subr.mxu0 0.0
    %1650 = vmatpush2.msra.mxu0 0.0
    %1651 = vmatprep.mubr.f32.mxu0 0.0
    %1652 = vmatmul.mubr.f32.gmra.mxu0 %v1284
    %v1653 = vpop.f32.mrf.mxu0
    %v1654 = vadd.f32 0.0, %v1653
    %v1655 = vpop.f32.mrf.mxu0
    %v1656 = vadd.f32 0.0, %v1655
    %1657 = vdwg.mxu0
    %v1658 = vld [vmem:[%s35] sm:$0x3]
    %v1659 = vlaneseq
    %v1660 = vshrl.u32 %v1659, 7
    %v1661 = vsub.s32 0, %v1660
    %v1662 = vrot.slane %v1654, %v1661
    %v1663 = vlaneseq
    %v1664 = vshrl.u32 %v1663, 7
    %v1665 = vsub.s32 0, %v1664
    %v1666 = vrot.slane %v1656, %v1665
    %v1667 = vadd.f32 %v1541, %v1662
    %v1668 = vadd.f32 %v1543, %v1666
    %v1670 = vlaneseq
    %v1671 = vshrl.u32 %v1670, 7
    %v1672 = vsub.s32 0, %v1671
    %v1673 = vrot.slane %v1658, %v1672
    %v1674 = vlaneseq
    %v1675 = vshrl.u32 %v1674, 7
    %v1676 = vsub.s32 1, %v1675
    %v1677 = vrot.slane %v1658, %v1676
    %v1680 = vadd.f32 %v1667, %v1673
    %v1681 = vadd.f32 %v1668, %v1677
    %v1682 = vmax.f32 %v1680, 0.0
    %v1683 = vmax.f32 %v1681, 0.0
    %v1686 = vrot.slane %v1682, 1
    %v1687 = vrot.slane %v1683, 1
    %v1690 = vmax.f32 %v1682, %v1686
    %v1691 = vmax.f32 %v1683, %v1687
    %v1694 = vcombine.low %v1690, %v1691
    %v1696 = vunpack.c.l.s4 1966171168
    %v1697 = vunpack.c.0.s8 %v1696
    %v1698 = vlaneseq
    %v1699 = vshrl.u32 %v1698, 7
    %v1700 = vsub.s32 %v1697, %v1699
    %v1701 = vrot.slane %v1694, %v1700
    %v1703 = vunpack.c.l.s4 1966171168
    %v1704 = vunpack.c.0.s8 %v1703
    %v1705 = vlaneseq
    %v1706 = vshrl.u32 %v1705, 7
    %v1707 = vsub.s32 %v1704, %v1706
    %v1708 = vrot.slane %v1701, %v1707
    %v1710 = vlaneseq
    %vm1711 = vcmp.ge.s32.totalorder %v1710, 0
    %vm1712 = vcmp.lt.s32.totalorder %v1710, 256
    %vm1713 = vmand %vm1711, %vm1712
    %1714 = vst.msk [vmem:[#allocation6] ss:$8 sm:$0x3] %vm1713, %v1708
    %1715 = vst.msk [vmem:[#allocation6] ss:$8 sm:$0x0] %vm1713, %v1708
    %v1716 = vcombine.high %v1708, %v1708
    %s1718 = scalar_lea.vmem [#allocation6], 1
    %1719 = vst.msk [vmem:[%s1718] ss:$8 sm:$0x3] %vm1713, %v1716
    %1720 = vst.msk [vmem:[%s1718] ss:$8 sm:$0x0] %vm1713, %v1716
    %v1721 = vlaneseq
    %v1722 = vshrl.u32 %v1721, 7
    %v1723 = vsub.s32 1, %v1722
    %v1724 = vrot.slane %v1654, %v1723
    %v1725 = vlaneseq
    %v1726 = vshrl.u32 %v1725, 7
    %v1727 = vsub.s32 1, %v1726
    %v1728 = vrot.slane %v1656, %v1727
    %v1729 = vadd.f32 %v1541, %v1724
    %v1730 = vadd.f32 %v1543, %v1728
    %v1731 = vadd.f32 %v1729, %v1673
    %v1732 = vadd.f32 %v1730, %v1677
    %v1733 = vmax.f32 %v1731, 0.0
    %v1734 = vmax.f32 %v1732, 0.0
    %v1737 = vrot.slane %v1733, 1
    %v1738 = vrot.slane %v1734, 1
    %v1741 = vmax.f32 %v1733, %v1737
    %v1742 = vmax.f32 %v1734, %v1738
    %v1745 = vcombine.high %v1741, %v1742
    %v1747 = vunpack.c.l.s4 1966171168
    %v1748 = vunpack.c.0.s8 %v1747
    %v1749 = vlaneseq
    %v1750 = vshrl.u32 %v1749, 7
    %v1751 = vsub.s32 %v1748, %v1750
    %v1752 = vrot.slane %v1745, %v1751
    %v1754 = vunpack.c.l.s4 1966171168
    %v1755 = vunpack.c.0.s8 %v1754
    %v1756 = vlaneseq
    %v1757 = vshrl.u32 %v1756, 7
    %v1758 = vsub.s32 %v1755, %v1757
    %v1759 = vrot.slane %v1752, %v1758
    %s1761 = scalar_lea.vmem [#allocation6], 2
    %1762 = vst.msk [vmem:[%s1761] ss:$8 sm:$0x3] %vm1713, %v1759
    %1763 = vst.msk [vmem:[%s1761] ss:$8 sm:$0x0] %vm1713, %v1759
    %v1764 = vcombine.high %v1759, %v1759
    %s1766 = scalar_lea.vmem [#allocation6], 3
    %1767 = vst.msk [vmem:[%s1766] ss:$8 sm:$0x3] %vm1713, %v1764
    %1768 = vst.msk [vmem:[%s1766] ss:$8 sm:$0x0] %vm1713, %v1764
    %v1769 = vlaneseq
    %v1770 = vshrl.u32 %v1769, 7
    %v1771 = vsub.s32 2, %v1770
    %v1772 = vrot.slane %v1654, %v1771
    %v1773 = vlaneseq
    %v1774 = vshrl.u32 %v1773, 7
    %v1775 = vsub.s32 2, %v1774
    %v1776 = vrot.slane %v1656, %v1775
    %v1777 = vadd.f32 %v1547, %v1772
    %v1778 = vadd.f32 %v1549, %v1776
    %v1779 = vadd.f32 %v1777, %v1673
    %v1780 = vadd.f32 %v1778, %v1677
    %v1781 = vmax.f32 %v1779, 0.0
    %v1782 = vmax.f32 %v1780, 0.0
    %v1785 = vrot.slane %v1781, 1
    %v1786 = vrot.slane %v1782, 1
    %v1789 = vmax.f32 %v1781, %v1785
    %v1790 = vmax.f32 %v1782, %v1786
    %v1793 = vcombine.low %v1789, %v1790
    %v1795 = vunpack.c.l.s4 1966171168
    %v1796 = vunpack.c.0.s8 %v1795
    %v1797 = vlaneseq
    %v1798 = vshrl.u32 %v1797, 7
    %v1799 = vsub.s32 %v1796, %v1798
    %v1800 = vrot.slane %v1793, %v1799
    %v1802 = vunpack.c.l.s4 1966171168
    %v1803 = vunpack.c.0.s8 %v1802
    %v1804 = vlaneseq
    %v1805 = vshrl.u32 %v1804, 7
    %v1806 = vsub.s32 %v1803, %v1805
    %v1807 = vrot.slane %v1800, %v1806
    %s1809 = scalar_lea.vmem [#allocation6], 4
    %1810 = vst.msk [vmem:[%s1809] ss:$8 sm:$0x3] %vm1713, %v1807
    %1811 = vst.msk [vmem:[%s1809] ss:$8 sm:$0x0] %vm1713, %v1807
    %v1812 = vcombine.high %v1807, %v1807
    %s1814 = scalar_lea.vmem [#allocation6], 5
    %1815 = vst.msk [vmem:[%s1814] ss:$8 sm:$0x3] %vm1713, %v1812
    %1816 = vst.msk [vmem:[%s1814] ss:$8 sm:$0x0] %vm1713, %v1812
    %v1817 = vlaneseq
    %v1818 = vshrl.u32 %v1817, 7
    %v1819 = vsub.s32 3, %v1818
    %v1820 = vrot.slane %v1654, %v1819
    %v1821 = vlaneseq
    %v1822 = vshrl.u32 %v1821, 7
    %v1823 = vsub.s32 3, %v1822
    %v1824 = vrot.slane %v1656, %v1823
    %v1825 = vadd.f32 %v1547, %v1820
    %v1826 = vadd.f32 %v1549, %v1824
    %v1827 = vadd.f32 %v1825, %v1673
    %v1828 = vadd.f32 %v1826, %v1677
    %v1829 = vmax.f32 %v1827, 0.0
    %v1830 = vmax.f32 %v1828, 0.0
    %v1833 = vrot.slane %v1829, 1
    %v1834 = vrot.slane %v1830, 1
    %v1837 = vmax.f32 %v1829, %v1833
    %v1838 = vmax.f32 %v1830, %v1834
    %v1841 = vcombine.high %v1837, %v1838
    %v1843 = vunpack.c.l.s4 1966171168
    %v1844 = vunpack.c.0.s8 %v1843
    %v1845 = vlaneseq
    %v1846 = vshrl.u32 %v1845, 7
    %v1847 = vsub.s32 %v1844, %v1846
    %v1848 = vrot.slane %v1841, %v1847
    %v1850 = vunpack.c.l.s4 1966171168
    %v1851 = vunpack.c.0.s8 %v1850
    %v1852 = vlaneseq
    %v1853 = vshrl.u32 %v1852, 7
    %v1854 = vsub.s32 %v1851, %v1853
    %v1855 = vrot.slane %v1848, %v1854
    %s1857 = scalar_lea.vmem [#allocation6], 6
    %1858 = vst.msk [vmem:[%s1857] ss:$8 sm:$0x3] %vm1713, %v1855
    %1859 = vst.msk [vmem:[%s1857] ss:$8 sm:$0x0] %vm1713, %v1855
    %v1860 = vcombine.high %v1855, %v1855
    %s1862 = scalar_lea.vmem [#allocation6], 7
    %1863 = vst.msk [vmem:[%s1862] ss:$8 sm:$0x3] %vm1713, %v1860
    %1864 = vst.msk [vmem:[%s1862] ss:$8 sm:$0x0] %vm1713, %v1860
    %v1865 = vlaneseq
    %v1866 = vshrl.u32 %v1865, 7
    %v1867 = vsub.s32 4, %v1866
    %v1868 = vrot.slane %v1654, %v1867
    %v1869 = vlaneseq
    %v1870 = vshrl.u32 %v1869, 7
    %v1871 = vsub.s32 4, %v1870
    %v1872 = vrot.slane %v1656, %v1871
    %v1873 = vadd.f32 %v1553, %v1868
    %v1874 = vadd.f32 %v1555, %v1872
    %v1875 = vadd.f32 %v1873, %v1673
    %v1876 = vadd.f32 %v1874, %v1677
    %v1877 = vmax.f32 %v1875, 0.0
    %v1878 = vmax.f32 %v1876, 0.0
    %v1881 = vrot.slane %v1877, 1
    %v1882 = vrot.slane %v1878, 1
    %v1885 = vmax.f32 %v1877, %v1881
    %v1886 = vmax.f32 %v1878, %v1882
    %v1889 = vcombine.low %v1885, %v1886
    %v1891 = vunpack.c.l.s4 1966171168
    %v1892 = vunpack.c.0.s8 %v1891
    %v1893 = vlaneseq
    %v1894 = vshrl.u32 %v1893, 7
    %v1895 = vsub.s32 %v1892, %v1894
    %v1896 = vrot.slane %v1889, %v1895
    %v1898 = vunpack.c.l.s4 1966171168
    %v1899 = vunpack.c.0.s8 %v1898
    %v1900 = vlaneseq
    %v1901 = vshrl.u32 %v1900, 7
    %v1902 = vsub.s32 %v1899, %v1901
    %v1903 = vrot.slane %v1896, %v1902
    %s1905 = scalar_lea.vmem [#allocation6], 16
    %1906 = vst.msk [vmem:[%s1905] ss:$8 sm:$0x3] %vm1713, %v1903
    %1907 = vst.msk [vmem:[%s1905] ss:$8 sm:$0x0] %vm1713, %v1903
    %v1908 = vcombine.high %v1903, %v1903
    %s1910 = scalar_lea.vmem [#allocation6], 17
    %1911 = vst.msk [vmem:[%s1910] ss:$8 sm:$0x3] %vm1713, %v1908
    %1912 = vst.msk [vmem:[%s1910] ss:$8 sm:$0x0] %vm1713, %v1908
    %v1913 = vlaneseq
    %v1914 = vshrl.u32 %v1913, 7
    %v1915 = vsub.s32 5, %v1914
    %v1916 = vrot.slane %v1654, %v1915
    %v1917 = vlaneseq
    %v1918 = vshrl.u32 %v1917, 7
    %v1919 = vsub.s32 5, %v1918
    %v1920 = vrot.slane %v1656, %v1919
    %v1921 = vadd.f32 %v1553, %v1916
    %v1922 = vadd.f32 %v1555, %v1920
    %v1923 = vadd.f32 %v1921, %v1673
    %v1924 = vadd.f32 %v1922, %v1677
    %v1925 = vmax.f32 %v1923, 0.0
    %v1926 = vmax.f32 %v1924, 0.0
    %v1929 = vrot.slane %v1925, 1
    %v1930 = vrot.slane %v1926, 1
    %v1933 = vmax.f32 %v1925, %v1929
    %v1934 = vmax.f32 %v1926, %v1930
    %v1937 = vcombine.high %v1933, %v1934
    %v1939 = vunpack.c.l.s4 1966171168
    %v1940 = vunpack.c.0.s8 %v1939
    %v1941 = vlaneseq
    %v1942 = vshrl.u32 %v1941, 7
    %v1943 = vsub.s32 %v1940, %v1942
    %v1944 = vrot.slane %v1937, %v1943
    %v1946 = vunpack.c.l.s4 1966171168
    %v1947 = vunpack.c.0.s8 %v1946
    %v1948 = vlaneseq
    %v1949 = vshrl.u32 %v1948, 7
    %v1950 = vsub.s32 %v1947, %v1949
    %v1951 = vrot.slane %v1944, %v1950
    %s1953 = scalar_lea.vmem [#allocation6], 18
    %1954 = vst.msk [vmem:[%s1953] ss:$8 sm:$0x3] %vm1713, %v1951
    %1955 = vst.msk [vmem:[%s1953] ss:$8 sm:$0x0] %vm1713, %v1951
    %v1956 = vcombine.high %v1951, %v1951
    %s1958 = scalar_lea.vmem [#allocation6], 19
    %1959 = vst.msk [vmem:[%s1958] ss:$8 sm:$0x3] %vm1713, %v1956
    %1960 = vst.msk [vmem:[%s1958] ss:$8 sm:$0x0] %vm1713, %v1956
    %v1961 = vlaneseq
    %v1962 = vshrl.u32 %v1961, 7
    %v1963 = vsub.s32 6, %v1962
    %v1964 = vrot.slane %v1654, %v1963
    %v1965 = vlaneseq
    %v1966 = vshrl.u32 %v1965, 7
    %v1967 = vsub.s32 6, %v1966
    %v1968 = vrot.slane %v1656, %v1967
    %v1969 = vadd.f32 %v1559, %v1964
    %v1970 = vadd.f32 %v1561, %v1968
    %v1971 = vadd.f32 %v1969, %v1673
    %v1972 = vadd.f32 %v1970, %v1677
    %v1973 = vmax.f32 %v1971, 0.0
    %v1974 = vmax.f32 %v1972, 0.0
    %v1977 = vrot.slane %v1973, 1
    %v1978 = vrot.slane %v1974, 1
    %v1981 = vmax.f32 %v1973, %v1977
    %v1982 = vmax.f32 %v1974, %v1978
    %v1985 = vcombine.low %v1981, %v1982
    %v1987 = vunpack.c.l.s4 1966171168
    %v1988 = vunpack.c.0.s8 %v1987
    %v1989 = vlaneseq
    %v1990 = vshrl.u32 %v1989, 7
    %v1991 = vsub.s32 %v1988, %v1990
    %v1992 = vrot.slane %v1985, %v1991
    %v1994 = vunpack.c.l.s4 1966171168
    %v1995 = vunpack.c.0.s8 %v1994
    %v1996 = vlaneseq
    %v1997 = vshrl.u32 %v1996, 7
    %v1998 = vsub.s32 %v1995, %v1997
    %v1999 = vrot.slane %v1992, %v1998
    %s2001 = scalar_lea.vmem [#allocation6], 20
    %2002 = vst.msk [vmem:[%s2001] ss:$8 sm:$0x3] %vm1713, %v1999
    %2003 = vst.msk [vmem:[%s2001] ss:$8 sm:$0x0] %vm1713, %v1999
    %v2004 = vcombine.high %v1999, %v1999
    %s2006 = scalar_lea.vmem [#allocation6], 21
    %2007 = vst.msk [vmem:[%s2006] ss:$8 sm:$0x3] %vm1713, %v2004
    %2008 = vst.msk [vmem:[%s2006] ss:$8 sm:$0x0] %vm1713, %v2004
    %v2009 = vlaneseq
    %v2010 = vshrl.u32 %v2009, 7
    %v2011 = vsub.s32 7, %v2010
    %v2012 = vrot.slane %v1654, %v2011
    %v2013 = vlaneseq
    %v2014 = vshrl.u32 %v2013, 7
    %v2015 = vsub.s32 7, %v2014
    %v2016 = vrot.slane %v1656, %v2015
    %v2017 = vadd.f32 %v1559, %v2012
    %v2018 = vadd.f32 %v1561, %v2016
    %v2019 = vadd.f32 %v2017, %v1673
    %v2020 = vadd.f32 %v2018, %v1677
    %v2021 = vmax.f32 %v2019, 0.0
    %v2022 = vmax.f32 %v2020, 0.0
    %v2025 = vrot.slane %v2021, 1
    %v2026 = vrot.slane %v2022, 1
    %v2029 = vmax.f32 %v2021, %v2025
    %v2030 = vmax.f32 %v2022, %v2026
    %v2033 = vcombine.high %v2029, %v2030
    %v2035 = vunpack.c.l.s4 1966171168
    %v2036 = vunpack.c.0.s8 %v2035
    %v2037 = vlaneseq
    %v2038 = vshrl.u32 %v2037, 7
    %v2039 = vsub.s32 %v2036, %v2038
    %v2040 = vrot.slane %v2033, %v2039
    %v2042 = vunpack.c.l.s4 1966171168
    %v2043 = vunpack.c.0.s8 %v2042
    %v2044 = vlaneseq
    %v2045 = vshrl.u32 %v2044, 7
    %v2046 = vsub.s32 %v2043, %v2045
    %v2047 = vrot.slane %v2040, %v2046
    %s2049 = scalar_lea.vmem [#allocation6], 22
    %2050 = vst.msk [vmem:[%s2049] ss:$8 sm:$0x3] %vm1713, %v2047
    %2051 = vst.msk [vmem:[%s2049] ss:$8 sm:$0x0] %vm1713, %v2047
    %v2052 = vcombine.high %v2047, %v2047
    %s2054 = scalar_lea.vmem [#allocation6], 23
    %2055 = vst.msk [vmem:[%s2054] ss:$8 sm:$0x3] %vm1713, %v2052
    %2056 = vst.msk [vmem:[%s2054] ss:$8 sm:$0x0] %vm1713, %v2052
    %v2057 = vld [vmem:[#allocation6] sm:$0xff]
    %v2058 = vld [vmem:[#allocation6 + $0x8] sm:$0xff]
    %v2059 = vld [vmem:[#allocation6 + $0x10] sm:$0xff]
    %v2060 = vld [vmem:[#allocation6 + $0x18] sm:$0xff]
    %v2061 = vrot.slane %v541, 2
    %v2063 = vmax.f32 %v541, %v2061
    %v2065 = vrot.slane %v2063, 1
    %v2067 = vmax.f32 %v2063, %v2065
    %v2068 = vrot.slane %v704, 2
    %v2070 = vmax.f32 %v704, %v2068
    %v2072 = vrot.slane %v2070, 1
    %v2074 = vmax.f32 %v2070, %v2072
    %v2078 = vrot.slane %v1447, 2
    %v2079 = vrot.slane %v1448, 2
    %v2080 = vrot.slane %v1449, 2
    %v2084 = vmax.f32 %v1447, %v2078
    %v2085 = vmax.f32 %v1448, %v2079
    %v2086 = vmax.f32 %v1449, %v2080
    %v2090 = vrot.slane %v2084, 1
    %v2091 = vrot.slane %v2085, 1
    %v2092 = vrot.slane %v2086, 1
    %v2096 = vmax.f32 %v2084, %v2090
    %v2097 = vmax.f32 %v2085, %v2091
    %v2098 = vmax.f32 %v2086, %v2092
    %v2099 = vmax.f32 %v323, %v325
    %v2100 = vmax.f32 %v324, %v326
    %v2101 = vmax.f32 %v2099, %v2100
    %v2103 = vrot.slane %v2101, 4
    %v2105 = vmax.f32 %v2101, %v2103
    %v2107 = vrot.slane %v2105, 2
    %v2109 = vmax.f32 %v2105, %v2107
    %v2111 = vrot.slane %v2109, 1
    %v2113 = vmax.f32 %v2109, %v2111
    %v2114 = vmax.f32 %v1032, %v1033
    %v2116 = vrot.slane %v2114, 4
    %v2118 = vmax.f32 %v2114, %v2116
    %v2120 = vrot.slane %v2118, 2
    %v2122 = vmax.f32 %v2118, %v2120
    %v2124 = vrot.slane %v2122, 1
    %v2126 = vmax.f32 %v2122, %v2124
    %v2129 = vrot.slane %v2057, 4
    %v2130 = vrot.slane %v2058, 4
    %v2133 = vmax.f32 %v2057, %v2129
    %v2134 = vmax.f32 %v2058, %v2130
    %v2137 = vrot.slane %v2133, 2
    %v2138 = vrot.slane %v2134, 2
    %v2141 = vmax.f32 %v2133, %v2137
    %v2142 = vmax.f32 %v2134, %v2138
    %v2145 = vrot.slane %v2141, 1
    %v2146 = vrot.slane %v2142, 1
    %v2149 = vmax.f32 %v2141, %v2145
    %v2150 = vmax.f32 %v2142, %v2146
    %v2151 = vld [vmem:[%s37] sm:$0xff]
    %v2152 = vld [vmem:[%s37 + $0x8] sm:$0xff]
    %v2153 = vld [vmem:[%s37 + $0x10] sm:$0xff]
    %v2154 = vld [vmem:[%s37 + $0x18] sm:$0xff]
    %v2155 = vld [vmem:[%s37 + $0x20] sm:$0xff]
    %v2156 = vld [vmem:[%s37 + $0x28] sm:$0xff]
    %v2157 = vld [vmem:[%s39] sm:$0xff]
    %v2158 = vld [vmem:[%s39 + $0x8] sm:$0xff]
    %v2159 = vld [vmem:[%s39 + $0x10] sm:$0xff]
    %v2160 = vld [vmem:[%s39 + $0x18] sm:$0xff]
    %v2161 = vld [vmem:[%s39 + $0x20] sm:$0xff]
    %v2162 = vld [vmem:[%s39 + $0x28] sm:$0xff]
    %v2163 = vld [vmem:[%s39 + $0x30] sm:$0xff]
    %v2164 = vld [vmem:[%s39 + $0x38] sm:$0xff]
    %v2165 = vld [vmem:[%s39 + $0x40] sm:$0xff]
    %v2166 = vld [vmem:[%s39 + $0x48] sm:$0xff]
    %v2167 = vld [vmem:[%s39 + $0x50] sm:$0xff]
    %v2168 = vld [vmem:[%s39 + $0x58] sm:$0xff]
    %v2169 = vld [vmem:[%s39 + $0x60] sm:$0xff]
    %v2170 = vld [vmem:[%s39 + $0x68] sm:$0xff]
    %v2171 = vld [vmem:[%s39 + $0x70] sm:$0xff]
    %v2172 = vld [vmem:[%s39 + $0x78] sm:$0xff]
    %v2173 = vld [vmem:[%s39 + $0x80] sm:$0xff]
    %v2174 = vld [vmem:[%s39 + $0x88] sm:$0xff]
    %v2175 = vld [vmem:[%s39 + $0x90] sm:$0xff]
    %v2176 = vld [vmem:[%s39 + $0x98] sm:$0xff]
    %v2177 = vld [vmem:[%s39 + $0xa0] sm:$0xff]
    %v2178 = vld [vmem:[%s39 + $0xa8] sm:$0xff]
    %v2179 = vld [vmem:[%s39 + $0xb0] sm:$0xff]
    %v2180 = vld [vmem:[%s39 + $0xb8] sm:$0xff]
    %v2182 = vsel %vm1282, %v2074, 0
    %2184 = vmatprep.subr.mxu0 0.0
    %2185 = vmatpush1.msra.mxu0 0.0
    %2186 = vmatprep.subr.mxu0 0.0
    %2187 = vmatpush1.msra.mxu0 0.0
    %2188 = vmatprep.subr.mxu0 0.0
    %2189 = vmatpush1.msra.mxu0 0.0
    %2190 = vmatprep.subr.mxu0 0.0
    %2191 = vmatpush1.msra.mxu0 0.0
    %2192 = vmatprep.subr.mxu0 %v2180
    %2193 = vmatpush1.msra.mxu0 %v2179
    %2194 = vmatprep.subr.mxu0 %v2178
    %2195 = vmatpush1.msra.mxu0 %v2177
    %2196 = vmatprep.subr.mxu0 %v2176
    %2197 = vmatpush1.msra.mxu0 %v2175
    %2198 = vmatprep.subr.mxu0 %v2174
    %2199 = vmatpush1.msra.mxu0 %v2173
    %2200 = vmatprep.subr.mxu0 %v2172
    %2201 = vmatpush1.msra.mxu0 %v2171
    %2202 = vmatprep.subr.mxu0 %v2170
    %2203 = vmatpush1.msra.mxu0 %v2169
    %2204 = vmatprep.subr.mxu0 %v2168
    %2205 = vmatpush1.msra.mxu0 %v2167
    %2206 = vmatprep.subr.mxu0 %v2166
    %2207 = vmatpush1.msra.mxu0 %v2165
    %2208 = vmatprep.subr.mxu0 %v2164
    %2209 = vmatpush1.msra.mxu0 %v2163
    %2210 = vmatprep.subr.mxu0 %v2162
    %2211 = vmatpush1.msra.mxu0 %v2161
    %2212 = vmatprep.subr.mxu0 %v2160
    %2213 = vmatpush1.msra.mxu0 %v2159
    %2214 = vmatprep.subr.mxu0 %v2158
    %2215 = vmatpush1.msra.mxu0 %v2157
    %2216 = vmatprep.subr.mxu0 0.0
    %2217 = vmatpush2.msra.mxu0 0.0
    %2218 = vmatprep.subr.mxu0 0.0
    %2219 = vmatpush2.msra.mxu0 0.0
    %2220 = vmatprep.subr.mxu0 0.0
    %2221 = vmatpush2.msra.mxu0 0.0
    %2222 = vmatprep.subr.mxu0 0.0
    %2223 = vmatpush2.msra.mxu0 0.0
    %2224 = vmatprep.subr.mxu0 0.0
    %2225 = vmatpush2.msra.mxu0 0.0
    %2226 = vmatprep.subr.mxu0 0.0
    %2227 = vmatpush2.msra.mxu0 0.0
    %2228 = vmatprep.subr.mxu0 0.0
    %2229 = vmatpush2.msra.mxu0 0.0
    %2230 = vmatprep.subr.mxu0 0.0
    %2231 = vmatpush2.msra.mxu0 0.0
    %2232 = vmatprep.subr.mxu0 0.0
    %2233 = vmatpush2.msra.mxu0 0.0
    %2234 = vmatprep.subr.mxu0 0.0
    %2235 = vmatpush2.msra.mxu0 0.0
    %2236 = vmatprep.subr.mxu0 0.0
    %2237 = vmatpush2.msra.mxu0 0.0
    %2238 = vmatprep.subr.mxu0 0.0
    %2239 = vmatpush2.msra.mxu0 0.0
    %2240 = vmatprep.subr.mxu0 0.0
    %2241 = vmatpush2.msra.mxu0 0.0
    %2242 = vmatprep.subr.mxu0 0.0
    %2243 = vmatpush2.msra.mxu0 0.0
    %2244 = vmatprep.subr.mxu0 0.0
    %2245 = vmatpush2.msra.mxu0 0.0
    %2246 = vmatprep.subr.mxu0 0.0
    %2247 = vmatpush2.msra.mxu0 0.0
    %2248 = vmatprep.mubr.f32.mxu0 0.0
    %2249 = vmatmul.mubr.f32.gmra.mxu0 %v2182
    %v2250 = vpop.f32.mrf.mxu0
    %v2251 = vadd.f32 0.0, %v2250
    %v2252 = vpop.f32.mrf.mxu0
    %v2253 = vadd.f32 0.0, %v2252
    %2254 = vdwg.mxu0
    %v2256 = vsel %vm622, %v2067, 0
    %2258 = vmatprep.subr.mxu0 0.0
    %2259 = vmatpush1.msra.mxu0 0.0
    %2260 = vmatprep.subr.mxu0 0.0
    %2261 = vmatpush1.msra.mxu0 0.0
    %2262 = vmatprep.subr.mxu0 0.0
    %2263 = vmatpush1.msra.mxu0 0.0
    %2264 = vmatprep.subr.mxu0 0.0
    %2265 = vmatpush1.msra.mxu0 0.0
    %2266 = vmatprep.subr.mxu0 0.0
    %2267 = vmatpush1.msra.mxu0 0.0
    %2268 = vmatprep.subr.mxu0 0.0
    %2269 = vmatpush1.msra.mxu0 0.0
    %2270 = vmatprep.subr.mxu0 0.0
    %2271 = vmatpush1.msra.mxu0 0.0
    %2272 = vmatprep.subr.mxu0 0.0
    %2273 = vmatpush1.msra.mxu0 0.0
    %2274 = vmatprep.subr.mxu0 0.0
    %2275 = vmatpush1.msra.mxu0 0.0
    %2276 = vmatprep.subr.mxu0 0.0
    %2277 = vmatpush1.msra.mxu0 0.0
    %2278 = vmatprep.subr.mxu0 0.0
    %2279 = vmatpush1.msra.mxu0 0.0
    %2280 = vmatprep.subr.mxu0 0.0
    %2281 = vmatpush1.msra.mxu0 0.0
    %2282 = vmatprep.subr.mxu0 0.0
    %2283 = vmatpush1.msra.mxu0 0.0
    %2284 = vmatprep.subr.mxu0 %v2156
    %2285 = vmatpush1.msra.mxu0 %v2155
    %2286 = vmatprep.subr.mxu0 %v2154
    %2287 = vmatpush1.msra.mxu0 %v2153
    %2288 = vmatprep.subr.mxu0 %v2152
    %2289 = vmatpush1.msra.mxu0 %v2151
    %2290 = vmatprep.subr.mxu0 0.0
    %2291 = vmatpush2.msra.mxu0 0.0
    %2292 = vmatprep.subr.mxu0 0.0
    %2293 = vmatpush2.msra.mxu0 0.0
    %2294 = vmatprep.subr.mxu0 0.0
    %2295 = vmatpush2.msra.mxu0 0.0
    %2296 = vmatprep.subr.mxu0 0.0
    %2297 = vmatpush2.msra.mxu0 0.0
    %2298 = vmatprep.subr.mxu0 0.0
    %2299 = vmatpush2.msra.mxu0 0.0
    %2300 = vmatprep.subr.mxu0 0.0
    %2301 = vmatpush2.msra.mxu0 0.0
    %2302 = vmatprep.subr.mxu0 0.0
    %2303 = vmatpush2.msra.mxu0 0.0
    %2304 = vmatprep.subr.mxu0 0.0
    %2305 = vmatpush2.msra.mxu0 0.0
    %2306 = vmatprep.subr.mxu0 0.0
    %2307 = vmatpush2.msra.mxu0 0.0
    %2308 = vmatprep.subr.mxu0 0.0
    %2309 = vmatpush2.msra.mxu0 0.0
    %2310 = vmatprep.subr.mxu0 0.0
    %2311 = vmatpush2.msra.mxu0 0.0
    %2312 = vmatprep.subr.mxu0 0.0
    %2313 = vmatpush2.msra.mxu0 0.0
    %2314 = vmatprep.subr.mxu0 0.0
    %2315 = vmatpush2.msra.mxu0 0.0
    %2316 = vmatprep.subr.mxu0 0.0
    %2317 = vmatpush2.msra.mxu0 0.0
    %2318 = vmatprep.subr.mxu0 0.0
    %2319 = vmatpush2.msra.mxu0 0.0
    %2320 = vmatprep.subr.mxu0 0.0
    %2321 = vmatpush2.msra.mxu0 0.0
    %2322 = vmatprep.mubr.f32.mxu0 0.0
    %2323 = vmatmul.mubr.f32.gmra.mxu0 %v2256
    %v2324 = vpop.f32.mrf.mxu0
    %v2325 = vadd.f32 %v2251, %v2324
    %v2326 = vpop.f32.mrf.mxu0
    %v2327 = vadd.f32 %v2253, %v2326
    %2328 = vdwg.mxu0
    %v2329 = vld [vmem:[%s41] sm:$0xff]
    %v2330 = vld [vmem:[%s41 + $0x8] sm:$0xff]
    %v2331 = vld [vmem:[%s41 + $0x10] sm:$0xff]
    %v2332 = vld [vmem:[%s41 + $0x18] sm:$0xff]
    %v2333 = vld [vmem:[%s41 + $0x20] sm:$0xff]
    %v2334 = vld [vmem:[%s41 + $0x28] sm:$0xff]
    %v2335 = vld [vmem:[%s41 + $0x30] sm:$0xff]
    %v2336 = vld [vmem:[%s41 + $0x38] sm:$0xff]
    %v2337 = vld [vmem:[%s41 + $0x40] sm:$0xff]
    %v2338 = vld [vmem:[%s41 + $0x48] sm:$0xff]
    %v2339 = vld [vmem:[%s41 + $0x50] sm:$0xff]
    %v2340 = vld [vmem:[%s41 + $0x58] sm:$0xff]
    %v2341 = vld [vmem:[%s41 + $0x60] sm:$0xff]
    %v2342 = vld [vmem:[%s41 + $0x68] sm:$0xff]
    %v2343 = vld [vmem:[%s41 + $0x70] sm:$0xff]
    %v2344 = vld [vmem:[%s41 + $0x78] sm:$0xff]
    %v2345 = vld [vmem:[%s41 + $0x80] sm:$0xff]
    %v2346 = vld [vmem:[%s41 + $0x88] sm:$0xff]
    %v2347 = vld [vmem:[%s41 + $0x90] sm:$0xff]
    %v2348 = vld [vmem:[%s41 + $0x98] sm:$0xff]
    %v2349 = vld [vmem:[%s41 + $0xa0] sm:$0xff]
    %v2350 = vld [vmem:[%s41 + $0xa8] sm:$0xff]
    %v2351 = vld [vmem:[%s41 + $0xb0] sm:$0xff]
    %v2352 = vld [vmem:[%s41 + $0xb8] sm:$0xff]
    %v2353 = vld [vmem:[%s41 + $0xc0] sm:$0xff]
    %v2354 = vld [vmem:[%s41 + $0xc8] sm:$0xff]
    %v2355 = vld [vmem:[%s41 + $0xd0] sm:$0xff]
    %v2356 = vld [vmem:[%s41 + $0xd8] sm:$0xff]
    %v2357 = vld [vmem:[%s41 + $0xe0] sm:$0xff]
    %v2358 = vld [vmem:[%s41 + $0xe8] sm:$0xff]
    %v2359 = vld [vmem:[%s41 + $0xf0] sm:$0xff]
    %v2360 = vld [vmem:[%s41 + $0xf8] sm:$0xff]
    %v2361 = vld [vmem:[%s41 + $0x100] sm:$0xff]
    %v2362 = vld [vmem:[%s41 + $0x108] sm:$0xff]
    %v2363 = vld [vmem:[%s41 + $0x110] sm:$0xff]
    %v2364 = vld [vmem:[%s41 + $0x118] sm:$0xff]
    %v2365 = vld [vmem:[%s41 + $0x120] sm:$0xff]
    %v2366 = vld [vmem:[%s41 + $0x128] sm:$0xff]
    %v2367 = vld [vmem:[%s41 + $0x130] sm:$0xff]
    %v2368 = vld [vmem:[%s41 + $0x138] sm:$0xff]
    %v2369 = vld [vmem:[%s41 + $0x140] sm:$0xff]
    %v2370 = vld [vmem:[%s41 + $0x148] sm:$0xff]
    %v2371 = vld [vmem:[%s41 + $0x150] sm:$0xff]
    %v2372 = vld [vmem:[%s41 + $0x158] sm:$0xff]
    %v2373 = vld [vmem:[%s41 + $0x160] sm:$0xff]
    %v2374 = vld [vmem:[%s41 + $0x168] sm:$0xff]
    %v2375 = vld [vmem:[%s41 + $0x170] sm:$0xff]
    %v2376 = vld [vmem:[%s41 + $0x178] sm:$0xff]
    %v2377 = vld [vmem:[%s41 + $0x180] sm:$0xff]
    %v2378 = vld [vmem:[%s41 + $0x188] sm:$0xff]
    %v2379 = vld [vmem:[%s41 + $0x190] sm:$0xff]
    %v2380 = vld [vmem:[%s41 + $0x198] sm:$0xff]
    %v2381 = vld [vmem:[%s41 + $0x1a0] sm:$0xff]
    %v2382 = vld [vmem:[%s41 + $0x1a8] sm:$0xff]
    %v2383 = vld [vmem:[%s41 + $0x1b0] sm:$0xff]
    %v2384 = vld [vmem:[%s41 + $0x1b8] sm:$0xff]
    %v2385 = vld [vmem:[%s41 + $0x1c0] sm:$0xff]
    %v2386 = vld [vmem:[%s41 + $0x1c8] sm:$0xff]
    %v2387 = vld [vmem:[%s41 + $0x1d0] sm:$0xff]
    %v2388 = vld [vmem:[%s41 + $0x1d8] sm:$0xff]
    %v2389 = vld [vmem:[%s41 + $0x1e0] sm:$0xff]
    %v2390 = vld [vmem:[%s41 + $0x1e8] sm:$0xff]
    %v2391 = vld [vmem:[%s41 + $0x1f0] sm:$0xff]
    %v2392 = vld [vmem:[%s41 + $0x1f8] sm:$0xff]
    %v2393 = vld [vmem:[%s41 + $0x200] sm:$0xff]
    %v2394 = vld [vmem:[%s41 + $0x208] sm:$0xff]
    %v2395 = vld [vmem:[%s41 + $0x210] sm:$0xff]
    %v2396 = vld [vmem:[%s41 + $0x218] sm:$0xff]
    %v2397 = vld [vmem:[%s41 + $0x220] sm:$0xff]
    %v2398 = vld [vmem:[%s41 + $0x228] sm:$0xff]
    %v2399 = vld [vmem:[%s41 + $0x230] sm:$0xff]
    %v2400 = vld [vmem:[%s41 + $0x238] sm:$0xff]
    %v2401 = vld [vmem:[%s41 + $0x240] sm:$0xff]
    %v2402 = vld [vmem:[%s41 + $0x248] sm:$0xff]
    %v2403 = vld [vmem:[%s41 + $0x250] sm:$0xff]
    %v2404 = vld [vmem:[%s41 + $0x258] sm:$0xff]
    %v2405 = vld [vmem:[%s41 + $0x260] sm:$0xff]
    %v2406 = vld [vmem:[%s41 + $0x268] sm:$0xff]
    %v2407 = vld [vmem:[%s41 + $0x270] sm:$0xff]
    %v2408 = vld [vmem:[%s41 + $0x278] sm:$0xff]
    %v2409 = vld [vmem:[%s41 + $0x280] sm:$0xff]
    %v2410 = vld [vmem:[%s41 + $0x288] sm:$0xff]
    %v2411 = vld [vmem:[%s41 + $0x290] sm:$0xff]
    %v2412 = vld [vmem:[%s41 + $0x298] sm:$0xff]
    %v2413 = vld [vmem:[%s41 + $0x2a0] sm:$0xff]
    %v2414 = vld [vmem:[%s41 + $0x2a8] sm:$0xff]
    %v2415 = vld [vmem:[%s41 + $0x2b0] sm:$0xff]
    %v2416 = vld [vmem:[%s41 + $0x2b8] sm:$0xff]
    %v2417 = vld [vmem:[%s41 + $0x2c0] sm:$0xff]
    %v2418 = vld [vmem:[%s41 + $0x2c8] sm:$0xff]
    %v2419 = vld [vmem:[%s41 + $0x2d0] sm:$0xff]
    %v2420 = vld [vmem:[%s41 + $0x2d8] sm:$0xff]
    %v2421 = vld [vmem:[%s41 + $0x2e0] sm:$0xff]
    %v2422 = vld [vmem:[%s41 + $0x2e8] sm:$0xff]
    %v2423 = vld [vmem:[%s41 + $0x2f0] sm:$0xff]
    %v2424 = vld [vmem:[%s41 + $0x2f8] sm:$0xff]
    %2425 = vmatprep.subr.mxu0 %v2360
    %2426 = vmatpush1.msra.mxu0 %v2359
    %2427 = vmatprep.subr.mxu0 %v2358
    %2428 = vmatpush1.msra.mxu0 %v2357
    %2429 = vmatprep.subr.mxu0 %v2356
    %2430 = vmatpush1.msra.mxu0 %v2355
    %2431 = vmatprep.subr.mxu0 %v2354
    %2432 = vmatpush1.msra.mxu0 %v2353
    %2433 = vmatprep.subr.mxu0 %v2352
    %2434 = vmatpush1.msra.mxu0 %v2351
    %2435 = vmatprep.subr.mxu0 %v2350
    %2436 = vmatpush1.msra.mxu0 %v2349
    %2437 = vmatprep.subr.mxu0 %v2348
    %2438 = vmatpush1.msra.mxu0 %v2347
    %2439 = vmatprep.subr.mxu0 %v2346
    %2440 = vmatpush1.msra.mxu0 %v2345
    %2441 = vmatprep.subr.mxu0 %v2344
    %2442 = vmatpush1.msra.mxu0 %v2343
    %2443 = vmatprep.subr.mxu0 %v2342
    %2444 = vmatpush1.msra.mxu0 %v2341
    %2445 = vmatprep.subr.mxu0 %v2340
    %2446 = vmatpush1.msra.mxu0 %v2339
    %2447 = vmatprep.subr.mxu0 %v2338
    %2448 = vmatpush1.msra.mxu0 %v2337
    %2449 = vmatprep.subr.mxu0 %v2336
    %2450 = vmatpush1.msra.mxu0 %v2335
    %2451 = vmatprep.subr.mxu0 %v2334
    %2452 = vmatpush1.msra.mxu0 %v2333
    %2453 = vmatprep.subr.mxu0 %v2332
    %2454 = vmatpush1.msra.mxu0 %v2331
    %2455 = vmatprep.subr.mxu0 %v2330
    %2456 = vmatpush1.msra.mxu0 %v2329
    %2457 = vmatprep.subr.mxu0 %v2392
    %2458 = vmatpush2.msra.mxu0 %v2391
    %2459 = vmatprep.subr.mxu0 %v2390
    %2460 = vmatpush2.msra.mxu0 %v2389
    %2461 = vmatprep.subr.mxu0 %v2388
    %2462 = vmatpush2.msra.mxu0 %v2387
    %2463 = vmatprep.subr.mxu0 %v2386
    %2464 = vmatpush2.msra.mxu0 %v2385
    %2465 = vmatprep.subr.mxu0 %v2384
    %2466 = vmatpush2.msra.mxu0 %v2383
    %2467 = vmatprep.subr.mxu0 %v2382
    %2468 = vmatpush2.msra.mxu0 %v2381
    %2469 = vmatprep.subr.mxu0 %v2380
    %2470 = vmatpush2.msra.mxu0 %v2379
    %2471 = vmatprep.subr.mxu0 %v2378
    %2472 = vmatpush2.msra.mxu0 %v2377
    %2473 = vmatprep.subr.mxu0 %v2376
    %2474 = vmatpush2.msra.mxu0 %v2375
    %2475 = vmatprep.subr.mxu0 %v2374
    %2476 = vmatpush2.msra.mxu0 %v2373
    %2477 = vmatprep.subr.mxu0 %v2372
    %2478 = vmatpush2.msra.mxu0 %v2371
    %2479 = vmatprep.subr.mxu0 %v2370
    %2480 = vmatpush2.msra.mxu0 %v2369
    %2481 = vmatprep.subr.mxu0 %v2368
    %2482 = vmatpush2.msra.mxu0 %v2367
    %2483 = vmatprep.subr.mxu0 %v2366
    %2484 = vmatpush2.msra.mxu0 %v2365
    %2485 = vmatprep.subr.mxu0 %v2364
    %2486 = vmatpush2.msra.mxu0 %v2363
    %2487 = vmatprep.subr.mxu0 %v2362
    %2488 = vmatpush2.msra.mxu0 %v2361
    %2489 = vmatprep.mubr.f32.mxu0 %v2097
    %2490 = vmatmul.mubr.f32.gmra.mxu0 %v2096
    %v2491 = vpop.f32.mrf.mxu0
    %v2492 = vadd.f32 0.0, %v2491
    %v2493 = vpop.f32.mrf.mxu0
    %v2494 = vadd.f32 0.0, %v2493
    %2495 = vdwg.mxu0
    %2496 = vmatprep.subr.mxu0 %v2424
    %2497 = vmatpush1.msra.mxu0 %v2423
    %2498 = vmatprep.subr.mxu0 %v2422
    %2499 = vmatpush1.msra.mxu0 %v2421
    %2500 = vmatprep.subr.mxu0 %v2420
    %2501 = vmatpush1.msra.mxu0 %v2419
    %2502 = vmatprep.subr.mxu0 %v2418
    %2503 = vmatpush1.msra.mxu0 %v2417
    %2504 = vmatprep.subr.mxu0 %v2416
    %2505 = vmatpush1.msra.mxu0 %v2415
    %2506 = vmatprep.subr.mxu0 %v2414
    %2507 = vmatpush1.msra.mxu0 %v2413
    %2508 = vmatprep.subr.mxu0 %v2412
    %2509 = vmatpush1.msra.mxu0 %v2411
    %2510 = vmatprep.subr.mxu0 %v2410
    %2511 = vmatpush1.msra.mxu0 %v2409
    %2512 = vmatprep.subr.mxu0 %v2408
    %2513 = vmatpush1.msra.mxu0 %v2407
    %2514 = vmatprep.subr.mxu0 %v2406
    %2515 = vmatpush1.msra.mxu0 %v2405
    %2516 = vmatprep.subr.mxu0 %v2404
    %2517 = vmatpush1.msra.mxu0 %v2403
    %2518 = vmatprep.subr.mxu0 %v2402
    %2519 = vmatpush1.msra.mxu0 %v2401
    %2520 = vmatprep.subr.mxu0 %v2400
    %2521 = vmatpush1.msra.mxu0 %v2399
    %2522 = vmatprep.subr.mxu0 %v2398
    %2523 = vmatpush1.msra.mxu0 %v2397
    %2524 = vmatprep.subr.mxu0 %v2396
    %2525 = vmatpush1.msra.mxu0 %v2395
    %2526 = vmatprep.subr.mxu0 %v2394
    %2527 = vmatpush1.msra.mxu0 %v2393
    %2528 = vmatprep.subr.mxu0 0.0
    %2529 = vmatpush2.msra.mxu0 0.0
    %2530 = vmatprep.subr.mxu0 0.0
    %2531 = vmatpush2.msra.mxu0 0.0
    %2532 = vmatprep.subr.mxu0 0.0
    %2533 = vmatpush2.msra.mxu0 0.0
    %2534 = vmatprep.subr.mxu0 0.0
    %2535 = vmatpush2.msra.mxu0 0.0
    %2536 = vmatprep.subr.mxu0 0.0
    %2537 = vmatpush2.msra.mxu0 0.0
    %2538 = vmatprep.subr.mxu0 0.0
    %2539 = vmatpush2.msra.mxu0 0.0
    %2540 = vmatprep.subr.mxu0 0.0
    %2541 = vmatpush2.msra.mxu0 0.0
    %2542 = vmatprep.subr.mxu0 0.0
    %2543 = vmatpush2.msra.mxu0 0.0
    %2544 = vmatprep.subr.mxu0 0.0
    %2545 = vmatpush2.msra.mxu0 0.0
    %2546 = vmatprep.subr.mxu0 0.0
    %2547 = vmatpush2.msra.mxu0 0.0
    %2548 = vmatprep.subr.mxu0 0.0
    %2549 = vmatpush2.msra.mxu0 0.0
    %2550 = vmatprep.subr.mxu0 0.0
    %2551 = vmatpush2.msra.mxu0 0.0
    %2552 = vmatprep.subr.mxu0 0.0
    %2553 = vmatpush2.msra.mxu0 0.0
    %2554 = vmatprep.subr.mxu0 0.0
    %2555 = vmatpush2.msra.mxu0 0.0
    %2556 = vmatprep.subr.mxu0 0.0
    %2557 = vmatpush2.msra.mxu0 0.0
    %2558 = vmatprep.subr.mxu0 0.0
    %2559 = vmatpush2.msra.mxu0 0.0
    %2560 = vmatprep.mubr.f32.mxu0 0.0
    %2561 = vmatmul.mubr.f32.gmra.mxu0 %v2098
    %v2562 = vpop.f32.mrf.mxu0
    %v2563 = vadd.f32 %v2492, %v2562
    %v2564 = vpop.f32.mrf.mxu0
    %v2565 = vadd.f32 %v2494, %v2564
    %2566 = vdwg.mxu0
    %v2567 = vadd.f32 %v2325, %v2563
    %v2568 = vadd.f32 %v2327, %v2565
    %v2569 = vld [vmem:[%s43] sm:$0xff]
    %v2570 = vld [vmem:[%s43 + $0x8] sm:$0xff]
    %v2571 = vld [vmem:[%s43 + $0x10] sm:$0xff]
    %v2572 = vld [vmem:[%s43 + $0x18] sm:$0xff]
    %v2574 = vsel %vm548, %v2113, 0
    %2576 = vmatprep.subr.mxu0 0.0
    %2577 = vmatpush1.msra.mxu0 0.0
    %2578 = vmatprep.subr.mxu0 0.0
    %2579 = vmatpush1.msra.mxu0 0.0
    %2580 = vmatprep.subr.mxu0 0.0
    %2581 = vmatpush1.msra.mxu0 0.0
    %2582 = vmatprep.subr.mxu0 0.0
    %2583 = vmatpush1.msra.mxu0 0.0
    %2584 = vmatprep.subr.mxu0 0.0
    %2585 = vmatpush1.msra.mxu0 0.0
    %2586 = vmatprep.subr.mxu0 0.0
    %2587 = vmatpush1.msra.mxu0 0.0
    %2588 = vmatprep.subr.mxu0 0.0
    %2589 = vmatpush1.msra.mxu0 0.0
    %2590 = vmatprep.subr.mxu0 0.0
    %2591 = vmatpush1.msra.mxu0 0.0
    %2592 = vmatprep.subr.mxu0 0.0
    %2593 = vmatpush1.msra.mxu0 0.0
    %2594 = vmatprep.subr.mxu0 0.0
    %2595 = vmatpush1.msra.mxu0 0.0
    %2596 = vmatprep.subr.mxu0 0.0
    %2597 = vmatpush1.msra.mxu0 0.0
    %2598 = vmatprep.subr.mxu0 0.0
    %2599 = vmatpush1.msra.mxu0 0.0
    %2600 = vmatprep.subr.mxu0 0.0
    %2601 = vmatpush1.msra.mxu0 0.0
    %2602 = vmatprep.subr.mxu0 0.0
    %2603 = vmatpush1.msra.mxu0 0.0
    %2604 = vmatprep.subr.mxu0 %v2572
    %2605 = vmatpush1.msra.mxu0 %v2571
    %2606 = vmatprep.subr.mxu0 %v2570
    %2607 = vmatpush1.msra.mxu0 %v2569
    %2608 = vmatprep.subr.mxu0 0.0
    %2609 = vmatpush2.msra.mxu0 0.0
    %2610 = vmatprep.subr.mxu0 0.0
    %2611 = vmatpush2.msra.mxu0 0.0
    %2612 = vmatprep.subr.mxu0 0.0
    %2613 = vmatpush2.msra.mxu0 0.0
    %2614 = vmatprep.subr.mxu0 0.0
    %2615 = vmatpush2.msra.mxu0 0.0
    %2616 = vmatprep.subr.mxu0 0.0
    %2617 = vmatpush2.msra.mxu0 0.0
    %2618 = vmatprep.subr.mxu0 0.0
    %2619 = vmatpush2.msra.mxu0 0.0
    %2620 = vmatprep.subr.mxu0 0.0
    %2621 = vmatpush2.msra.mxu0 0.0
    %2622 = vmatprep.subr.mxu0 0.0
    %2623 = vmatpush2.msra.mxu0 0.0
    %2624 = vmatprep.subr.mxu0 0.0
    %2625 = vmatpush2.msra.mxu0 0.0
    %2626 = vmatprep.subr.mxu0 0.0
    %2627 = vmatpush2.msra.mxu0 0.0
    %2628 = vmatprep.subr.mxu0 0.0
    %2629 = vmatpush2.msra.mxu0 0.0
    %2630 = vmatprep.subr.mxu0 0.0
    %2631 = vmatpush2.msra.mxu0 0.0
    %2632 = vmatprep.subr.mxu0 0.0
    %2633 = vmatpush2.msra.mxu0 0.0
    %2634 = vmatprep.subr.mxu0 0.0
    %2635 = vmatpush2.msra.mxu0 0.0
    %2636 = vmatprep.subr.mxu0 0.0
    %2637 = vmatpush2.msra.mxu0 0.0
    %2638 = vmatprep.subr.mxu0 0.0
    %2639 = vmatpush2.msra.mxu0 0.0
    %2640 = vmatprep.mubr.f32.mxu0 0.0
    %2641 = vmatmul.mubr.f32.gmra.mxu0 %v2574
    %v2642 = vpop.f32.mrf.mxu0
    %v2643 = vadd.f32 0.0, %v2642
    %v2644 = vpop.f32.mrf.mxu0
    %v2645 = vadd.f32 0.0, %v2644
    %2646 = vdwg.mxu0
    %v2647 = vadd.f32 %v2567, %v2643
    %v2648 = vadd.f32 %v2568, %v2645
    %v2649 = vld [vmem:[%s45] sm:$0xff]
    %v2650 = vld [vmem:[%s45 + $0x8] sm:$0xff]
    %v2651 = vld [vmem:[%s45 + $0x10] sm:$0xff]
    %v2652 = vld [vmem:[%s45 + $0x18] sm:$0xff]
    %v2653 = vld [vmem:[%s45 + $0x20] sm:$0xff]
    %v2654 = vld [vmem:[%s45 + $0x28] sm:$0xff]
    %v2655 = vld [vmem:[%s45 + $0x30] sm:$0xff]
    %v2656 = vld [vmem:[%s45 + $0x38] sm:$0xff]
    %v2657 = vld [vmem:[%s45 + $0x40] sm:$0xff]
    %v2658 = vld [vmem:[%s45 + $0x48] sm:$0xff]
    %v2659 = vld [vmem:[%s45 + $0x50] sm:$0xff]
    %v2660 = vld [vmem:[%s45 + $0x58] sm:$0xff]
    %v2661 = vld [vmem:[%s45 + $0x60] sm:$0xff]
    %v2662 = vld [vmem:[%s45 + $0x68] sm:$0xff]
    %v2663 = vld [vmem:[%s45 + $0x70] sm:$0xff]
    %v2664 = vld [vmem:[%s45 + $0x78] sm:$0xff]
    %v2666 = vsel %vm1137, %v2126, 0
    %2668 = vmatprep.subr.mxu0 0.0
    %2669 = vmatpush1.msra.mxu0 0.0
    %2670 = vmatprep.subr.mxu0 0.0
    %2671 = vmatpush1.msra.mxu0 0.0
    %2672 = vmatprep.subr.mxu0 0.0
    %2673 = vmatpush1.msra.mxu0 0.0
    %2674 = vmatprep.subr.mxu0 0.0
    %2675 = vmatpush1.msra.mxu0 0.0
    %2676 = vmatprep.subr.mxu0 0.0
    %2677 = vmatpush1.msra.mxu0 0.0
    %2678 = vmatprep.subr.mxu0 0.0
    %2679 = vmatpush1.msra.mxu0 0.0
    %2680 = vmatprep.subr.mxu0 0.0
    %2681 = vmatpush1.msra.mxu0 0.0
    %2682 = vmatprep.subr.mxu0 0.0
    %2683 = vmatpush1.msra.mxu0 0.0
    %2684 = vmatprep.subr.mxu0 %v2664
    %2685 = vmatpush1.msra.mxu0 %v2663
    %2686 = vmatprep.subr.mxu0 %v2662
    %2687 = vmatpush1.msra.mxu0 %v2661
    %2688 = vmatprep.subr.mxu0 %v2660
    %2689 = vmatpush1.msra.mxu0 %v2659
    %2690 = vmatprep.subr.mxu0 %v2658
    %2691 = vmatpush1.msra.mxu0 %v2657
    %2692 = vmatprep.subr.mxu0 %v2656
    %2693 = vmatpush1.msra.mxu0 %v2655
    %2694 = vmatprep.subr.mxu0 %v2654
    %2695 = vmatpush1.msra.mxu0 %v2653
    %2696 = vmatprep.subr.mxu0 %v2652
    %2697 = vmatpush1.msra.mxu0 %v2651
    %2698 = vmatprep.subr.mxu0 %v2650
    %2699 = vmatpush1.msra.mxu0 %v2649
    %2700 = vmatprep.subr.mxu0 0.0
    %2701 = vmatpush2.msra.mxu0 0.0
    %2702 = vmatprep.subr.mxu0 0.0
    %2703 = vmatpush2.msra.mxu0 0.0
    %2704 = vmatprep.subr.mxu0 0.0
    %2705 = vmatpush2.msra.mxu0 0.0
    %2706 = vmatprep.subr.mxu0 0.0
    %2707 = vmatpush2.msra.mxu0 0.0
    %2708 = vmatprep.subr.mxu0 0.0
    %2709 = vmatpush2.msra.mxu0 0.0
    %2710 = vmatprep.subr.mxu0 0.0
    %2711 = vmatpush2.msra.mxu0 0.0
    %2712 = vmatprep.subr.mxu0 0.0
    %2713 = vmatpush2.msra.mxu0 0.0
    %2714 = vmatprep.subr.mxu0 0.0
    %2715 = vmatpush2.msra.mxu0 0.0
    %2716 = vmatprep.subr.mxu0 0.0
    %2717 = vmatpush2.msra.mxu0 0.0
    %2718 = vmatprep.subr.mxu0 0.0
    %2719 = vmatpush2.msra.mxu0 0.0
    %2720 = vmatprep.subr.mxu0 0.0
    %2721 = vmatpush2.msra.mxu0 0.0
    %2722 = vmatprep.subr.mxu0 0.0
    %2723 = vmatpush2.msra.mxu0 0.0
    %2724 = vmatprep.subr.mxu0 0.0
    %2725 = vmatpush2.msra.mxu0 0.0
    %2726 = vmatprep.subr.mxu0 0.0
    %2727 = vmatpush2.msra.mxu0 0.0
    %2728 = vmatprep.subr.mxu0 0.0
    %2729 = vmatpush2.msra.mxu0 0.0
    %2730 = vmatprep.subr.mxu0 0.0
    %2731 = vmatpush2.msra.mxu0 0.0
    %2732 = vmatprep.mubr.f32.mxu0 0.0
    %2733 = vmatmul.mubr.f32.gmra.mxu0 %v2666
    %v2734 = vpop.f32.mrf.mxu0
    %v2735 = vadd.f32 0.0, %v2734
    %v2736 = vpop.f32.mrf.mxu0
    %v2737 = vadd.f32 0.0, %v2736
    %2738 = vdwg.mxu0
    %v2739 = vadd.f32 %v2647, %v2735
    %v2740 = vadd.f32 %v2648, %v2737
    %v2741 = vld [vmem:[%s47] sm:$0xff]
    %v2742 = vld [vmem:[%s47 + $0x8] sm:$0xff]
    %v2743 = vld [vmem:[%s47 + $0x10] sm:$0xff]
    %v2744 = vld [vmem:[%s47 + $0x18] sm:$0xff]
    %v2745 = vld [vmem:[%s47 + $0x20] sm:$0xff]
    %v2746 = vld [vmem:[%s47 + $0x28] sm:$0xff]
    %v2747 = vld [vmem:[%s47 + $0x30] sm:$0xff]
    %v2748 = vld [vmem:[%s47 + $0x38] sm:$0xff]
    %v2749 = vld [vmem:[%s47 + $0x40] sm:$0xff]
    %v2750 = vld [vmem:[%s47 + $0x48] sm:$0xff]
    %v2751 = vld [vmem:[%s47 + $0x50] sm:$0xff]
    %v2752 = vld [vmem:[%s47 + $0x58] sm:$0xff]
    %v2753 = vld [vmem:[%s47 + $0x60] sm:$0xff]
    %v2754 = vld [vmem:[%s47 + $0x68] sm:$0xff]
    %v2755 = vld [vmem:[%s47 + $0x70] sm:$0xff]
    %v2756 = vld [vmem:[%s47 + $0x78] sm:$0xff]
    %v2757 = vld [vmem:[%s47 + $0x80] sm:$0xff]
    %v2758 = vld [vmem:[%s47 + $0x88] sm:$0xff]
    %v2759 = vld [vmem:[%s47 + $0x90] sm:$0xff]
    %v2760 = vld [vmem:[%s47 + $0x98] sm:$0xff]
    %v2761 = vld [vmem:[%s47 + $0xa0] sm:$0xff]
    %v2762 = vld [vmem:[%s47 + $0xa8] sm:$0xff]
    %v2763 = vld [vmem:[%s47 + $0xb0] sm:$0xff]
    %v2764 = vld [vmem:[%s47 + $0xb8] sm:$0xff]
    %v2765 = vld [vmem:[%s47 + $0xc0] sm:$0xff]
    %v2766 = vld [vmem:[%s47 + $0xc8] sm:$0xff]
    %v2767 = vld [vmem:[%s47 + $0xd0] sm:$0xff]
    %v2768 = vld [vmem:[%s47 + $0xd8] sm:$0xff]
    %v2769 = vld [vmem:[%s47 + $0xe0] sm:$0xff]
    %v2770 = vld [vmem:[%s47 + $0xe8] sm:$0xff]
    %v2771 = vld [vmem:[%s47 + $0xf0] sm:$0xff]
    %v2772 = vld [vmem:[%s47 + $0xf8] sm:$0xff]
    %v2773 = vld [vmem:[%s47 + $0x100] sm:$0xff]
    %v2774 = vld [vmem:[%s47 + $0x108] sm:$0xff]
    %v2775 = vld [vmem:[%s47 + $0x110] sm:$0xff]
    %v2776 = vld [vmem:[%s47 + $0x118] sm:$0xff]
    %v2777 = vld [vmem:[%s47 + $0x120] sm:$0xff]
    %v2778 = vld [vmem:[%s47 + $0x128] sm:$0xff]
    %v2779 = vld [vmem:[%s47 + $0x130] sm:$0xff]
    %v2780 = vld [vmem:[%s47 + $0x138] sm:$0xff]
    %v2781 = vld [vmem:[%s47 + $0x140] sm:$0xff]
    %v2782 = vld [vmem:[%s47 + $0x148] sm:$0xff]
    %v2783 = vld [vmem:[%s47 + $0x150] sm:$0xff]
    %v2784 = vld [vmem:[%s47 + $0x158] sm:$0xff]
    %v2785 = vld [vmem:[%s47 + $0x160] sm:$0xff]
    %v2786 = vld [vmem:[%s47 + $0x168] sm:$0xff]
    %v2787 = vld [vmem:[%s47 + $0x170] sm:$0xff]
    %v2788 = vld [vmem:[%s47 + $0x178] sm:$0xff]
    %v2789 = vld [vmem:[%s47 + $0x180] sm:$0xff]
    %v2790 = vld [vmem:[%s47 + $0x188] sm:$0xff]
    %v2791 = vld [vmem:[%s47 + $0x190] sm:$0xff]
    %v2792 = vld [vmem:[%s47 + $0x198] sm:$0xff]
    %v2793 = vld [vmem:[%s47 + $0x1a0] sm:$0xff]
    %v2794 = vld [vmem:[%s47 + $0x1a8] sm:$0xff]
    %v2795 = vld [vmem:[%s47 + $0x1b0] sm:$0xff]
    %v2796 = vld [vmem:[%s47 + $0x1b8] sm:$0xff]
    %v2797 = vld [vmem:[%s47 + $0x1c0] sm:$0xff]
    %v2798 = vld [vmem:[%s47 + $0x1c8] sm:$0xff]
    %v2799 = vld [vmem:[%s47 + $0x1d0] sm:$0xff]
    %v2800 = vld [vmem:[%s47 + $0x1d8] sm:$0xff]
    %v2801 = vld [vmem:[%s47 + $0x1e0] sm:$0xff]
    %v2802 = vld [vmem:[%s47 + $0x1e8] sm:$0xff]
    %v2803 = vld [vmem:[%s47 + $0x1f0] sm:$0xff]
    %v2804 = vld [vmem:[%s47 + $0x1f8] sm:$0xff]
    %2805 = vmatprep.subr.mxu0 %v2772
    %2806 = vmatpush1.msra.mxu0 %v2771
    %2807 = vmatprep.subr.mxu0 %v2770
    %2808 = vmatpush1.msra.mxu0 %v2769
    %2809 = vmatprep.subr.mxu0 %v2768
    %2810 = vmatpush1.msra.mxu0 %v2767
    %2811 = vmatprep.subr.mxu0 %v2766
    %2812 = vmatpush1.msra.mxu0 %v2765
    %2813 = vmatprep.subr.mxu0 %v2764
    %2814 = vmatpush1.msra.mxu0 %v2763
    %2815 = vmatprep.subr.mxu0 %v2762
    %2816 = vmatpush1.msra.mxu0 %v2761
    %2817 = vmatprep.subr.mxu0 %v2760
    %2818 = vmatpush1.msra.mxu0 %v2759
    %2819 = vmatprep.subr.mxu0 %v2758
    %2820 = vmatpush1.msra.mxu0 %v2757
    %2821 = vmatprep.subr.mxu0 %v2756
    %2822 = vmatpush1.msra.mxu0 %v2755
    %2823 = vmatprep.subr.mxu0 %v2754
    %2824 = vmatpush1.msra.mxu0 %v2753
    %2825 = vmatprep.subr.mxu0 %v2752
    %2826 = vmatpush1.msra.mxu0 %v2751
    %2827 = vmatprep.subr.mxu0 %v2750
    %2828 = vmatpush1.msra.mxu0 %v2749
    %2829 = vmatprep.subr.mxu0 %v2748
    %2830 = vmatpush1.msra.mxu0 %v2747
    %2831 = vmatprep.subr.mxu0 %v2746
    %2832 = vmatpush1.msra.mxu0 %v2745
    %2833 = vmatprep.subr.mxu0 %v2744
    %2834 = vmatpush1.msra.mxu0 %v2743
    %2835 = vmatprep.subr.mxu0 %v2742
    %2836 = vmatpush1.msra.mxu0 %v2741
    %2837 = vmatprep.subr.mxu0 %v2804
    %2838 = vmatpush2.msra.mxu0 %v2803
    %2839 = vmatprep.subr.mxu0 %v2802
    %2840 = vmatpush2.msra.mxu0 %v2801
    %2841 = vmatprep.subr.mxu0 %v2800
    %2842 = vmatpush2.msra.mxu0 %v2799
    %2843 = vmatprep.subr.mxu0 %v2798
    %2844 = vmatpush2.msra.mxu0 %v2797
    %2845 = vmatprep.subr.mxu0 %v2796
    %2846 = vmatpush2.msra.mxu0 %v2795
    %2847 = vmatprep.subr.mxu0 %v2794
    %2848 = vmatpush2.msra.mxu0 %v2793
    %2849 = vmatprep.subr.mxu0 %v2792
    %2850 = vmatpush2.msra.mxu0 %v2791
    %2851 = vmatprep.subr.mxu0 %v2790
    %2852 = vmatpush2.msra.mxu0 %v2789
    %2853 = vmatprep.subr.mxu0 %v2788
    %2854 = vmatpush2.msra.mxu0 %v2787
    %2855 = vmatprep.subr.mxu0 %v2786
    %2856 = vmatpush2.msra.mxu0 %v2785
    %2857 = vmatprep.subr.mxu0 %v2784
    %2858 = vmatpush2.msra.mxu0 %v2783
    %2859 = vmatprep.subr.mxu0 %v2782
    %2860 = vmatpush2.msra.mxu0 %v2781
    %2861 = vmatprep.subr.mxu0 %v2780
    %2862 = vmatpush2.msra.mxu0 %v2779
    %2863 = vmatprep.subr.mxu0 %v2778
    %2864 = vmatpush2.msra.mxu0 %v2777
    %2865 = vmatprep.subr.mxu0 %v2776
    %2866 = vmatpush2.msra.mxu0 %v2775
    %2867 = vmatprep.subr.mxu0 %v2774
    %2868 = vmatpush2.msra.mxu0 %v2773
    %2869 = vmatprep.mubr.f32.mxu0 %v2150
    %2870 = vmatmul.mubr.f32.gmra.mxu0 %v2149
    %v2871 = vpop.f32.mrf.mxu0
    %v2872 = vadd.f32 0.0, %v2871
    %v2873 = vpop.f32.mrf.mxu0
    %v2874 = vadd.f32 0.0, %v2873
    %2875 = vdwg.mxu0
    %v2876 = vadd.f32 %v2739, %v2872
    %v2877 = vadd.f32 %v2740, %v2874
    %v2878 = vld [vmem:[%s49] sm:$0x3]
    %v2880 = vlaneseq
    %v2881 = vshrl.u32 %v2880, 7
    %v2882 = vsub.s32 0, %v2881
    %v2883 = vrot.slane %v2878, %v2882
    %v2884 = vlaneseq
    %v2885 = vshrl.u32 %v2884, 7
    %v2886 = vsub.s32 1, %v2885
    %v2887 = vrot.slane %v2878, %v2886
    %v2890 = vadd.f32 %v2876, %v2883
    %v2891 = vadd.f32 %v2877, %v2887
    %v2892 = vmax.f32 %v2890, 0.0
    %v2893 = vmax.f32 %v2891, 0.0
    %v2894 = vld [vmem:[%s51] sm:$0xff]
    %v2895 = vld [vmem:[%s51 + $0x8] sm:$0xff]
    %v2896 = vld [vmem:[%s51 + $0x10] sm:$0xff]
    %v2897 = vld [vmem:[%s51 + $0x18] sm:$0xff]
    %v2898 = vld [vmem:[%s51 + $0x20] sm:$0xff]
    %v2899 = vld [vmem:[%s51 + $0x28] sm:$0xff]
    %v2900 = vld [vmem:[%s51 + $0x30] sm:$0xff]
    %v2901 = vld [vmem:[%s51 + $0x38] sm:$0xff]
    %v2902 = vld [vmem:[%s51 + $0x40] sm:$0xff]
    %v2903 = vld [vmem:[%s51 + $0x48] sm:$0xff]
    %v2904 = vld [vmem:[%s51 + $0x50] sm:$0xff]
    %v2905 = vld [vmem:[%s51 + $0x58] sm:$0xff]
    %v2906 = vld [vmem:[%s51 + $0x60] sm:$0xff]
    %v2907 = vld [vmem:[%s51 + $0x68] sm:$0xff]
    %v2908 = vld [vmem:[%s51 + $0x70] sm:$0xff]
    %v2909 = vld [vmem:[%s51 + $0x78] sm:$0xff]
    %v2910 = vld [vmem:[%s51 + $0x80] sm:$0xff]
    %v2911 = vld [vmem:[%s51 + $0x88] sm:$0xff]
    %v2912 = vld [vmem:[%s51 + $0x90] sm:$0xff]
    %v2913 = vld [vmem:[%s51 + $0x98] sm:$0xff]
    %v2914 = vld [vmem:[%s51 + $0xa0] sm:$0xff]
    %v2915 = vld [vmem:[%s51 + $0xa8] sm:$0xff]
    %v2916 = vld [vmem:[%s51 + $0xb0] sm:$0xff]
    %v2917 = vld [vmem:[%s51 + $0xb8] sm:$0x7f]
    %v2918 = vld [vmem:[%s53] sm:$0x1]
    %vm2919 = vcmask 515072
    %v2921 = vsel %vm2919, %v2893, 0
    %vm2923 = vcmask 1046528
    %v2925 = vsel %vm2923, %v2917, 0
    %2927 = vmatprep.subr.mxu0 0.0
    %2928 = vmatpush1.msra.mxu0 %v2909
    %2929 = vmatprep.subr.mxu0 0.0
    %2930 = vmatpush1.msra.mxu0 %v2908
    %2931 = vmatprep.subr.mxu0 0.0
    %2932 = vmatpush1.msra.mxu0 %v2907
    %2933 = vmatprep.subr.mxu0 0.0
    %2934 = vmatpush1.msra.mxu0 %v2906
    %2935 = vmatprep.subr.mxu0 0.0
    %2936 = vmatpush1.msra.mxu0 %v2905
    %2937 = vmatprep.subr.mxu0 0.0
    %2938 = vmatpush1.msra.mxu0 %v2904
    %2939 = vmatprep.subr.mxu0 0.0
    %2940 = vmatpush1.msra.mxu0 %v2903
    %2941 = vmatprep.subr.mxu0 0.0
    %2942 = vmatpush1.msra.mxu0 %v2902
    %2943 = vmatprep.subr.mxu0 0.0
    %2944 = vmatpush1.msra.mxu0 %v2901
    %2945 = vmatprep.subr.mxu0 0.0
    %2946 = vmatpush1.msra.mxu0 %v2900
    %2947 = vmatprep.subr.mxu0 0.0
    %2948 = vmatpush1.msra.mxu0 %v2899
    %2949 = vmatprep.subr.mxu0 0.0
    %2950 = vmatpush1.msra.mxu0 %v2898
    %2951 = vmatprep.subr.mxu0 0.0
    %2952 = vmatpush1.msra.mxu0 %v2897
    %2953 = vmatprep.subr.mxu0 0.0
    %2954 = vmatpush1.msra.mxu0 %v2896
    %2955 = vmatprep.subr.mxu0 0.0
    %2956 = vmatpush1.msra.mxu0 %v2895
    %2957 = vmatprep.subr.mxu0 0.0
    %2958 = vmatpush1.msra.mxu0 %v2894
    %2959 = vmatprep.subr.mxu0 0.0
    %2960 = vmatpush2.msra.mxu0 0.0
    %2961 = vmatprep.subr.mxu0 0.0
    %2962 = vmatpush2.msra.mxu0 0.0
    %2963 = vmatprep.subr.mxu0 0.0
    %2964 = vmatpush2.msra.mxu0 0.0
    %2965 = vmatprep.subr.mxu0 0.0
    %2966 = vmatpush2.msra.mxu0 0.0
    %2967 = vmatprep.subr.mxu0 0.0
    %2968 = vmatpush2.msra.mxu0 0.0
    %2969 = vmatprep.subr.mxu0 0.0
    %2970 = vmatpush2.msra.mxu0 0.0
    %2971 = vmatprep.subr.mxu0 0.0
    %2972 = vmatpush2.msra.mxu0 0.0
    %2973 = vmatprep.subr.mxu0 0.0
    %2974 = vmatpush2.msra.mxu0 0.0
    %2975 = vmatprep.subr.mxu0 0.0
    %2976 = vmatpush2.msra.mxu0 %v2925
    %2977 = vmatprep.subr.mxu0 0.0
    %2978 = vmatpush2.msra.mxu0 %v2916
    %2979 = vmatprep.subr.mxu0 0.0
    %2980 = vmatpush2.msra.mxu0 %v2915
    %2981 = vmatprep.subr.mxu0 0.0
    %2982 = vmatpush2.msra.mxu0 %v2914
    %2983 = vmatprep.subr.mxu0 0.0
    %2984 = vmatpush2.msra.mxu0 %v2913
    %2985 = vmatprep.subr.mxu0 0.0
    %2986 = vmatpush2.msra.mxu0 %v2912
    %2987 = vmatprep.subr.mxu0 0.0
    %2988 = vmatpush2.msra.mxu0 %v2911
    %2989 = vmatprep.subr.mxu0 0.0
    %2990 = vmatpush2.msra.mxu0 %v2910
    %2991 = vmatprep.mubr.f32.mxu0 %v2921
    %2992 = vmatmul.mubr.f32.gmra.mxu0 %v2892
    %v2993 = vpop.f32.mrf.mxu0
    %v2994 = vadd.f32 %v2918, %v2993
    %v2995 = vpop.f32.mrf.mxu0
    %2996 = vdwg.mxu0
    %v2997 = vmax.f32 %v2994, 0.0
    %v2998 = vld [vmem:[%s55] sm:$0xff]
    %v2999 = vld [vmem:[%s55 + $0x8] sm:$0xff]
    %v3000 = vld [vmem:[%s55 + $0x10] sm:$0xff]
    %v3001 = vld [vmem:[%s55 + $0x18] sm:$0xff]
    %v3002 = vld [vmem:[%s55 + $0x20] sm:$0xff]
    %v3003 = vld [vmem:[%s55 + $0x28] sm:$0x7]
    %v3004 = vld [vmem:[%s57] sm:$0x1]
    %vm3005 = vcmask 351232
    %v3007 = vsel %vm3005, %v2997, 0
    %vm3009 = vcmask 1042432
    %v3011 = vsel %vm3009, %v3003, 0
    %3013 = vmatprep.subr.mxu0 0.0
    %3014 = vmatpush1.msra.mxu0 0.0
    %3015 = vmatprep.subr.mxu0 0.0
    %3016 = vmatpush1.msra.mxu0 0.0
    %3017 = vmatprep.subr.mxu0 0.0
    %3018 = vmatpush1.msra.mxu0 0.0
    %3019 = vmatprep.subr.mxu0 0.0
    %3020 = vmatpush1.msra.mxu0 0.0
    %3021 = vmatprep.subr.mxu0 0.0
    %3022 = vmatpush1.msra.mxu0 0.0
    %3023 = vmatprep.subr.mxu0 0.0
    %3024 = vmatpush1.msra.mxu0 0.0
    %3025 = vmatprep.subr.mxu0 0.0
    %3026 = vmatpush1.msra.mxu0 0.0
    %3027 = vmatprep.subr.mxu0 0.0
    %3028 = vmatpush1.msra.mxu0 0.0
    %3029 = vmatprep.subr.mxu0 0.0
    %3030 = vmatpush1.msra.mxu0 0.0
    %3031 = vmatprep.subr.mxu0 0.0
    %3032 = vmatpush1.msra.mxu0 0.0
    %3033 = vmatprep.subr.mxu0 0.0
    %3034 = vmatpush1.msra.mxu0 %v3011
    %3035 = vmatprep.subr.mxu0 0.0
    %3036 = vmatpush1.msra.mxu0 %v3002
    %3037 = vmatprep.subr.mxu0 0.0
    %3038 = vmatpush1.msra.mxu0 %v3001
    %3039 = vmatprep.subr.mxu0 0.0
    %3040 = vmatpush1.msra.mxu0 %v3000
    %3041 = vmatprep.subr.mxu0 0.0
    %3042 = vmatpush1.msra.mxu0 %v2999
    %3043 = vmatprep.subr.mxu0 0.0
    %3044 = vmatpush1.msra.mxu0 %v2998
    %3045 = vmatprep.subr.mxu0 0.0
    %3046 = vmatpush2.msra.mxu0 0.0
    %3047 = vmatprep.subr.mxu0 0.0
    %3048 = vmatpush2.msra.mxu0 0.0
    %3049 = vmatprep.subr.mxu0 0.0
    %3050 = vmatpush2.msra.mxu0 0.0
    %3051 = vmatprep.subr.mxu0 0.0
    %3052 = vmatpush2.msra.mxu0 0.0
    %3053 = vmatprep.subr.mxu0 0.0
    %3054 = vmatpush2.msra.mxu0 0.0
    %3055 = vmatprep.subr.mxu0 0.0
    %3056 = vmatpush2.msra.mxu0 0.0
    %3057 = vmatprep.subr.mxu0 0.0
    %3058 = vmatpush2.msra.mxu0 0.0
    %3059 = vmatprep.subr.mxu0 0.0
    %3060 = vmatpush2.msra.mxu0 0.0
    %3061 = vmatprep.subr.mxu0 0.0
    %3062 = vmatpush2.msra.mxu0 0.0
    %3063 = vmatprep.subr.mxu0 0.0
    %3064 = vmatpush2.msra.mxu0 0.0
    %3065 = vmatprep.subr.mxu0 0.0
    %3066 = vmatpush2.msra.mxu0 0.0
    %3067 = vmatprep.subr.mxu0 0.0
    %3068 = vmatpush2.msra.mxu0 0.0
    %3069 = vmatprep.subr.mxu0 0.0
    %3070 = vmatpush2.msra.mxu0 0.0
    %3071 = vmatprep.subr.mxu0 0.0
    %3072 = vmatpush2.msra.mxu0 0.0
    %3073 = vmatprep.subr.mxu0 0.0
    %3074 = vmatpush2.msra.mxu0 0.0
    %3075 = vmatprep.subr.mxu0 0.0
    %3076 = vmatpush2.msra.mxu0 0.0
    %3077 = vmatprep.mubr.f32.mxu0 0.0
    %3078 = vmatmul.mubr.f32.gmra.mxu0 %v3007
    %v3079 = vpop.f32.mrf.mxu0
    %v3080 = vadd.f32 %v3004, %v3079
    %v3081 = vpop.f32.mrf.mxu0
    %3082 = vdwg.mxu0
    %vm3083 = vcmask 73728
    %v3084 = vsel %vm3083, %v3080, -inf
    %3085 = vmax.xlane.f32.xlu0 %v3084
    %v3086 = vpop.xlane.xlu0 %3085
    %v3087 = vsub.f32 %v3080, %v3086
    %v3088 = vmul.f32 %v3087, 1.442695
    %v3089 = vpow.pop %v3088
    %v3090 = vsel %vm3083, %v3089, 0.0
    %3091 = vadd.xlane.f32.xlu0 %v3090
    %v3092 = vpop.xlane.xlu0 %3091
    %v3093 = vlog2.pop %v3092
    %v3094 = vmul.f32 %v3093, 0.6931472
    %v3095 = vsub.f32 %v3087, %v3094
    %3096 = vst.msk [vmem:[#allocation7] sm:$0x1] %vm3083, %v3095
    %v3097 = vmax.f32 %v327, %v329
    %v3098 = vmax.f32 %v328, %v330
    %v3099 = vmax.f32 %v3097, %v3098
    %v3101 = vrot.slane %v3099, 4
    %v3103 = vmax.f32 %v3099, %v3101
    %v3105 = vrot.slane %v3103, 2
    %v3107 = vmax.f32 %v3103, %v3105
    %v3109 = vrot.slane %v3107, 1
    %v3111 = vmax.f32 %v3107, %v3109
    %v3112 = vmax.f32 %v1034, %v1035
    %v3114 = vrot.slane %v3112, 4
    %v3116 = vmax.f32 %v3112, %v3114
    %v3118 = vrot.slane %v3116, 2
    %v3120 = vmax.f32 %v3116, %v3118
    %v3122 = vrot.slane %v3120, 1
    %v3124 = vmax.f32 %v3120, %v3122
    %v3127 = vrot.slane %v2059, 4
    %v3128 = vrot.slane %v2060, 4
    %v3131 = vmax.f32 %v2059, %v3127
    %v3132 = vmax.f32 %v2060, %v3128
    %v3135 = vrot.slane %v3131, 2
    %v3136 = vrot.slane %v3132, 2
    %v3139 = vmax.f32 %v3131, %v3135
    %v3140 = vmax.f32 %v3132, %v3136
    %v3143 = vrot.slane %v3139, 1
    %v3144 = vrot.slane %v3140, 1
    %v3147 = vmax.f32 %v3139, %v3143
    %v3148 = vmax.f32 %v3140, %v3144
    %v3149 = vld [vmem:[%s37] sm:$0xff]
    %v3150 = vld [vmem:[%s37 + $0x8] sm:$0xff]
    %v3151 = vld [vmem:[%s37 + $0x10] sm:$0xff]
    %v3152 = vld [vmem:[%s37 + $0x18] sm:$0xff]
    %v3153 = vld [vmem:[%s37 + $0x20] sm:$0xff]
    %v3154 = vld [vmem:[%s37 + $0x28] sm:$0xff]
    %v3155 = vld [vmem:[%s39] sm:$0xff]
    %v3156 = vld [vmem:[%s39 + $0x8] sm:$0xff]
    %v3157 = vld [vmem:[%s39 + $0x10] sm:$0xff]
    %v3158 = vld [vmem:[%s39 + $0x18] sm:$0xff]
    %v3159 = vld [vmem:[%s39 + $0x20] sm:$0xff]
    %v3160 = vld [vmem:[%s39 + $0x28] sm:$0xff]
    %v3161 = vld [vmem:[%s39 + $0x30] sm:$0xff]
    %v3162 = vld [vmem:[%s39 + $0x38] sm:$0xff]
    %v3163 = vld [vmem:[%s39 + $0x40] sm:$0xff]
    %v3164 = vld [vmem:[%s39 + $0x48] sm:$0xff]
    %v3165 = vld [vmem:[%s39 + $0x50] sm:$0xff]
    %v3166 = vld [vmem:[%s39 + $0x58] sm:$0xff]
    %v3167 = vld [vmem:[%s39 + $0x60] sm:$0xff]
    %v3168 = vld [vmem:[%s39 + $0x68] sm:$0xff]
    %v3169 = vld [vmem:[%s39 + $0x70] sm:$0xff]
    %v3170 = vld [vmem:[%s39 + $0x78] sm:$0xff]
    %v3171 = vld [vmem:[%s39 + $0x80] sm:$0xff]
    %v3172 = vld [vmem:[%s39 + $0x88] sm:$0xff]
    %v3173 = vld [vmem:[%s39 + $0x90] sm:$0xff]
    %v3174 = vld [vmem:[%s39 + $0x98] sm:$0xff]
    %v3175 = vld [vmem:[%s39 + $0xa0] sm:$0xff]
    %v3176 = vld [vmem:[%s39 + $0xa8] sm:$0xff]
    %v3177 = vld [vmem:[%s39 + $0xb0] sm:$0xff]
    %v3178 = vld [vmem:[%s39 + $0xb8] sm:$0xff]
    %v3179 = vrot.slane %v2074, 4
    %v3180 = vsel %vm1282, %v3179, 0
    %3182 = vmatprep.subr.mxu0 0.0
    %3183 = vmatpush1.msra.mxu0 0.0
    %3184 = vmatprep.subr.mxu0 0.0
    %3185 = vmatpush1.msra.mxu0 0.0
    %3186 = vmatprep.subr.mxu0 0.0
    %3187 = vmatpush1.msra.mxu0 0.0
    %3188 = vmatprep.subr.mxu0 0.0
    %3189 = vmatpush1.msra.mxu0 0.0
    %3190 = vmatprep.subr.mxu0 %v3178
    %3191 = vmatpush1.msra.mxu0 %v3177
    %3192 = vmatprep.subr.mxu0 %v3176
    %3193 = vmatpush1.msra.mxu0 %v3175
    %3194 = vmatprep.subr.mxu0 %v3174
    %3195 = vmatpush1.msra.mxu0 %v3173
    %3196 = vmatprep.subr.mxu0 %v3172
    %3197 = vmatpush1.msra.mxu0 %v3171
    %3198 = vmatprep.subr.mxu0 %v3170
    %3199 = vmatpush1.msra.mxu0 %v3169
    %3200 = vmatprep.subr.mxu0 %v3168
    %3201 = vmatpush1.msra.mxu0 %v3167
    %3202 = vmatprep.subr.mxu0 %v3166
    %3203 = vmatpush1.msra.mxu0 %v3165
    %3204 = vmatprep.subr.mxu0 %v3164
    %3205 = vmatpush1.msra.mxu0 %v3163
    %3206 = vmatprep.subr.mxu0 %v3162
    %3207 = vmatpush1.msra.mxu0 %v3161
    %3208 = vmatprep.subr.mxu0 %v3160
    %3209 = vmatpush1.msra.mxu0 %v3159
    %3210 = vmatprep.subr.mxu0 %v3158
    %3211 = vmatpush1.msra.mxu0 %v3157
    %3212 = vmatprep.subr.mxu0 %v3156
    %3213 = vmatpush1.msra.mxu0 %v3155
    %3214 = vmatprep.subr.mxu0 0.0
    %3215 = vmatpush2.msra.mxu0 0.0
    %3216 = vmatprep.subr.mxu0 0.0
    %3217 = vmatpush2.msra.mxu0 0.0
    %3218 = vmatprep.subr.mxu0 0.0
    %3219 = vmatpush2.msra.mxu0 0.0
    %3220 = vmatprep.subr.mxu0 0.0
    %3221 = vmatpush2.msra.mxu0 0.0
    %3222 = vmatprep.subr.mxu0 0.0
    %3223 = vmatpush2.msra.mxu0 0.0
    %3224 = vmatprep.subr.mxu0 0.0
    %3225 = vmatpush2.msra.mxu0 0.0
    %3226 = vmatprep.subr.mxu0 0.0
    %3227 = vmatpush2.msra.mxu0 0.0
    %3228 = vmatprep.subr.mxu0 0.0
    %3229 = vmatpush2.msra.mxu0 0.0
    %3230 = vmatprep.subr.mxu0 0.0
    %3231 = vmatpush2.msra.mxu0 0.0
    %3232 = vmatprep.subr.mxu0 0.0
    %3233 = vmatpush2.msra.mxu0 0.0
    %3234 = vmatprep.subr.mxu0 0.0
    %3235 = vmatpush2.msra.mxu0 0.0
    %3236 = vmatprep.subr.mxu0 0.0
    %3237 = vmatpush2.msra.mxu0 0.0
    %3238 = vmatprep.subr.mxu0 0.0
    %3239 = vmatpush2.msra.mxu0 0.0
    %3240 = vmatprep.subr.mxu0 0.0
    %3241 = vmatpush2.msra.mxu0 0.0
    %3242 = vmatprep.subr.mxu0 0.0
    %3243 = vmatpush2.msra.mxu0 0.0
    %3244 = vmatprep.subr.mxu0 0.0
    %3245 = vmatpush2.msra.mxu0 0.0
    %3246 = vmatprep.mubr.f32.mxu0 0.0
    %3247 = vmatmul.mubr.f32.gmra.mxu0 %v3180
    %v3248 = vpop.f32.mrf.mxu0
    %v3249 = vadd.f32 0.0, %v3248
    %v3250 = vpop.f32.mrf.mxu0
    %v3251 = vadd.f32 0.0, %v3250
    %3252 = vdwg.mxu0
    %v3253 = vrot.slane %v2067, 4
    %v3254 = vsel %vm622, %v3253, 0
    %3256 = vmatprep.subr.mxu0 0.0
    %3257 = vmatpush1.msra.mxu0 0.0
    %3258 = vmatprep.subr.mxu0 0.0
    %3259 = vmatpush1.msra.mxu0 0.0
    %3260 = vmatprep.subr.mxu0 0.0
    %3261 = vmatpush1.msra.mxu0 0.0
    %3262 = vmatprep.subr.mxu0 0.0
    %3263 = vmatpush1.msra.mxu0 0.0
    %3264 = vmatprep.subr.mxu0 0.0
    %3265 = vmatpush1.msra.mxu0 0.0
    %3266 = vmatprep.subr.mxu0 0.0
    %3267 = vmatpush1.msra.mxu0 0.0
    %3268 = vmatprep.subr.mxu0 0.0
    %3269 = vmatpush1.msra.mxu0 0.0
    %3270 = vmatprep.subr.mxu0 0.0
    %3271 = vmatpush1.msra.mxu0 0.0
    %3272 = vmatprep.subr.mxu0 0.0
    %3273 = vmatpush1.msra.mxu0 0.0
    %3274 = vmatprep.subr.mxu0 0.0
    %3275 = vmatpush1.msra.mxu0 0.0
    %3276 = vmatprep.subr.mxu0 0.0
    %3277 = vmatpush1.msra.mxu0 0.0
    %3278 = vmatprep.subr.mxu0 0.0
    %3279 = vmatpush1.msra.mxu0 0.0
    %3280 = vmatprep.subr.mxu0 0.0
    %3281 = vmatpush1.msra.mxu0 0.0
    %3282 = vmatprep.subr.mxu0 %v3154
    %3283 = vmatpush1.msra.mxu0 %v3153
    %3284 = vmatprep.subr.mxu0 %v3152
    %3285 = vmatpush1.msra.mxu0 %v3151
    %3286 = vmatprep.subr.mxu0 %v3150
    %3287 = vmatpush1.msra.mxu0 %v3149
    %3288 = vmatprep.subr.mxu0 0.0
    %3289 = vmatpush2.msra.mxu0 0.0
    %3290 = vmatprep.subr.mxu0 0.0
    %3291 = vmatpush2.msra.mxu0 0.0
    %3292 = vmatprep.subr.mxu0 0.0
    %3293 = vmatpush2.msra.mxu0 0.0
    %3294 = vmatprep.subr.mxu0 0.0
    %3295 = vmatpush2.msra.mxu0 0.0
    %3296 = vmatprep.subr.mxu0 0.0
    %3297 = vmatpush2.msra.mxu0 0.0
    %3298 = vmatprep.subr.mxu0 0.0
    %3299 = vmatpush2.msra.mxu0 0.0
    %3300 = vmatprep.subr.mxu0 0.0
    %3301 = vmatpush2.msra.mxu0 0.0
    %3302 = vmatprep.subr.mxu0 0.0
    %3303 = vmatpush2.msra.mxu0 0.0
    %3304 = vmatprep.subr.mxu0 0.0
    %3305 = vmatpush2.msra.mxu0 0.0
    %3306 = vmatprep.subr.mxu0 0.0
    %3307 = vmatpush2.msra.mxu0 0.0
    %3308 = vmatprep.subr.mxu0 0.0
    %3309 = vmatpush2.msra.mxu0 0.0
    %3310 = vmatprep.subr.mxu0 0.0
    %3311 = vmatpush2.msra.mxu0 0.0
    %3312 = vmatprep.subr.mxu0 0.0
    %3313 = vmatpush2.msra.mxu0 0.0
    %3314 = vmatprep.subr.mxu0 0.0
    %3315 = vmatpush2.msra.mxu0 0.0
    %3316 = vmatprep.subr.mxu0 0.0
    %3317 = vmatpush2.msra.mxu0 0.0
    %3318 = vmatprep.subr.mxu0 0.0
    %3319 = vmatpush2.msra.mxu0 0.0
    %3320 = vmatprep.mubr.f32.mxu0 0.0
    %3321 = vmatmul.mubr.f32.gmra.mxu0 %v3254
    %v3322 = vpop.f32.mrf.mxu0
    %v3323 = vadd.f32 %v3249, %v3322
    %v3324 = vpop.f32.mrf.mxu0
    %v3325 = vadd.f32 %v3251, %v3324
    %3326 = vdwg.mxu0
    %v3327 = vld [vmem:[%s41] sm:$0xff]
    %v3328 = vld [vmem:[%s41 + $0x8] sm:$0xff]
    %v3329 = vld [vmem:[%s41 + $0x10] sm:$0xff]
    %v3330 = vld [vmem:[%s41 + $0x18] sm:$0xff]
    %v3331 = vld [vmem:[%s41 + $0x20] sm:$0xff]
    %v3332 = vld [vmem:[%s41 + $0x28] sm:$0xff]
    %v3333 = vld [vmem:[%s41 + $0x30] sm:$0xff]
    %v3334 = vld [vmem:[%s41 + $0x38] sm:$0xff]
    %v3335 = vld [vmem:[%s41 + $0x40] sm:$0xff]
    %v3336 = vld [vmem:[%s41 + $0x48] sm:$0xff]
    %v3337 = vld [vmem:[%s41 + $0x50] sm:$0xff]
    %v3338 = vld [vmem:[%s41 + $0x58] sm:$0xff]
    %v3339 = vld [vmem:[%s41 + $0x60] sm:$0xff]
    %v3340 = vld [vmem:[%s41 + $0x68] sm:$0xff]
    %v3341 = vld [vmem:[%s41 + $0x70] sm:$0xff]
    %v3342 = vld [vmem:[%s41 + $0x78] sm:$0xff]
    %v3343 = vld [vmem:[%s41 + $0x80] sm:$0xff]
    %v3344 = vld [vmem:[%s41 + $0x88] sm:$0xff]
    %v3345 = vld [vmem:[%s41 + $0x90] sm:$0xff]
    %v3346 = vld [vmem:[%s41 + $0x98] sm:$0xff]
    %v3347 = vld [vmem:[%s41 + $0xa0] sm:$0xff]
    %v3348 = vld [vmem:[%s41 + $0xa8] sm:$0xff]
    %v3349 = vld [vmem:[%s41 + $0xb0] sm:$0xff]
    %v3350 = vld [vmem:[%s41 + $0xb8] sm:$0xff]
    %v3351 = vld [vmem:[%s41 + $0xc0] sm:$0xff]
    %v3352 = vld [vmem:[%s41 + $0xc8] sm:$0xff]
    %v3353 = vld [vmem:[%s41 + $0xd0] sm:$0xff]
    %v3354 = vld [vmem:[%s41 + $0xd8] sm:$0xff]
    %v3355 = vld [vmem:[%s41 + $0xe0] sm:$0xff]
    %v3356 = vld [vmem:[%s41 + $0xe8] sm:$0xff]
    %v3357 = vld [vmem:[%s41 + $0xf0] sm:$0xff]
    %v3358 = vld [vmem:[%s41 + $0xf8] sm:$0xff]
    %v3359 = vld [vmem:[%s41 + $0x100] sm:$0xff]
    %v3360 = vld [vmem:[%s41 + $0x108] sm:$0xff]
    %v3361 = vld [vmem:[%s41 + $0x110] sm:$0xff]
    %v3362 = vld [vmem:[%s41 + $0x118] sm:$0xff]
    %v3363 = vld [vmem:[%s41 + $0x120] sm:$0xff]
    %v3364 = vld [vmem:[%s41 + $0x128] sm:$0xff]
    %v3365 = vld [vmem:[%s41 + $0x130] sm:$0xff]
    %v3366 = vld [vmem:[%s41 + $0x138] sm:$0xff]
    %v3367 = vld [vmem:[%s41 + $0x140] sm:$0xff]
    %v3368 = vld [vmem:[%s41 + $0x148] sm:$0xff]
    %v3369 = vld [vmem:[%s41 + $0x150] sm:$0xff]
    %v3370 = vld [vmem:[%s41 + $0x158] sm:$0xff]
    %v3371 = vld [vmem:[%s41 + $0x160] sm:$0xff]
    %v3372 = vld [vmem:[%s41 + $0x168] sm:$0xff]
    %v3373 = vld [vmem:[%s41 + $0x170] sm:$0xff]
    %v3374 = vld [vmem:[%s41 + $0x178] sm:$0xff]
    %v3375 = vld [vmem:[%s41 + $0x180] sm:$0xff]
    %v3376 = vld [vmem:[%s41 + $0x188] sm:$0xff]
    %v3377 = vld [vmem:[%s41 + $0x190] sm:$0xff]
    %v3378 = vld [vmem:[%s41 + $0x198] sm:$0xff]
    %v3379 = vld [vmem:[%s41 + $0x1a0] sm:$0xff]
    %v3380 = vld [vmem:[%s41 + $0x1a8] sm:$0xff]
    %v3381 = vld [vmem:[%s41 + $0x1b0] sm:$0xff]
    %v3382 = vld [vmem:[%s41 + $0x1b8] sm:$0xff]
    %v3383 = vld [vmem:[%s41 + $0x1c0] sm:$0xff]
    %v3384 = vld [vmem:[%s41 + $0x1c8] sm:$0xff]
    %v3385 = vld [vmem:[%s41 + $0x1d0] sm:$0xff]
    %v3386 = vld [vmem:[%s41 + $0x1d8] sm:$0xff]
    %v3387 = vld [vmem:[%s41 + $0x1e0] sm:$0xff]
    %v3388 = vld [vmem:[%s41 + $0x1e8] sm:$0xff]
    %v3389 = vld [vmem:[%s41 + $0x1f0] sm:$0xff]
    %v3390 = vld [vmem:[%s41 + $0x1f8] sm:$0xff]
    %v3391 = vld [vmem:[%s41 + $0x200] sm:$0xff]
    %v3392 = vld [vmem:[%s41 + $0x208] sm:$0xff]
    %v3393 = vld [vmem:[%s41 + $0x210] sm:$0xff]
    %v3394 = vld [vmem:[%s41 + $0x218] sm:$0xff]
    %v3395 = vld [vmem:[%s41 + $0x220] sm:$0xff]
    %v3396 = vld [vmem:[%s41 + $0x228] sm:$0xff]
    %v3397 = vld [vmem:[%s41 + $0x230] sm:$0xff]
    %v3398 = vld [vmem:[%s41 + $0x238] sm:$0xff]
    %v3399 = vld [vmem:[%s41 + $0x240] sm:$0xff]
    %v3400 = vld [vmem:[%s41 + $0x248] sm:$0xff]
    %v3401 = vld [vmem:[%s41 + $0x250] sm:$0xff]
    %v3402 = vld [vmem:[%s41 + $0x258] sm:$0xff]
    %v3403 = vld [vmem:[%s41 + $0x260] sm:$0xff]
    %v3404 = vld [vmem:[%s41 + $0x268] sm:$0xff]
    %v3405 = vld [vmem:[%s41 + $0x270] sm:$0xff]
    %v3406 = vld [vmem:[%s41 + $0x278] sm:$0xff]
    %v3407 = vld [vmem:[%s41 + $0x280] sm:$0xff]
    %v3408 = vld [vmem:[%s41 + $0x288] sm:$0xff]
    %v3409 = vld [vmem:[%s41 + $0x290] sm:$0xff]
    %v3410 = vld [vmem:[%s41 + $0x298] sm:$0xff]
    %v3411 = vld [vmem:[%s41 + $0x2a0] sm:$0xff]
    %v3412 = vld [vmem:[%s41 + $0x2a8] sm:$0xff]
    %v3413 = vld [vmem:[%s41 + $0x2b0] sm:$0xff]
    %v3414 = vld [vmem:[%s41 + $0x2b8] sm:$0xff]
    %v3415 = vld [vmem:[%s41 + $0x2c0] sm:$0xff]
    %v3416 = vld [vmem:[%s41 + $0x2c8] sm:$0xff]
    %v3417 = vld [vmem:[%s41 + $0x2d0] sm:$0xff]
    %v3418 = vld [vmem:[%s41 + $0x2d8] sm:$0xff]
    %v3419 = vld [vmem:[%s41 + $0x2e0] sm:$0xff]
    %v3420 = vld [vmem:[%s41 + $0x2e8] sm:$0xff]
    %v3421 = vld [vmem:[%s41 + $0x2f0] sm:$0xff]
    %v3422 = vld [vmem:[%s41 + $0x2f8] sm:$0xff]
    %v3426 = vrot.slane %v2096, 4
    %v3427 = vrot.slane %v2097, 4
    %v3428 = vrot.slane %v2098, 4
    %3432 = vmatprep.subr.mxu0 %v3358
    %3433 = vmatpush1.msra.mxu0 %v3357
    %3434 = vmatprep.subr.mxu0 %v3356
    %3435 = vmatpush1.msra.mxu0 %v3355
    %3436 = vmatprep.subr.mxu0 %v3354
    %3437 = vmatpush1.msra.mxu0 %v3353
    %3438 = vmatprep.subr.mxu0 %v3352
    %3439 = vmatpush1.msra.mxu0 %v3351
    %3440 = vmatprep.subr.mxu0 %v3350
    %3441 = vmatpush1.msra.mxu0 %v3349
    %3442 = vmatprep.subr.mxu0 %v3348
    %3443 = vmatpush1.msra.mxu0 %v3347
    %3444 = vmatprep.subr.mxu0 %v3346
    %3445 = vmatpush1.msra.mxu0 %v3345
    %3446 = vmatprep.subr.mxu0 %v3344
    %3447 = vmatpush1.msra.mxu0 %v3343
    %3448 = vmatprep.subr.mxu0 %v3342
    %3449 = vmatpush1.msra.mxu0 %v3341
    %3450 = vmatprep.subr.mxu0 %v3340
    %3451 = vmatpush1.msra.mxu0 %v3339
    %3452 = vmatprep.subr.mxu0 %v3338
    %3453 = vmatpush1.msra.mxu0 %v3337
    %3454 = vmatprep.subr.mxu0 %v3336
    %3455 = vmatpush1.msra.mxu0 %v3335
    %3456 = vmatprep.subr.mxu0 %v3334
    %3457 = vmatpush1.msra.mxu0 %v3333
    %3458 = vmatprep.subr.mxu0 %v3332
    %3459 = vmatpush1.msra.mxu0 %v3331
    %3460 = vmatprep.subr.mxu0 %v3330
    %3461 = vmatpush1.msra.mxu0 %v3329
    %3462 = vmatprep.subr.mxu0 %v3328
    %3463 = vmatpush1.msra.mxu0 %v3327
    %3464 = vmatprep.subr.mxu0 %v3390
    %3465 = vmatpush2.msra.mxu0 %v3389
    %3466 = vmatprep.subr.mxu0 %v3388
    %3467 = vmatpush2.msra.mxu0 %v3387
    %3468 = vmatprep.subr.mxu0 %v3386
    %3469 = vmatpush2.msra.mxu0 %v3385
    %3470 = vmatprep.subr.mxu0 %v3384
    %3471 = vmatpush2.msra.mxu0 %v3383
    %3472 = vmatprep.subr.mxu0 %v3382
    %3473 = vmatpush2.msra.mxu0 %v3381
    %3474 = vmatprep.subr.mxu0 %v3380
    %3475 = vmatpush2.msra.mxu0 %v3379
    %3476 = vmatprep.subr.mxu0 %v3378
    %3477 = vmatpush2.msra.mxu0 %v3377
    %3478 = vmatprep.subr.mxu0 %v3376
    %3479 = vmatpush2.msra.mxu0 %v3375
    %3480 = vmatprep.subr.mxu0 %v3374
    %3481 = vmatpush2.msra.mxu0 %v3373
    %3482 = vmatprep.subr.mxu0 %v3372
    %3483 = vmatpush2.msra.mxu0 %v3371
    %3484 = vmatprep.subr.mxu0 %v3370
    %3485 = vmatpush2.msra.mxu0 %v3369
    %3486 = vmatprep.subr.mxu0 %v3368
    %3487 = vmatpush2.msra.mxu0 %v3367
    %3488 = vmatprep.subr.mxu0 %v3366
    %3489 = vmatpush2.msra.mxu0 %v3365
    %3490 = vmatprep.subr.mxu0 %v3364
    %3491 = vmatpush2.msra.mxu0 %v3363
    %3492 = vmatprep.subr.mxu0 %v3362
    %3493 = vmatpush2.msra.mxu0 %v3361
    %3494 = vmatprep.subr.mxu0 %v3360
    %3495 = vmatpush2.msra.mxu0 %v3359
    %3496 = vmatprep.mubr.f32.mxu0 %v3427
    %3497 = vmatmul.mubr.f32.gmra.mxu0 %v3426
    %v3498 = vpop.f32.mrf.mxu0
    %v3499 = vadd.f32 0.0, %v3498
    %v3500 = vpop.f32.mrf.mxu0
    %v3501 = vadd.f32 0.0, %v3500
    %3502 = vdwg.mxu0
    %3503 = vmatprep.subr.mxu0 %v3422
    %3504 = vmatpush1.msra.mxu0 %v3421
    %3505 = vmatprep.subr.mxu0 %v3420
    %3506 = vmatpush1.msra.mxu0 %v3419
    %3507 = vmatprep.subr.mxu0 %v3418
    %3508 = vmatpush1.msra.mxu0 %v3417
    %3509 = vmatprep.subr.mxu0 %v3416
    %3510 = vmatpush1.msra.mxu0 %v3415
    %3511 = vmatprep.subr.mxu0 %v3414
    %3512 = vmatpush1.msra.mxu0 %v3413
    %3513 = vmatprep.subr.mxu0 %v3412
    %3514 = vmatpush1.msra.mxu0 %v3411
    %3515 = vmatprep.subr.mxu0 %v3410
    %3516 = vmatpush1.msra.mxu0 %v3409
    %3517 = vmatprep.subr.mxu0 %v3408
    %3518 = vmatpush1.msra.mxu0 %v3407
    %3519 = vmatprep.subr.mxu0 %v3406
    %3520 = vmatpush1.msra.mxu0 %v3405
    %3521 = vmatprep.subr.mxu0 %v3404
    %3522 = vmatpush1.msra.mxu0 %v3403
    %3523 = vmatprep.subr.mxu0 %v3402
    %3524 = vmatpush1.msra.mxu0 %v3401
    %3525 = vmatprep.subr.mxu0 %v3400
    %3526 = vmatpush1.msra.mxu0 %v3399
    %3527 = vmatprep.subr.mxu0 %v3398
    %3528 = vmatpush1.msra.mxu0 %v3397
    %3529 = vmatprep.subr.mxu0 %v3396
    %3530 = vmatpush1.msra.mxu0 %v3395
    %3531 = vmatprep.subr.mxu0 %v3394
    %3532 = vmatpush1.msra.mxu0 %v3393
    %3533 = vmatprep.subr.mxu0 %v3392
    %3534 = vmatpush1.msra.mxu0 %v3391
    %3535 = vmatprep.subr.mxu0 0.0
    %3536 = vmatpush2.msra.mxu0 0.0
    %3537 = vmatprep.subr.mxu0 0.0
    %3538 = vmatpush2.msra.mxu0 0.0
    %3539 = vmatprep.subr.mxu0 0.0
    %3540 = vmatpush2.msra.mxu0 0.0
    %3541 = vmatprep.subr.mxu0 0.0
    %3542 = vmatpush2.msra.mxu0 0.0
    %3543 = vmatprep.subr.mxu0 0.0
    %3544 = vmatpush2.msra.mxu0 0.0
    %3545 = vmatprep.subr.mxu0 0.0
    %3546 = vmatpush2.msra.mxu0 0.0
    %3547 = vmatprep.subr.mxu0 0.0
    %3548 = vmatpush2.msra.mxu0 0.0
    %3549 = vmatprep.subr.mxu0 0.0
    %3550 = vmatpush2.msra.mxu0 0.0
    %3551 = vmatprep.subr.mxu0 0.0
    %3552 = vmatpush2.msra.mxu0 0.0
    %3553 = vmatprep.subr.mxu0 0.0
    %3554 = vmatpush2.msra.mxu0 0.0
    %3555 = vmatprep.subr.mxu0 0.0
    %3556 = vmatpush2.msra.mxu0 0.0
    %3557 = vmatprep.subr.mxu0 0.0
    %3558 = vmatpush2.msra.mxu0 0.0
    %3559 = vmatprep.subr.mxu0 0.0
    %3560 = vmatpush2.msra.mxu0 0.0
    %3561 = vmatprep.subr.mxu0 0.0
    %3562 = vmatpush2.msra.mxu0 0.0
    %3563 = vmatprep.subr.mxu0 0.0
    %3564 = vmatpush2.msra.mxu0 0.0
    %3565 = vmatprep.subr.mxu0 0.0
    %3566 = vmatpush2.msra.mxu0 0.0
    %3567 = vmatprep.mubr.f32.mxu0 0.0
    %3568 = vmatmul.mubr.f32.gmra.mxu0 %v3428
    %v3569 = vpop.f32.mrf.mxu0
    %v3570 = vadd.f32 %v3499, %v3569
    %v3571 = vpop.f32.mrf.mxu0
    %v3572 = vadd.f32 %v3501, %v3571
    %3573 = vdwg.mxu0
    %v3574 = vadd.f32 %v3323, %v3570
    %v3575 = vadd.f32 %v3325, %v3572
    %v3576 = vld [vmem:[%s43] sm:$0xff]
    %v3577 = vld [vmem:[%s43 + $0x8] sm:$0xff]
    %v3578 = vld [vmem:[%s43 + $0x10] sm:$0xff]
    %v3579 = vld [vmem:[%s43 + $0x18] sm:$0xff]
    %v3581 = vsel %vm548, %v3111, 0
    %3583 = vmatprep.subr.mxu0 0.0
    %3584 = vmatpush1.msra.mxu0 0.0
    %3585 = vmatprep.subr.mxu0 0.0
    %3586 = vmatpush1.msra.mxu0 0.0
    %3587 = vmatprep.subr.mxu0 0.0
    %3588 = vmatpush1.msra.mxu0 0.0
    %3589 = vmatprep.subr.mxu0 0.0
    %3590 = vmatpush1.msra.mxu0 0.0
    %3591 = vmatprep.subr.mxu0 0.0
    %3592 = vmatpush1.msra.mxu0 0.0
    %3593 = vmatprep.subr.mxu0 0.0
    %3594 = vmatpush1.msra.mxu0 0.0
    %3595 = vmatprep.subr.mxu0 0.0
    %3596 = vmatpush1.msra.mxu0 0.0
    %3597 = vmatprep.subr.mxu0 0.0
    %3598 = vmatpush1.msra.mxu0 0.0
    %3599 = vmatprep.subr.mxu0 0.0
    %3600 = vmatpush1.msra.mxu0 0.0
    %3601 = vmatprep.subr.mxu0 0.0
    %3602 = vmatpush1.msra.mxu0 0.0
    %3603 = vmatprep.subr.mxu0 0.0
    %3604 = vmatpush1.msra.mxu0 0.0
    %3605 = vmatprep.subr.mxu0 0.0
    %3606 = vmatpush1.msra.mxu0 0.0
    %3607 = vmatprep.subr.mxu0 0.0
    %3608 = vmatpush1.msra.mxu0 0.0
    %3609 = vmatprep.subr.mxu0 0.0
    %3610 = vmatpush1.msra.mxu0 0.0
    %3611 = vmatprep.subr.mxu0 %v3579
    %3612 = vmatpush1.msra.mxu0 %v3578
    %3613 = vmatprep.subr.mxu0 %v3577
    %3614 = vmatpush1.msra.mxu0 %v3576
    %3615 = vmatprep.subr.mxu0 0.0
    %3616 = vmatpush2.msra.mxu0 0.0
    %3617 = vmatprep.subr.mxu0 0.0
    %3618 = vmatpush2.msra.mxu0 0.0
    %3619 = vmatprep.subr.mxu0 0.0
    %3620 = vmatpush2.msra.mxu0 0.0
    %3621 = vmatprep.subr.mxu0 0.0
    %3622 = vmatpush2.msra.mxu0 0.0
    %3623 = vmatprep.subr.mxu0 0.0
    %3624 = vmatpush2.msra.mxu0 0.0
    %3625 = vmatprep.subr.mxu0 0.0
    %3626 = vmatpush2.msra.mxu0 0.0
    %3627 = vmatprep.subr.mxu0 0.0
    %3628 = vmatpush2.msra.mxu0 0.0
    %3629 = vmatprep.subr.mxu0 0.0
    %3630 = vmatpush2.msra.mxu0 0.0
    %3631 = vmatprep.subr.mxu0 0.0
    %3632 = vmatpush2.msra.mxu0 0.0
    %3633 = vmatprep.subr.mxu0 0.0
    %3634 = vmatpush2.msra.mxu0 0.0
    %3635 = vmatprep.subr.mxu0 0.0
    %3636 = vmatpush2.msra.mxu0 0.0
    %3637 = vmatprep.subr.mxu0 0.0
    %3638 = vmatpush2.msra.mxu0 0.0
    %3639 = vmatprep.subr.mxu0 0.0
    %3640 = vmatpush2.msra.mxu0 0.0
    %3641 = vmatprep.subr.mxu0 0.0
    %3642 = vmatpush2.msra.mxu0 0.0
    %3643 = vmatprep.subr.mxu0 0.0
    %3644 = vmatpush2.msra.mxu0 0.0
    %3645 = vmatprep.subr.mxu0 0.0
    %3646 = vmatpush2.msra.mxu0 0.0
    %3647 = vmatprep.mubr.f32.mxu0 0.0
    %3648 = vmatmul.mubr.f32.gmra.mxu0 %v3581
    %v3649 = vpop.f32.mrf.mxu0
    %v3650 = vadd.f32 0.0, %v3649
    %v3651 = vpop.f32.mrf.mxu0
    %v3652 = vadd.f32 0.0, %v3651
    %3653 = vdwg.mxu0
    %v3654 = vadd.f32 %v3574, %v3650
    %v3655 = vadd.f32 %v3575, %v3652
    %v3656 = vld [vmem:[%s45] sm:$0xff]
    %v3657 = vld [vmem:[%s45 + $0x8] sm:$0xff]
    %v3658 = vld [vmem:[%s45 + $0x10] sm:$0xff]
    %v3659 = vld [vmem:[%s45 + $0x18] sm:$0xff]
    %v3660 = vld [vmem:[%s45 + $0x20] sm:$0xff]
    %v3661 = vld [vmem:[%s45 + $0x28] sm:$0xff]
    %v3662 = vld [vmem:[%s45 + $0x30] sm:$0xff]
    %v3663 = vld [vmem:[%s45 + $0x38] sm:$0xff]
    %v3664 = vld [vmem:[%s45 + $0x40] sm:$0xff]
    %v3665 = vld [vmem:[%s45 + $0x48] sm:$0xff]
    %v3666 = vld [vmem:[%s45 + $0x50] sm:$0xff]
    %v3667 = vld [vmem:[%s45 + $0x58] sm:$0xff]
    %v3668 = vld [vmem:[%s45 + $0x60] sm:$0xff]
    %v3669 = vld [vmem:[%s45 + $0x68] sm:$0xff]
    %v3670 = vld [vmem:[%s45 + $0x70] sm:$0xff]
    %v3671 = vld [vmem:[%s45 + $0x78] sm:$0xff]
    %v3673 = vsel %vm1137, %v3124, 0
    %3675 = vmatprep.subr.mxu0 0.0
    %3676 = vmatpush1.msra.mxu0 0.0
    %3677 = vmatprep.subr.mxu0 0.0
    %3678 = vmatpush1.msra.mxu0 0.0
    %3679 = vmatprep.subr.mxu0 0.0
    %3680 = vmatpush1.msra.mxu0 0.0
    %3681 = vmatprep.subr.mxu0 0.0
    %3682 = vmatpush1.msra.mxu0 0.0
    %3683 = vmatprep.subr.mxu0 0.0
    %3684 = vmatpush1.msra.mxu0 0.0
    %3685 = vmatprep.subr.mxu0 0.0
    %3686 = vmatpush1.msra.mxu0 0.0
    %3687 = vmatprep.subr.mxu0 0.0
    %3688 = vmatpush1.msra.mxu0 0.0
    %3689 = vmatprep.subr.mxu0 0.0
    %3690 = vmatpush1.msra.mxu0 0.0
    %3691 = vmatprep.subr.mxu0 %v3671
    %3692 = vmatpush1.msra.mxu0 %v3670
    %3693 = vmatprep.subr.mxu0 %v3669
    %3694 = vmatpush1.msra.mxu0 %v3668
    %3695 = vmatprep.subr.mxu0 %v3667
    %3696 = vmatpush1.msra.mxu0 %v3666
    %3697 = vmatprep.subr.mxu0 %v3665
    %3698 = vmatpush1.msra.mxu0 %v3664
    %3699 = vmatprep.subr.mxu0 %v3663
    %3700 = vmatpush1.msra.mxu0 %v3662
    %3701 = vmatprep.subr.mxu0 %v3661
    %3702 = vmatpush1.msra.mxu0 %v3660
    %3703 = vmatprep.subr.mxu0 %v3659
    %3704 = vmatpush1.msra.mxu0 %v3658
    %3705 = vmatprep.subr.mxu0 %v3657
    %3706 = vmatpush1.msra.mxu0 %v3656
    %3707 = vmatprep.subr.mxu0 0.0
    %3708 = vmatpush2.msra.mxu0 0.0
    %3709 = vmatprep.subr.mxu0 0.0
    %3710 = vmatpush2.msra.mxu0 0.0
    %3711 = vmatprep.subr.mxu0 0.0
    %3712 = vmatpush2.msra.mxu0 0.0
    %3713 = vmatprep.subr.mxu0 0.0
    %3714 = vmatpush2.msra.mxu0 0.0
    %3715 = vmatprep.subr.mxu0 0.0
    %3716 = vmatpush2.msra.mxu0 0.0
    %3717 = vmatprep.subr.mxu0 0.0
    %3718 = vmatpush2.msra.mxu0 0.0
    %3719 = vmatprep.subr.mxu0 0.0
    %3720 = vmatpush2.msra.mxu0 0.0
    %3721 = vmatprep.subr.mxu0 0.0
    %3722 = vmatpush2.msra.mxu0 0.0
    %3723 = vmatprep.subr.mxu0 0.0
    %3724 = vmatpush2.msra.mxu0 0.0
    %3725 = vmatprep.subr.mxu0 0.0
    %3726 = vmatpush2.msra.mxu0 0.0
    %3727 = vmatprep.subr.mxu0 0.0
    %3728 = vmatpush2.msra.mxu0 0.0
    %3729 = vmatprep.subr.mxu0 0.0
    %3730 = vmatpush2.msra.mxu0 0.0
    %3731 = vmatprep.subr.mxu0 0.0
    %3732 = vmatpush2.msra.mxu0 0.0
    %3733 = vmatprep.subr.mxu0 0.0
    %3734 = vmatpush2.msra.mxu0 0.0
    %3735 = vmatprep.subr.mxu0 0.0
    %3736 = vmatpush2.msra.mxu0 0.0
    %3737 = vmatprep.subr.mxu0 0.0
    %3738 = vmatpush2.msra.mxu0 0.0
    %3739 = vmatprep.mubr.f32.mxu0 0.0
    %3740 = vmatmul.mubr.f32.gmra.mxu0 %v3673
    %v3741 = vpop.f32.mrf.mxu0
    %v3742 = vadd.f32 0.0, %v3741
    %v3743 = vpop.f32.mrf.mxu0
    %v3744 = vadd.f32 0.0, %v3743
    %3745 = vdwg.mxu0
    %v3746 = vadd.f32 %v3654, %v3742
    %v3747 = vadd.f32 %v3655, %v3744
    %v3748 = vld [vmem:[%s47] sm:$0xff]
    %v3749 = vld [vmem:[%s47 + $0x8] sm:$0xff]
    %v3750 = vld [vmem:[%s47 + $0x10] sm:$0xff]
    %v3751 = vld [vmem:[%s47 + $0x18] sm:$0xff]
    %v3752 = vld [vmem:[%s47 + $0x20] sm:$0xff]
    %v3753 = vld [vmem:[%s47 + $0x28] sm:$0xff]
    %v3754 = vld [vmem:[%s47 + $0x30] sm:$0xff]
    %v3755 = vld [vmem:[%s47 + $0x38] sm:$0xff]
    %v3756 = vld [vmem:[%s47 + $0x40] sm:$0xff]
    %v3757 = vld [vmem:[%s47 + $0x48] sm:$0xff]
    %v3758 = vld [vmem:[%s47 + $0x50] sm:$0xff]
    %v3759 = vld [vmem:[%s47 + $0x58] sm:$0xff]
    %v3760 = vld [vmem:[%s47 + $0x60] sm:$0xff]
    %v3761 = vld [vmem:[%s47 + $0x68] sm:$0xff]
    %v3762 = vld [vmem:[%s47 + $0x70] sm:$0xff]
    %v3763 = vld [vmem:[%s47 + $0x78] sm:$0xff]
    %v3764 = vld [vmem:[%s47 + $0x80] sm:$0xff]
    %v3765 = vld [vmem:[%s47 + $0x88] sm:$0xff]
    %v3766 = vld [vmem:[%s47 + $0x90] sm:$0xff]
    %v3767 = vld [vmem:[%s47 + $0x98] sm:$0xff]
    %v3768 = vld [vmem:[%s47 + $0xa0] sm:$0xff]
    %v3769 = vld [vmem:[%s47 + $0xa8] sm:$0xff]
    %v3770 = vld [vmem:[%s47 + $0xb0] sm:$0xff]
    %v3771 = vld [vmem:[%s47 + $0xb8] sm:$0xff]
    %v3772 = vld [vmem:[%s47 + $0xc0] sm:$0xff]
    %v3773 = vld [vmem:[%s47 + $0xc8] sm:$0xff]
    %v3774 = vld [vmem:[%s47 + $0xd0] sm:$0xff]
    %v3775 = vld [vmem:[%s47 + $0xd8] sm:$0xff]
    %v3776 = vld [vmem:[%s47 + $0xe0] sm:$0xff]
    %v3777 = vld [vmem:[%s47 + $0xe8] sm:$0xff]
    %v3778 = vld [vmem:[%s47 + $0xf0] sm:$0xff]
    %v3779 = vld [vmem:[%s47 + $0xf8] sm:$0xff]
    %v3780 = vld [vmem:[%s47 + $0x100] sm:$0xff]
    %v3781 = vld [vmem:[%s47 + $0x108] sm:$0xff]
    %v3782 = vld [vmem:[%s47 + $0x110] sm:$0xff]
    %v3783 = vld [vmem:[%s47 + $0x118] sm:$0xff]
    %v3784 = vld [vmem:[%s47 + $0x120] sm:$0xff]
    %v3785 = vld [vmem:[%s47 + $0x128] sm:$0xff]
    %v3786 = vld [vmem:[%s47 + $0x130] sm:$0xff]
    %v3787 = vld [vmem:[%s47 + $0x138] sm:$0xff]
    %v3788 = vld [vmem:[%s47 + $0x140] sm:$0xff]
    %v3789 = vld [vmem:[%s47 + $0x148] sm:$0xff]
    %v3790 = vld [vmem:[%s47 + $0x150] sm:$0xff]
    %v3791 = vld [vmem:[%s47 + $0x158] sm:$0xff]
    %v3792 = vld [vmem:[%s47 + $0x160] sm:$0xff]
    %v3793 = vld [vmem:[%s47 + $0x168] sm:$0xff]
    %v3794 = vld [vmem:[%s47 + $0x170] sm:$0xff]
    %v3795 = vld [vmem:[%s47 + $0x178] sm:$0xff]
    %v3796 = vld [vmem:[%s47 + $0x180] sm:$0xff]
    %v3797 = vld [vmem:[%s47 + $0x188] sm:$0xff]
    %v3798 = vld [vmem:[%s47 + $0x190] sm:$0xff]
    %v3799 = vld [vmem:[%s47 + $0x198] sm:$0xff]
    %v3800 = vld [vmem:[%s47 + $0x1a0] sm:$0xff]
    %v3801 = vld [vmem:[%s47 + $0x1a8] sm:$0xff]
    %v3802 = vld [vmem:[%s47 + $0x1b0] sm:$0xff]
    %v3803 = vld [vmem:[%s47 + $0x1b8] sm:$0xff]
    %v3804 = vld [vmem:[%s47 + $0x1c0] sm:$0xff]
    %v3805 = vld [vmem:[%s47 + $0x1c8] sm:$0xff]
    %v3806 = vld [vmem:[%s47 + $0x1d0] sm:$0xff]
    %v3807 = vld [vmem:[%s47 + $0x1d8] sm:$0xff]
    %v3808 = vld [vmem:[%s47 + $0x1e0] sm:$0xff]
    %v3809 = vld [vmem:[%s47 + $0x1e8] sm:$0xff]
    %v3810 = vld [vmem:[%s47 + $0x1f0] sm:$0xff]
    %v3811 = vld [vmem:[%s47 + $0x1f8] sm:$0xff]
    %3812 = vmatprep.subr.mxu0 %v3779
    %3813 = vmatpush1.msra.mxu0 %v3778
    %3814 = vmatprep.subr.mxu0 %v3777
    %3815 = vmatpush1.msra.mxu0 %v3776
    %3816 = vmatprep.subr.mxu0 %v3775
    %3817 = vmatpush1.msra.mxu0 %v3774
    %3818 = vmatprep.subr.mxu0 %v3773
    %3819 = vmatpush1.msra.mxu0 %v3772
    %3820 = vmatprep.subr.mxu0 %v3771
    %3821 = vmatpush1.msra.mxu0 %v3770
    %3822 = vmatprep.subr.mxu0 %v3769
    %3823 = vmatpush1.msra.mxu0 %v3768
    %3824 = vmatprep.subr.mxu0 %v3767
    %3825 = vmatpush1.msra.mxu0 %v3766
    %3826 = vmatprep.subr.mxu0 %v3765
    %3827 = vmatpush1.msra.mxu0 %v3764
    %3828 = vmatprep.subr.mxu0 %v3763
    %3829 = vmatpush1.msra.mxu0 %v3762
    %3830 = vmatprep.subr.mxu0 %v3761
    %3831 = vmatpush1.msra.mxu0 %v3760
    %3832 = vmatprep.subr.mxu0 %v3759
    %3833 = vmatpush1.msra.mxu0 %v3758
    %3834 = vmatprep.subr.mxu0 %v3757
    %3835 = vmatpush1.msra.mxu0 %v3756
    %3836 = vmatprep.subr.mxu0 %v3755
    %3837 = vmatpush1.msra.mxu0 %v3754
    %3838 = vmatprep.subr.mxu0 %v3753
    %3839 = vmatpush1.msra.mxu0 %v3752
    %3840 = vmatprep.subr.mxu0 %v3751
    %3841 = vmatpush1.msra.mxu0 %v3750
    %3842 = vmatprep.subr.mxu0 %v3749
    %3843 = vmatpush1.msra.mxu0 %v3748
    %3844 = vmatprep.subr.mxu0 %v3811
    %3845 = vmatpush2.msra.mxu0 %v3810
    %3846 = vmatprep.subr.mxu0 %v3809
    %3847 = vmatpush2.msra.mxu0 %v3808
    %3848 = vmatprep.subr.mxu0 %v3807
    %3849 = vmatpush2.msra.mxu0 %v3806
    %3850 = vmatprep.subr.mxu0 %v3805
    %3851 = vmatpush2.msra.mxu0 %v3804
    %3852 = vmatprep.subr.mxu0 %v3803
    %3853 = vmatpush2.msra.mxu0 %v3802
    %3854 = vmatprep.subr.mxu0 %v3801
    %3855 = vmatpush2.msra.mxu0 %v3800
    %3856 = vmatprep.subr.mxu0 %v3799
    %3857 = vmatpush2.msra.mxu0 %v3798
    %3858 = vmatprep.subr.mxu0 %v3797
    %3859 = vmatpush2.msra.mxu0 %v3796
    %3860 = vmatprep.subr.mxu0 %v3795
    %3861 = vmatpush2.msra.mxu0 %v3794
    %3862 = vmatprep.subr.mxu0 %v3793
    %3863 = vmatpush2.msra.mxu0 %v3792
    %3864 = vmatprep.subr.mxu0 %v3791
    %3865 = vmatpush2.msra.mxu0 %v3790
    %3866 = vmatprep.subr.mxu0 %v3789
    %3867 = vmatpush2.msra.mxu0 %v3788
    %3868 = vmatprep.subr.mxu0 %v3787
    %3869 = vmatpush2.msra.mxu0 %v3786
    %3870 = vmatprep.subr.mxu0 %v3785
    %3871 = vmatpush2.msra.mxu0 %v3784
    %3872 = vmatprep.subr.mxu0 %v3783
    %3873 = vmatpush2.msra.mxu0 %v3782
    %3874 = vmatprep.subr.mxu0 %v3781
    %3875 = vmatpush2.msra.mxu0 %v3780
    %3876 = vmatprep.mubr.f32.mxu0 %v3148
    %3877 = vmatmul.mubr.f32.gmra.mxu0 %v3147
    %v3878 = vpop.f32.mrf.mxu0
    %v3879 = vadd.f32 0.0, %v3878
    %v3880 = vpop.f32.mrf.mxu0
    %v3881 = vadd.f32 0.0, %v3880
    %3882 = vdwg.mxu0
    %v3883 = vadd.f32 %v3746, %v3879
    %v3884 = vadd.f32 %v3747, %v3881
    %v3885 = vld [vmem:[%s49] sm:$0x3]
    %v3887 = vlaneseq
    %v3888 = vshrl.u32 %v3887, 7
    %v3889 = vsub.s32 0, %v3888
    %v3890 = vrot.slane %v3885, %v3889
    %v3891 = vlaneseq
    %v3892 = vshrl.u32 %v3891, 7
    %v3893 = vsub.s32 1, %v3892
    %v3894 = vrot.slane %v3885, %v3893
    %v3897 = vadd.f32 %v3883, %v3890
    %v3898 = vadd.f32 %v3884, %v3894
    %v3899 = vmax.f32 %v3897, 0.0
    %v3900 = vmax.f32 %v3898, 0.0
    %v3901 = vld [vmem:[%s51] sm:$0xff]
    %v3902 = vld [vmem:[%s51 + $0x8] sm:$0xff]
    %v3903 = vld [vmem:[%s51 + $0x10] sm:$0xff]
    %v3904 = vld [vmem:[%s51 + $0x18] sm:$0xff]
    %v3905 = vld [vmem:[%s51 + $0x20] sm:$0xff]
    %v3906 = vld [vmem:[%s51 + $0x28] sm:$0xff]
    %v3907 = vld [vmem:[%s51 + $0x30] sm:$0xff]
    %v3908 = vld [vmem:[%s51 + $0x38] sm:$0xff]
    %v3909 = vld [vmem:[%s51 + $0x40] sm:$0xff]
    %v3910 = vld [vmem:[%s51 + $0x48] sm:$0xff]
    %v3911 = vld [vmem:[%s51 + $0x50] sm:$0xff]
    %v3912 = vld [vmem:[%s51 + $0x58] sm:$0xff]
    %v3913 = vld [vmem:[%s51 + $0x60] sm:$0xff]
    %v3914 = vld [vmem:[%s51 + $0x68] sm:$0xff]
    %v3915 = vld [vmem:[%s51 + $0x70] sm:$0xff]
    %v3916 = vld [vmem:[%s51 + $0x78] sm:$0xff]
    %v3917 = vld [vmem:[%s51 + $0x80] sm:$0xff]
    %v3918 = vld [vmem:[%s51 + $0x88] sm:$0xff]
    %v3919 = vld [vmem:[%s51 + $0x90] sm:$0xff]
    %v3920 = vld [vmem:[%s51 + $0x98] sm:$0xff]
    %v3921 = vld [vmem:[%s51 + $0xa0] sm:$0xff]
    %v3922 = vld [vmem:[%s51 + $0xa8] sm:$0xff]
    %v3923 = vld [vmem:[%s51 + $0xb0] sm:$0xff]
    %v3924 = vld [vmem:[%s51 + $0xb8] sm:$0x7f]
    %v3925 = vld [vmem:[%s53] sm:$0x1]
    %v3927 = vsel %vm2919, %v3900, 0
    %v3930 = vsel %vm2923, %v3924, 0
    %3932 = vmatprep.subr.mxu0 0.0
    %3933 = vmatpush1.msra.mxu0 %v3916
    %3934 = vmatprep.subr.mxu0 0.0
    %3935 = vmatpush1.msra.mxu0 %v3915
    %3936 = vmatprep.subr.mxu0 0.0
    %3937 = vmatpush1.msra.mxu0 %v3914
    %3938 = vmatprep.subr.mxu0 0.0
    %3939 = vmatpush1.msra.mxu0 %v3913
    %3940 = vmatprep.subr.mxu0 0.0
    %3941 = vmatpush1.msra.mxu0 %v3912
    %3942 = vmatprep.subr.mxu0 0.0
    %3943 = vmatpush1.msra.mxu0 %v3911
    %3944 = vmatprep.subr.mxu0 0.0
    %3945 = vmatpush1.msra.mxu0 %v3910
    %3946 = vmatprep.subr.mxu0 0.0
    %3947 = vmatpush1.msra.mxu0 %v3909
    %3948 = vmatprep.subr.mxu0 0.0
    %3949 = vmatpush1.msra.mxu0 %v3908
    %3950 = vmatprep.subr.mxu0 0.0
    %3951 = vmatpush1.msra.mxu0 %v3907
    %3952 = vmatprep.subr.mxu0 0.0
    %3953 = vmatpush1.msra.mxu0 %v3906
    %3954 = vmatprep.subr.mxu0 0.0
    %3955 = vmatpush1.msra.mxu0 %v3905
    %3956 = vmatprep.subr.mxu0 0.0
    %3957 = vmatpush1.msra.mxu0 %v3904
    %3958 = vmatprep.subr.mxu0 0.0
    %3959 = vmatpush1.msra.mxu0 %v3903
    %3960 = vmatprep.subr.mxu0 0.0
    %3961 = vmatpush1.msra.mxu0 %v3902
    %3962 = vmatprep.subr.mxu0 0.0
    %3963 = vmatpush1.msra.mxu0 %v3901
    %3964 = vmatprep.subr.mxu0 0.0
    %3965 = vmatpush2.msra.mxu0 0.0
    %3966 = vmatprep.subr.mxu0 0.0
    %3967 = vmatpush2.msra.mxu0 0.0
    %3968 = vmatprep.subr.mxu0 0.0
    %3969 = vmatpush2.msra.mxu0 0.0
    %3970 = vmatprep.subr.mxu0 0.0
    %3971 = vmatpush2.msra.mxu0 0.0
    %3972 = vmatprep.subr.mxu0 0.0
    %3973 = vmatpush2.msra.mxu0 0.0
    %3974 = vmatprep.subr.mxu0 0.0
    %3975 = vmatpush2.msra.mxu0 0.0
    %3976 = vmatprep.subr.mxu0 0.0
    %3977 = vmatpush2.msra.mxu0 0.0
    %3978 = vmatprep.subr.mxu0 0.0
    %3979 = vmatpush2.msra.mxu0 0.0
    %3980 = vmatprep.subr.mxu0 0.0
    %3981 = vmatpush2.msra.mxu0 %v3930
    %3982 = vmatprep.subr.mxu0 0.0
    %3983 = vmatpush2.msra.mxu0 %v3923
    %3984 = vmatprep.subr.mxu0 0.0
    %3985 = vmatpush2.msra.mxu0 %v3922
    %3986 = vmatprep.subr.mxu0 0.0
    %3987 = vmatpush2.msra.mxu0 %v3921
    %3988 = vmatprep.subr.mxu0 0.0
    %3989 = vmatpush2.msra.mxu0 %v3920
    %3990 = vmatprep.subr.mxu0 0.0
    %3991 = vmatpush2.msra.mxu0 %v3919
    %3992 = vmatprep.subr.mxu0 0.0
    %3993 = vmatpush2.msra.mxu0 %v3918
    %3994 = vmatprep.subr.mxu0 0.0
    %3995 = vmatpush2.msra.mxu0 %v3917
    %3996 = vmatprep.mubr.f32.mxu0 %v3927
    %3997 = vmatmul.mubr.f32.gmra.mxu0 %v3899
    %v3998 = vpop.f32.mrf.mxu0
    %v3999 = vadd.f32 %v3925, %v3998
    %v4000 = vpop.f32.mrf.mxu0
    %4001 = vdwg.mxu0
    %v4002 = vmax.f32 %v3999, 0.0
    %v4003 = vld [vmem:[%s55] sm:$0xff]
    %v4004 = vld [vmem:[%s55 + $0x8] sm:$0xff]
    %v4005 = vld [vmem:[%s55 + $0x10] sm:$0xff]
    %v4006 = vld [vmem:[%s55 + $0x18] sm:$0xff]
    %v4007 = vld [vmem:[%s55 + $0x20] sm:$0xff]
    %v4008 = vld [vmem:[%s55 + $0x28] sm:$0x7]
    %v4009 = vld [vmem:[%s57] sm:$0x1]
    %v4011 = vsel %vm3005, %v4002, 0
    %v4014 = vsel %vm3009, %v4008, 0
    %4016 = vmatprep.subr.mxu0 0.0
    %4017 = vmatpush1.msra.mxu0 0.0
    %4018 = vmatprep.subr.mxu0 0.0
    %4019 = vmatpush1.msra.mxu0 0.0
    %4020 = vmatprep.subr.mxu0 0.0
    %4021 = vmatpush1.msra.mxu0 0.0
    %4022 = vmatprep.subr.mxu0 0.0
    %4023 = vmatpush1.msra.mxu0 0.0
    %4024 = vmatprep.subr.mxu0 0.0
    %4025 = vmatpush1.msra.mxu0 0.0
    %4026 = vmatprep.subr.mxu0 0.0
    %4027 = vmatpush1.msra.mxu0 0.0
    %4028 = vmatprep.subr.mxu0 0.0
    %4029 = vmatpush1.msra.mxu0 0.0
    %4030 = vmatprep.subr.mxu0 0.0
    %4031 = vmatpush1.msra.mxu0 0.0
    %4032 = vmatprep.subr.mxu0 0.0
    %4033 = vmatpush1.msra.mxu0 0.0
    %4034 = vmatprep.subr.mxu0 0.0
    %4035 = vmatpush1.msra.mxu0 0.0
    %4036 = vmatprep.subr.mxu0 0.0
    %4037 = vmatpush1.msra.mxu0 %v4014
    %4038 = vmatprep.subr.mxu0 0.0
    %4039 = vmatpush1.msra.mxu0 %v4007
    %4040 = vmatprep.subr.mxu0 0.0
    %4041 = vmatpush1.msra.mxu0 %v4006
    %4042 = vmatprep.subr.mxu0 0.0
    %4043 = vmatpush1.msra.mxu0 %v4005
    %4044 = vmatprep.subr.mxu0 0.0
    %4045 = vmatpush1.msra.mxu0 %v4004
    %4046 = vmatprep.subr.mxu0 0.0
    %4047 = vmatpush1.msra.mxu0 %v4003
    %4048 = vmatprep.subr.mxu0 0.0
    %4049 = vmatpush2.msra.mxu0 0.0
    %4050 = vmatprep.subr.mxu0 0.0
    %4051 = vmatpush2.msra.mxu0 0.0
    %4052 = vmatprep.subr.mxu0 0.0
    %4053 = vmatpush2.msra.mxu0 0.0
    %4054 = vmatprep.subr.mxu0 0.0
    %4055 = vmatpush2.msra.mxu0 0.0
    %4056 = vmatprep.subr.mxu0 0.0
    %4057 = vmatpush2.msra.mxu0 0.0
    %4058 = vmatprep.subr.mxu0 0.0
    %4059 = vmatpush2.msra.mxu0 0.0
    %4060 = vmatprep.subr.mxu0 0.0
    %4061 = vmatpush2.msra.mxu0 0.0
    %4062 = vmatprep.subr.mxu0 0.0
    %4063 = vmatpush2.msra.mxu0 0.0
    %4064 = vmatprep.subr.mxu0 0.0
    %4065 = vmatpush2.msra.mxu0 0.0
    %4066 = vmatprep.subr.mxu0 0.0
    %4067 = vmatpush2.msra.mxu0 0.0
    %4068 = vmatprep.subr.mxu0 0.0
    %4069 = vmatpush2.msra.mxu0 0.0
    %4070 = vmatprep.subr.mxu0 0.0
    %4071 = vmatpush2.msra.mxu0 0.0
    %4072 = vmatprep.subr.mxu0 0.0
    %4073 = vmatpush2.msra.mxu0 0.0
    %4074 = vmatprep.subr.mxu0 0.0
    %4075 = vmatpush2.msra.mxu0 0.0
    %4076 = vmatprep.subr.mxu0 0.0
    %4077 = vmatpush2.msra.mxu0 0.0
    %4078 = vmatprep.subr.mxu0 0.0
    %4079 = vmatpush2.msra.mxu0 0.0
    %4080 = vmatprep.mubr.f32.mxu0 0.0
    %4081 = vmatmul.mubr.f32.gmra.mxu0 %v4011
    %v4082 = vpop.f32.mrf.mxu0
    %v4083 = vadd.f32 %v4009, %v4082
    %v4084 = vpop.f32.mrf.mxu0
    %4085 = vdwg.mxu0
    %v4086 = vsel %vm3083, %v4083, -inf
    %4087 = vmax.xlane.f32.xlu0 %v4086
    %v4088 = vpop.xlane.xlu0 %4087
    %v4089 = vsub.f32 %v4083, %v4088
    %v4090 = vmul.f32 %v4089, 1.442695
    %v4091 = vpow.pop %v4090
    %v4092 = vsel %vm3083, %v4091, 0.0
    %4093 = vadd.xlane.f32.xlu0 %v4092
    %v4094 = vpop.xlane.xlu0 %4093
    %v4095 = vlog2.pop %v4094
    %v4096 = vmul.f32 %v4095, 0.6931472
    %v4097 = vsub.f32 %v4089, %v4096
    %4098 = vst.msk [vmem:[#allocation7 + $0x1] sm:$0x1] %vm3083, %v4097
    // Predicated region
    $region118: #{sdgraph_cls_forward.1} parent=1 // pred_check
      _
    $region119: #{sdgraph_cls_forward.1} parent=1 // pred_check_branch
      %4100 = sbr.rel (0) target = $region121
    $region120: #{sdgraph_cls_forward.1} parent=1 // pred_region
      %s4102 = ssub.s32 32, 32
      %4103 = vsyncadd [#allocation8], %s4102
      %s4105 = sshll.u32 [#allocation7], 4
      %s4106 = int_to_ptr.vmem [resolvable:$true] %s4105
      %4108 = dma.vmem_to_hbm [thread:$0]  %s4106, 32, %s59, [#allocation8]
    $region121: #{sdgraph_cls_forward.1} parent=1 // pred_fallthru
      _
    // Predicated region
    $region122: #{sdgraph_cls_forward.1} parent=1 // pred_check
      _
    $region123: #{sdgraph_cls_forward.1} parent=1 // pred_check_branch
      %4110 = sbr.rel (0) target = $region125
    $region124: #{sdgraph_cls_forward.1} parent=1 // pred_region
      %4111 = dma.done [#allocation8], 32
    $region125: #{sdgraph_cls_forward.1} parent=1 // pred_fallthru
      _
    %4112 = vsyncpa [#allocation8], 1

</llo_original>
